<compile_context>
chip_gen: v7x
topology: tpu7x:2x2x1
jax: 0.10.0
libtpu: 0.0.40
codegen_flags: <defaults>
</compile_context>

<pallas_src>
import math
import functools

import jax
import jax.numpy as jnp
from jax.experimental import pallas as pl
from jax.experimental.pallas import tpu as pltpu


# Set to jnp.bfloat16 on v6e/v7x to feed the bf16 MXU (f32 accumulate is kept
# via preferred_element_type); left at f32 here so the demo matches the exact
# f32 reference tightly.
_MATMUL_DTYPE = jnp.float32


# ----------------------------------------------------------------------------
# Exact GELU (erf via Abramowitz & Stegun 7.1.26 polynomial, |err| < 1.5e-7).
# exp() goes to the EUP slot, so this is nearly free next to the MXU matmul.
# ----------------------------------------------------------------------------
def _erf(x):
    a1, a2, a3, a4, a5 = (0.254829592, -0.284496736, 1.421413741,
                          -1.453152027, 1.061405429)
    p = 0.3275911
    s = jnp.where(x >= 0.0, 1.0, -1.0)
    ax = jnp.abs(x)
    t = 1.0 / (1.0 + p * ax)
    poly = t * (a1 + t * (a2 + t * (a3 + t * (a4 + t * a5))))
    return s * (1.0 - poly * jnp.exp(-ax * ax))


def _gelu_exact(x):
    return 0.5 * x * (1.0 + _erf(x * (1.0 / math.sqrt(2.0))))


# ----------------------------------------------------------------------------
# Tiling helper: largest tile <= cap that divides n (align-aware)
# ----------------------------------------------------------------------------
def _tile_size(n, cap, align):
    if n <= cap:
        return n
    t = (cap // align) * align
    while t >= align:
        if n % t == 0:
            return t
        t -= align
    t = cap
    while n % t:
        t -= 1
    return t


# ----------------------------------------------------------------------------
# Tiled linear kernel: y = act(x @ W + b) [+ residual]
# Bias / residual tiles have a k-invariant block index so they are fetched
# once per (i, j) output tile; the epilogue (bias, activation, residual add,
# downcast) runs only on the last k step straight out of the VMEM accumulator.
# ----------------------------------------------------------------------------
def _linear_kernel(*refs, act, nk, has_res):
    if has_res:
        x_ref, w_ref, b_ref, res_ref, o_ref, acc_ref = refs
    else:
        x_ref, w_ref, b_ref, o_ref, acc_ref = refs
        res_ref = None

    k = pl.program_id(2)

    @pl.when(k == 0)
    def _():
        acc_ref[...] = jnp.zeros_like(acc_ref)

    x = x_ref[...].astype(_MATMUL_DTYPE)
    w = w_ref[...].astype(_MATMUL_DTYPE)
    acc_ref[...] += jnp.dot(x, w, preferred_element_type=jnp.float32)

    @pl.when(k == nk - 1)
    def _():
        y = acc_ref[...] + b_ref[...].astype(jnp.float32)
        if act == "gelu":
            y = _gelu_exact(y)
        elif act == "tanh":
            y = jnp.tanh(y)
        if has_res:
            y = y + res_ref[...].astype(jnp.float32)
        o_ref[...] = y.astype(o_ref.dtype)


def linear(x, w, b, act="none", residual=None,
           tm_cap=512, tn_cap=512, tk_cap=512):
    """x: [M, K], w: [K, N] (pre-transposed PyTorch weight), b: [1, N]."""
    M, K = x.shape
    N = w.shape[1]
    tm = _tile_size(M, tm_cap, 8)
    tn = _tile_size(N, tn_cap, 128)
    tk = _tile_size(K, tk_cap, 128)
    gm, gn, gk = M // tm, N // tn, K // tk

    in_specs = [
        pl.BlockSpec((tm, tk), lambda i, j, k: (i, k)),
        pl.BlockSpec((tk, tn), lambda i, j, k: (k, j)),
        pl.BlockSpec((1, tn), lambda i, j, k: (0, j)),   # bias follows col tile
    ]
    args = [x, w, b]
    if residual is not None:
        in_specs.append(pl.BlockSpec((tm, tn), lambda i, j, k: (i, j)))
        args.append(residual)

    return pl.pallas_call(
        functools.partial(_linear_kernel, act=act, nk=gk,
                          has_res=residual is not None),
        out_shape=jax.ShapeDtypeStruct((M, N), x.dtype),
        grid=(gm, gn, gk),
        in_specs=in_specs,
        out_specs=pl.BlockSpec((tm, tn), lambda i, j, k: (i, j)),
        scratch_shapes=[pltpu.VMEM((tm, tn), jnp.float32)],
        compiler_params=pltpu.CompilerParams(
            dimension_semantics=("parallel", "parallel", "arbitrary"),
            vmem_limit_bytes=64 * 1024 * 1024),
    )(*args)


# ----------------------------------------------------------------------------
# Row-tiled LayerNorm (biased variance, like torch.nn.LayerNorm).
# ----------------------------------------------------------------------------
def _layernorm_kernel(x_ref, g_ref, b_ref, o_ref, *, eps):
    x = x_ref[...].astype(jnp.float32)
    mean = jnp.mean(x, axis=-1, keepdims=True)
    xc = x - mean
    var = jnp.mean(xc * xc, axis=-1, keepdims=True)
    inv = jax.lax.rsqrt(var + eps)
    y = (xc * inv) * g_ref[...].astype(jnp.float32) + b_ref[...].astype(jnp.float32)
    o_ref[...] = y.astype(o_ref.dtype)


def layernorm(x, g, b, eps, tm_cap=1024):
    N, D = x.shape
    tm = _tile_size(N, tm_cap, 8)
    return pl.pallas_call(
        functools.partial(_layernorm_kernel, eps=eps),
        out_shape=jax.ShapeDtypeStruct((N, D), x.dtype),
        grid=(N // tm,),
        in_specs=[pl.BlockSpec((tm, D), lambda i: (i, 0)),
                  pl.BlockSpec((1, D), lambda i: (0, 0)),
                  pl.BlockSpec((1, D), lambda i: (0, 0))],
        out_specs=pl.BlockSpec((tm, D), lambda i: (i, 0)),
        compiler_params=pltpu.CompilerParams(
            dimension_semantics=("parallel",)),
    )(x, g, b)


# ----------------------------------------------------------------------------
# Attention: one grid step per batch element; consumes the fused QKV slab
# [B, S, 3D] directly (no JAX-side head transposes). Heads are sliced from the
# lane axis inside the kernel (static unrolled loop), per-head results are
# concatenated back to a single lane-dense D-wide store.
# TODO(synk): convert to online-softmax (flash) with a KV grid axis for long S.
# ----------------------------------------------------------------------------
def _attn_kernel(qkv_ref, o_ref, *, num_heads, hidden, scale):
    qkv = qkv_ref[...].astype(jnp.float32)               # (S, 3D)
    D = hidden
    q = qkv[:, :D] * scale                               # fold 1/sqrt(dh) into q
    k = qkv[:, D:2 * D]
    v = qkv[:, 2 * D:]
    dh = D // num_heads
    outs = []
    for h in range(num_heads):
        sl = slice(h * dh, (h + 1) * dh)
        s = jax.lax.dot_general(q[:, sl], k[:, sl], (((1,), (1,)), ((), ())),
                                preferred_element_type=jnp.float32)
        s = s - jnp.max(s, axis=-1, keepdims=True)
        p = jnp.exp(s)
        p = p * pl.reciprocal(jnp.sum(p, axis=-1, keepdims=True), approx=True)
        outs.append(jnp.dot(p.astype(_MATMUL_DTYPE), v[:, sl],
                            preferred_element_type=jnp.float32))
    o_ref[...] = jnp.concatenate(outs, axis=-1).astype(o_ref.dtype)


def attention(qkv, num_heads):
    B, S, threeD = qkv.shape
    D = threeD // 3
    scale = 1.0 / math.sqrt(D // num_heads)
    return pl.pallas_call(
        functools.partial(_attn_kernel, num_heads=num_heads, hidden=D, scale=scale),
        out_shape=jax.ShapeDtypeStruct((B, S, D), qkv.dtype),
        grid=(B,),
        in_specs=[pl.BlockSpec((None, S, threeD), lambda b: (b, 0, 0))],
        out_specs=pl.BlockSpec((None, S, D), lambda b: (b, 0, 0)),
        compiler_params=pltpu.CompilerParams(
            dimension_semantics=("parallel",),
            vmem_limit_bytes=64 * 1024 * 1024),
    )(qkv)


# ----------------------------------------------------------------------------
# ViT encoder layer + full ViTModel forward (glue in JAX, compute in Pallas)
# ----------------------------------------------------------------------------
def vit_layer_forward(h2d, p, B, S, D, num_heads, eps):
    # pre-LN self-attention block (fused QKV projection, fused residual)
    ln1 = layernorm(h2d, p["ln1_g"], p["ln1_b"], eps)
    qkv = linear(ln1, p["qkv_w"], p["qkv_b"])                 # [B*S, 3D]
    ctx = attention(qkv.reshape(B, S, 3 * D), num_heads)      # [B, S, D]
    h2d = linear(ctx.reshape(B * S, D), p["ao_w"], p["ao_b"],
                 residual=h2d)                                # residual fused

    # pre-LN MLP block (GELU fused into fc1, residual fused into fc2)
    ln2 = layernorm(h2d, p["ln2_g"], p["ln2_b"], eps)
    inter = linear(ln2, p["fc1_w"], p["fc1_b"], act="gelu")
    h2d = linear(inter, p["fc2_w"], p["fc2_b"], residual=h2d)
    return h2d


def vit_model_forward(params, pixel_values, cfg):
    B = pixel_values.shape[0]
    P = cfg["num_patches"]
    D = cfg["hidden_size"]
    eps = cfg["layer_norm_eps"]
    nh = cfg["num_attention_heads"]
    patch_size = math.ceil(cfg["feature_size"] / P)
    pad = P * patch_size - cfg["feature_size"]

    # PatchEmbeddings: pad + view + Linear(patch_size -> hidden)
    x = jnp.pad(pixel_values, ((0, 0), (0, pad))).reshape(B, P, patch_size)
    patches = linear(x.reshape(B * P, patch_size),
                     params["proj_w"], params["proj_b"]).reshape(B, P, D)

    # ViTEmbeddings: CLS token + position embeddings (dropout p=0 -> identity)
    cls = jnp.broadcast_to(params["cls_token"], (B, 1, D))
    emb = jnp.concatenate([cls, patches], axis=1) + params["pos_embed"]
    S = P + 1

    h = emb.reshape(B * S, D)
    for p in params["layers"]:
        h = vit_layer_forward(h, p, B, S, D, nh, eps)

    seq = layernorm(h, params["norm_g"], params["norm_b"], eps).reshape(B, S, D)

    # ViTPooler: dense + tanh on the CLS token
    pooled = linear(seq[:, 0, :], params["pool_w"], params["pool_b"], act="tanh")
    return seq, pooled


# ----------------------------------------------------------------------------
# Deterministic parameter init (shapes implied by the PyTorch __init__)
# ----------------------------------------------------------------------------
def init_params(key, cfg):
    D = cfg["hidden_size"]
    I = cfg["intermediate_size"]
    P = cfg["num_patches"]
    L = cfg["num_hidden_layers"]
    patch_size = math.ceil(cfg["feature_size"] / P)

    def dense(k, din, dout):
        kw, kb = jax.random.split(k)
        w = jax.random.normal(kw, (din, dout), jnp.float32) * 0.02
        b = jax.random.normal(kb, (1, dout), jnp.float32) * 0.02
        return w, b

    keys = jax.random.split(key, 4 + L)
    params = {}
    params["proj_w"], params["proj_b"] = dense(keys[0], patch_size, D)
    params["cls_token"] = jax.random.normal(keys[1], (1, 1, D), jnp.float32) * 0.02
    params["pos_embed"] = jax.random.normal(keys[2], (1, P + 1, D), jnp.float32) * 0.02
    params["pool_w"], params["pool_b"] = dense(keys[3], D, D)
    params["norm_g"] = jnp.ones((1, D), jnp.float32)
    params["norm_b"] = jnp.zeros((1, D), jnp.float32)

    layers = []
    for li in range(L):
        lk = jax.random.split(keys[4 + li], 4)
        p = {
            "ln1_g": jnp.ones((1, D), jnp.float32),
            "ln1_b": jnp.zeros((1, D), jnp.float32),
            "ln2_g": jnp.ones((1, D), jnp.float32),
            "ln2_b": jnp.zeros((1, D), jnp.float32),
        }
        p["qkv_w"], p["qkv_b"] = dense(lk[0], D, 3 * D)   # fused Q|K|V
        p["ao_w"], p["ao_b"] = dense(lk[1], D, D)
        p["fc1_w"], p["fc1_b"] = dense(lk[2], D, I)
        p["fc2_w"], p["fc2_b"] = dense(lk[3], I, D)
        layers.append(p)
    params["layers"] = layers
    return params


# ----------------------------------------------------------------------------
# Pure-JAX reference (mirrors the PyTorch ViTModel forward) for a check
# ----------------------------------------------------------------------------
def reference_forward(params, pixel_values, cfg):
    D = cfg["hidden_size"]
    H = cfg["num_attention_heads"]
    eps = cfg["layer_norm_eps"]
    P = cfg["num_patches"]
    patch_size = math.ceil(cfg["feature_size"] / P)
    pad = P * patch_size - cfg["feature_size"]
    B = pixel_values.shape[0]
    dh = D // H

    def ln(z, g, b):
        m = jnp.mean(z, -1, keepdims=True)
        v = jnp.mean((z - m) ** 2, -1, keepdims=True)
        return (z - m) / jnp.sqrt(v + eps) * g + b

    x = jnp.pad(pixel_values, ((0, 0), (0, pad))).reshape(B, P, patch_size)
    h = x @ params["proj_w"] + params["proj_b"]
    cls = jnp.broadcast_to(params["cls_token"], (B, 1, D))
    h = jnp.concatenate([cls, h], axis=1) + params["pos_embed"]
    S = P + 1
    for p in params["layers"]:
        ln1 = ln(h, p["ln1_g"], p["ln1_b"])
        qkv = ln1 @ p["qkv_w"] + p["qkv_b"]
        q, k, v = jnp.split(qkv, 3, axis=-1)

        def heads(t):
            return t.reshape(B, S, H, dh).transpose(0, 2, 1, 3)

        q, k, v = heads(q), heads(k), heads(v)
        s = jnp.einsum("bhqd,bhkd->bhqk", q, k) / math.sqrt(dh)
        pr = jax.nn.softmax(s, axis=-1)
        ctx = jnp.einsum("bhqk,bhkd->bhqd", pr, v).transpose(0, 2, 1, 3).reshape(B, S, D)
        h = h + (ctx @ p["ao_w"] + p["ao_b"])
        ln2 = ln(h, p["ln2_g"], p["ln2_b"])
        inter = jax.nn.gelu(ln2 @ p["fc1_w"] + p["fc1_b"], approximate=False)
        h = h + (inter @ p["fc2_w"] + p["fc2_b"])
    seq = ln(h, params["norm_g"], params["norm_b"])
    pooled = jnp.tanh(seq[:, 0, :] @ params["pool_w"] + params["pool_b"])
    return seq, pooled


# ----------------------------------------------------------------------------
if __name__ == "__main__":
    cfg = dict(
        hidden_size=128,           # lane-dense hidden
        num_hidden_layers=2,
        num_attention_heads=4,     # head_dim = 32
        intermediate_size=256,
        feature_size=118,          # -> patch_size = ceil(118/15) = 8, pad = 2
        num_patches=15,            # seq = 16 with CLS (8-sublane aligned)
        layer_norm_eps=1e-12,
    )
    B = 2

    key = jax.random.PRNGKey(0)
    pkey, xkey = jax.random.split(key)
    params = init_params(pkey, cfg)
    pixel_values = jax.random.normal(xkey, (B, cfg["feature_size"]), jnp.float32)

    fwd = jax.jit(functools.partial(vit_model_forward, cfg=cfg))
    seq, pooled = fwd(params, pixel_values)
    seq, pooled = jax.block_until_ready((seq, pooled))

    S = cfg["num_patches"] + 1
    assert seq.shape == (B, S, cfg["hidden_size"]), seq.shape
    assert pooled.shape == (B, cfg["hidden_size"]), pooled.shape

    ref_seq, ref_pooled = reference_forward(params, pixel_values, cfg)
    err_seq = float(jnp.max(jnp.abs(seq - ref_seq)))
    err_pool = float(jnp.max(jnp.abs(pooled - ref_pooled)))
    if not (jnp.allclose(seq, ref_seq, atol=2e-2, rtol=2e-2)
            and jnp.allclose(pooled, ref_pooled, atol=2e-2, rtol=2e-2)):
        raise AssertionError(
            f"Pallas output mismatch vs reference: seq {err_seq}, pooled {err_pool}")

    print("KERNEL_OK")
</pallas_src>

<mosaic_0001>
module attributes {stable_mosaic.version = 11 : i64} {
  func.func @_linear_kernel(%arg0: i32, %arg1: i32, %arg2: i32, %arg3: memref<30x8xf32, #tpu.memory_space<vmem>>, %arg4: memref<8x128xf32, #tpu.memory_space<vmem>>, %arg5: memref<1x128xf32, #tpu.memory_space<vmem>>, %arg6: memref<30x128xf32, #tpu.memory_space<vmem>>, %arg7: memref<30x128xf32, #tpu.memory_space<vmem>>) attributes {dimension_semantics = [#tpu.dimension_semantics<parallel>, #tpu.dimension_semantics<parallel>, #tpu.dimension_semantics<arbitrary>], iteration_bounds = array<i64: 1, 1, 1>, scalar_prefetch = 0 : i64, scratch_operands = 1 : i64, tpu.core_type = #tpu.core_type<tc>, window_params = [{transform_indices = @transform_0, window_bounds = array<i64: 30, 8>}, {transform_indices = @transform_1, window_bounds = array<i64: 8, 128>}, {transform_indices = @transform_2, window_bounds = array<i64: 1, 128>}, {transform_indices = @transform_3, window_bounds = array<i64: 30, 128>}]} {
    %c0_i32 = arith.constant 0 : i32
    %0 = arith.cmpi eq, %arg2, %c0_i32 : i32
    %1 = arith.extui %0 : i1 to i32
    %c0_i32_0 = arith.constant 0 : i32
    %2 = arith.cmpi ne, %1, %c0_i32_0 : i32
    scf.if %2 {
      %cst_10 = arith.constant 0.000000e+00 : f32
      %12 = vector.broadcast %cst_10 : f32 to vector<30x128xf32>
      %c0_11 = arith.constant 0 : index
      %c0_12 = arith.constant 0 : index
      %13 = vector.load %arg7[%c0_11, %c0_12] : memref<30x128xf32, #tpu.memory_space<vmem>>, vector<30x128xf32>
      tpu.vector_store %arg7[%c0_11, %c0_12], %12 {strides = array<i32>} : memref<30x128xf32, #tpu.memory_space<vmem>>, vector<30x128xf32>,
    } else {
    }
    %c0 = arith.constant 0 : index
    %c0_1 = arith.constant 0 : index
    %3 = vector.load %arg3[%c0, %c0_1] : memref<30x8xf32, #tpu.memory_space<vmem>>, vector<30x8xf32>
    %c0_2 = arith.constant 0 : index
    %c0_3 = arith.constant 0 : index
    %4 = vector.load %arg4[%c0_2, %c0_3] : memref<8x128xf32, #tpu.memory_space<vmem>>, vector<8x128xf32>
    %c0_4 = arith.constant 0 : index
    %c0_5 = arith.constant 0 : index
    %5 = vector.load %arg7[%c0_4, %c0_5] : memref<30x128xf32, #tpu.memory_space<vmem>>, vector<30x128xf32>
    %cst = arith.constant dense<0.000000e+00> : vector<30x128xf32>
    %6 = tpu.matmul %3, %4, %cst {dimension_numbers = #tpu.dot_dimension_numbers<[1], [0], [0], [1], [0, 0, 1, 1], [], []>} : vector<30x8xf32>, vector<8x128xf32>, vector<30x128xf32> -> vector<30x128xf32>
    %7 = arith.addf %5, %6 : vector<30x128xf32>
    %c0_6 = arith.constant 0 : index
    %c0_7 = arith.constant 0 : index
    %8 = vector.load %arg7[%c0_6, %c0_7] : memref<30x128xf32, #tpu.memory_space<vmem>>, vector<30x128xf32>
    tpu.vector_store %arg7[%c0_6, %c0_7], %7 {strides = array<i32>} : memref<30x128xf32, #tpu.memory_space<vmem>>, vector<30x128xf32>,
    %c0_i32_8 = arith.constant 0 : i32
    %9 = arith.cmpi eq, %arg2, %c0_i32_8 : i32
    %10 = arith.extui %9 : i1 to i32
    %c0_i32_9 = arith.constant 0 : i32
    %11 = arith.cmpi ne, %10, %c0_i32_9 : i32
    scf.if %11 {
      %c0_10 = arith.constant 0 : index
      %c0_11 = arith.constant 0 : index
      %12 = vector.load %arg7[%c0_10, %c0_11] : memref<30x128xf32, #tpu.memory_space<vmem>>, vector<30x128xf32>
      %c0_12 = arith.constant 0 : index
      %c0_13 = arith.constant 0 : index
      %13 = vector.load %arg5[%c0_12, %c0_13] : memref<1x128xf32, #tpu.memory_space<vmem>>, vector<1x128xf32>
      %14 = vector.broadcast %13 : vector<1x128xf32> to vector<30x128xf32>
      %15 = arith.addf %12, %14 : vector<30x128xf32>
      %c0_14 = arith.constant 0 : index
      %c0_15 = arith.constant 0 : index
      %16 = vector.load %arg6[%c0_14, %c0_15] : memref<30x128xf32, #tpu.memory_space<vmem>>, vector<30x128xf32>
      tpu.vector_store %arg6[%c0_14, %c0_15], %15 {strides = array<i32>} : memref<30x128xf32, #tpu.memory_space<vmem>>, vector<30x128xf32>,
    } else {
    }
    return
  }
  func.func @transform_0(%arg0: i32, %arg1: i32, %arg2: i32) -> (i32, i32) {
    %c0_i32 = arith.constant 0 : i32
    return %arg0, %arg2 : i32, i32
  }
  func.func @transform_1(%arg0: i32, %arg1: i32, %arg2: i32) -> (i32, i32) {
    %c0_i32 = arith.constant 0 : i32
    return %arg2, %arg1 : i32, i32
  }
  func.func @transform_2(%arg0: i32, %arg1: i32, %arg2: i32) -> (i32, i32) {
    %c0_i32 = arith.constant 0 : i32
    %c0_i32_0 = arith.constant 0 : i32
    return %c0_i32, %arg1 : i32, i32
  }
  func.func @transform_3(%arg0: i32, %arg1: i32, %arg2: i32) -> (i32, i32) {
    %c0_i32 = arith.constant 0 : i32
    return %arg0, %arg1 : i32, i32
  }
}

module attributes {stable_mosaic.version = 11 : i64} {
  func.func @_layernorm_kernel(%arg0: i32, %arg1: memref<32x128xf32, #tpu.memory_space<vmem>>, %arg2: memref<1x128xf32, #tpu.memory_space<vmem>>, %arg3: memref<1x128xf32, #tpu.memory_space<vmem>>, %arg4: memref<32x128xf32, #tpu.memory_space<vmem>>) attributes {dimension_semantics = [#tpu.dimension_semantics<parallel>], iteration_bounds = array<i64: 1>, scalar_prefetch = 0 : i64, scratch_operands = 0 : i64, tpu.core_type = #tpu.core_type<tc>, window_params = [{transform_indices = @transform_0, window_bounds = array<i64: 32, 128>}, {pipeline_mode = #tpu.pipeline_mode<synchronous>, transform_indices = @transform_1, window_bounds = array<i64: 1, 128>}, {pipeline_mode = #tpu.pipeline_mode<synchronous>, transform_indices = @transform_2, window_bounds = array<i64: 1, 128>}, {transform_indices = @transform_3, window_bounds = array<i64: 32, 128>}]} {
    %c0 = arith.constant 0 : index
    %c0_0 = arith.constant 0 : index
    %0 = vector.load %arg1[%c0, %c0_0] : memref<32x128xf32, #tpu.memory_space<vmem>>, vector<32x128xf32>
    %cst = arith.constant dense<0.000000e+00> : vector<32xf32>
    %1 = vector.multi_reduction <add>, %0, %cst [1] : vector<32x128xf32> to vector<32xf32>
    %2 = vector.shape_cast %1 : vector<32xf32> to vector<32x1xf32>
    %cst_1 = arith.constant 1.280000e+02 : f32
    %3 = vector.broadcast %cst_1 : f32 to vector<32x1xf32>
    %4 = arith.divf %2, %3 : vector<32x1xf32>
    %5 = vector.broadcast %4 : vector<32x1xf32> to vector<32x128xf32>
    %6 = arith.subf %0, %5 : vector<32x128xf32>
    %7 = arith.mulf %6, %6 : vector<32x128xf32>
    %cst_2 = arith.constant dense<0.000000e+00> : vector<32xf32>
    %8 = vector.multi_reduction <add>, %7, %cst_2 [1] : vector<32x128xf32> to vector<32xf32>
    %9 = vector.shape_cast %8 : vector<32xf32> to vector<32x1xf32>
    %cst_3 = arith.constant 1.280000e+02 : f32
    %10 = vector.broadcast %cst_3 : f32 to vector<32x1xf32>
    %11 = arith.divf %9, %10 : vector<32x1xf32>
    %cst_4 = arith.constant 9.99999996E-13 : f32
    %12 = vector.broadcast %cst_4 : f32 to vector<32x1xf32>
    %13 = arith.addf %11, %12 : vector<32x1xf32>
    %14 = math.rsqrt %13 : vector<32x1xf32>
    %15 = vector.broadcast %14 : vector<32x1xf32> to vector<32x128xf32>
    %16 = arith.mulf %6, %15 : vector<32x128xf32>
    %c0_5 = arith.constant 0 : index
    %c0_6 = arith.constant 0 : index
    %17 = vector.load %arg2[%c0_5, %c0_6] : memref<1x128xf32, #tpu.memory_space<vmem>>, vector<1x128xf32>
    %18 = vector.broadcast %17 : vector<1x128xf32> to vector<32x128xf32>
    %19 = arith.mulf %16, %18 : vector<32x128xf32>
    %c0_7 = arith.constant 0 : index
    %c0_8 = arith.constant 0 : index
    %20 = vector.load %arg3[%c0_7, %c0_8] : memref<1x128xf32, #tpu.memory_space<vmem>>, vector<1x128xf32>
    %21 = vector.broadcast %20 : vector<1x128xf32> to vector<32x128xf32>
    %22 = arith.addf %19, %21 : vector<32x128xf32>
    %c0_9 = arith.constant 0 : index
    %c0_10 = arith.constant 0 : index
    %23 = vector.load %arg4[%c0_9, %c0_10] : memref<32x128xf32, #tpu.memory_space<vmem>>, vector<32x128xf32>
    tpu.vector_store %arg4[%c0_9, %c0_10], %22 {strides = array<i32>} : memref<32x128xf32, #tpu.memory_space<vmem>>, vector<32x128xf32>,
    return
  }
  func.func @transform_0(%arg0: i32) -> (i32, i32) {
    %c0_i32 = arith.constant 0 : i32
    %c0_i32_0 = arith.constant 0 : i32
    return %arg0, %c0_i32 : i32, i32
  }
  func.func @transform_1(%arg0: i32) -> (i32, i32) {
    %c0_i32 = arith.constant 0 : i32
    %c0_i32_0 = arith.constant 0 : i32
    %c0_i32_1 = arith.constant 0 : i32
    return %c0_i32, %c0_i32_0 : i32, i32
  }
  func.func @transform_2(%arg0: i32) -> (i32, i32) {
    %c0_i32 = arith.constant 0 : i32
    %c0_i32_0 = arith.constant 0 : i32
    %c0_i32_1 = arith.constant 0 : i32
    return %c0_i32, %c0_i32_0 : i32, i32
  }
  func.func @transform_3(%arg0: i32) -> (i32, i32) {
    %c0_i32 = arith.constant 0 : i32
    %c0_i32_0 = arith.constant 0 : i32
    return %arg0, %c0_i32 : i32, i32
  }
}

module attributes {stable_mosaic.version = 11 : i64} {
  func.func @_linear_kernel(%arg0: i32, %arg1: i32, %arg2: i32, %arg3: memref<32x128xf32, #tpu.memory_space<vmem>>, %arg4: memref<128x384xf32, #tpu.memory_space<vmem>>, %arg5: memref<1x384xf32, #tpu.memory_space<vmem>>, %arg6: memref<32x384xf32, #tpu.memory_space<vmem>>, %arg7: memref<32x384xf32, #tpu.memory_space<vmem>>) attributes {dimension_semantics = [#tpu.dimension_semantics<parallel>, #tpu.dimension_semantics<parallel>, #tpu.dimension_semantics<arbitrary>], iteration_bounds = array<i64: 1, 1, 1>, scalar_prefetch = 0 : i64, scratch_operands = 1 : i64, tpu.core_type = #tpu.core_type<tc>, window_params = [{transform_indices = @transform_0, window_bounds = array<i64: 32, 128>}, {transform_indices = @transform_1, window_bounds = array<i64: 128, 384>}, {transform_indices = @transform_2, window_bounds = array<i64: 1, 384>}, {transform_indices = @transform_3, window_bounds = array<i64: 32, 384>}]} {
    %c0_i32 = arith.constant 0 : i32
    %0 = arith.cmpi eq, %arg2, %c0_i32 : i32
    %1 = arith.extui %0 : i1 to i32
    %c0_i32_0 = arith.constant 0 : i32
    %2 = arith.cmpi ne, %1, %c0_i32_0 : i32
    scf.if %2 {
      %cst_10 = arith.constant 0.000000e+00 : f32
      %12 = vector.broadcast %cst_10 : f32 to vector<32x384xf32>
      %c0_11 = arith.constant 0 : index
      %c0_12 = arith.constant 0 : index
      %13 = vector.load %arg7[%c0_11, %c0_12] : memref<32x384xf32, #tpu.memory_space<vmem>>, vector<32x384xf32>
      tpu.vector_store %arg7[%c0_11, %c0_12], %12 {strides = array<i32>} : memref<32x384xf32, #tpu.memory_space<vmem>>, vector<32x384xf32>,
    } else {
    }
    %c0 = arith.constant 0 : index
    %c0_1 = arith.constant 0 : index
    %3 = vector.load %arg3[%c0, %c0_1] : memref<32x128xf32, #tpu.memory_space<vmem>>, vector<32x128xf32>
    %c0_2 = arith.constant 0 : index
    %c0_3 = arith.constant 0 : index
    %4 = vector.load %arg4[%c0_2, %c0_3] : memref<128x384xf32, #tpu.memory_space<vmem>>, vector<128x384xf32>
    %c0_4 = arith.constant 0 : index
    %c0_5 = arith.constant 0 : index
    %5 = vector.load %arg7[%c0_4, %c0_5] : memref<32x384xf32, #tpu.memory_space<vmem>>, vector<32x384xf32>
    %cst = arith.constant dense<0.000000e+00> : vector<32x384xf32>
    %6 = tpu.matmul %3, %4, %cst {dimension_numbers = #tpu.dot_dimension_numbers<[1], [0], [0], [1], [0, 0, 1, 1], [], []>} : vector<32x128xf32>, vector<128x384xf32>, vector<32x384xf32> -> vector<32x384xf32>
    %7 = arith.addf %5, %6 : vector<32x384xf32>
    %c0_6 = arith.constant 0 : index
    %c0_7 = arith.constant 0 : index
    %8 = vector.load %arg7[%c0_6, %c0_7] : memref<32x384xf32, #tpu.memory_space<vmem>>, vector<32x384xf32>
    tpu.vector_store %arg7[%c0_6, %c0_7], %7 {strides = array<i32>} : memref<32x384xf32, #tpu.memory_space<vmem>>, vector<32x384xf32>,
    %c0_i32_8 = arith.constant 0 : i32
    %9 = arith.cmpi eq, %arg2, %c0_i32_8 : i32
    %10 = arith.extui %9 : i1 to i32
    %c0_i32_9 = arith.constant 0 : i32
    %11 = arith.cmpi ne, %10, %c0_i32_9 : i32
    scf.if %11 {
      %c0_10 = arith.constant 0 : index
      %c0_11 = arith.constant 0 : index
      %12 = vector.load %arg7[%c0_10, %c0_11] : memref<32x384xf32, #tpu.memory_space<vmem>>, vector<32x384xf32>
      %c0_12 = arith.constant 0 : index
      %c0_13 = arith.constant 0 : index
      %13 = vector.load %arg5[%c0_12, %c0_13] : memref<1x384xf32, #tpu.memory_space<vmem>>, vector<1x384xf32>
      %14 = vector.broadcast %13 : vector<1x384xf32> to vector<32x384xf32>
      %15 = arith.addf %12, %14 : vector<32x384xf32>
      %c0_14 = arith.constant 0 : index
      %c0_15 = arith.constant 0 : index
      %16 = vector.load %arg6[%c0_14, %c0_15] : memref<32x384xf32, #tpu.memory_space<vmem>>, vector<32x384xf32>
      tpu.vector_store %arg6[%c0_14, %c0_15], %15 {strides = array<i32>} : memref<32x384xf32, #tpu.memory_space<vmem>>, vector<32x384xf32>,
    } else {
    }
    return
  }
  func.func @transform_0(%arg0: i32, %arg1: i32, %arg2: i32) -> (i32, i32) {
    %c0_i32 = arith.constant 0 : i32
    return %arg0, %arg2 : i32, i32
  }
  func.func @transform_1(%arg0: i32, %arg1: i32, %arg2: i32) -> (i32, i32) {
    %c0_i32 = arith.constant 0 : i32
    return %arg2, %arg1 : i32, i32
  }
  func.func @transform_2(%arg0: i32, %arg1: i32, %arg2: i32) -> (i32, i32) {
    %c0_i32 = arith.constant 0 : i32
    %c0_i32_0 = arith.constant 0 : i32
    return %c0_i32, %arg1 : i32, i32
  }
  func.func @transform_3(%arg0: i32, %arg1: i32, %arg2: i32) -> (i32, i32) {
    %c0_i32 = arith.constant 0 : i32
    return %arg0, %arg1 : i32, i32
  }
}

module attributes {stable_mosaic.version = 11 : i64} {
  func.func @_attn_kernel(%arg0: i32, %arg1: memref<1x16x384xf32, #tpu.memory_space<vmem>>, %arg2: memref<1x16x128xf32, #tpu.memory_space<vmem>>) attributes {dimension_semantics = [#tpu.dimension_semantics<parallel>], iteration_bounds = array<i64: 2>, scalar_prefetch = 0 : i64, scratch_operands = 0 : i64, tpu.core_type = #tpu.core_type<tc>, window_params = [{transform_indices = @transform_0, window_bounds = array<i64: 1, 16, 384>}, {transform_indices = @transform_1, window_bounds = array<i64: 1, 16, 128>}]} {
    %c0 = arith.constant 0 : index
    %c0_0 = arith.constant 0 : index
    %c0_1 = arith.constant 0 : index
    %0 = vector.load %arg1[%c0, %c0_0, %c0_1] : memref<1x16x384xf32, #tpu.memory_space<vmem>>, vector<1x16x384xf32>
    %1 = vector.shape_cast %0 : vector<1x16x384xf32> to vector<16x384xf32>
    %2 = vector.extract_strided_slice %1 {offsets = [0, 0], sizes = [16, 128], strides = [1, 1]} : vector<16x384xf32> to vector<16x128xf32>
    %cst = arith.constant 0.176776692 : f32
    %3 = vector.broadcast %cst : f32 to vector<16x128xf32>
    %4 = arith.mulf %2, %3 : vector<16x128xf32>
    %5 = vector.extract_strided_slice %1 {offsets = [0, 128], sizes = [16, 128], strides = [1, 1]} : vector<16x384xf32> to vector<16x128xf32>
    %6 = vector.extract_strided_slice %1 {offsets = [0, 256], sizes = [16, 128], strides = [1, 1]} : vector<16x384xf32> to vector<16x128xf32>
    %7 = vector.extract_strided_slice %4 {offsets = [0, 0], sizes = [16, 32], strides = [1, 1]} : vector<16x128xf32> to vector<16x32xf32>
    %8 = vector.extract_strided_slice %5 {offsets = [0, 0], sizes = [16, 32], strides = [1, 1]} : vector<16x128xf32> to vector<16x32xf32>
    %cst_2 = arith.constant dense<0.000000e+00> : vector<16x16xf32>
    %9 = tpu.matmul %7, %8, %cst_2 {dimension_numbers = #tpu.dot_dimension_numbers<[1], [1], [0], [0], [0, 0, 1, 0], [], []>} : vector<16x32xf32>, vector<16x32xf32>, vector<16x16xf32> -> vector<16x16xf32>
    %cst_3 = arith.constant dense<0xFF800000> : vector<16xf32>
    %10 = vector.multi_reduction <maximumf>, %9, %cst_3 [1] : vector<16x16xf32> to vector<16xf32>
    %11 = vector.shape_cast %10 : vector<16xf32> to vector<16x1xf32>
    %12 = vector.broadcast %11 : vector<16x1xf32> to vector<16x16xf32>
    %13 = arith.subf %9, %12 : vector<16x16xf32>
    %14 = math.exp %13 : vector<16x16xf32>
    %cst_4 = arith.constant dense<0.000000e+00> : vector<16xf32>
    %15 = vector.multi_reduction <add>, %14, %cst_4 [1] : vector<16x16xf32> to vector<16xf32>
    %16 = vector.shape_cast %15 : vector<16xf32> to vector<16x1xf32>
    %17 = tpu.reciprocal %16 {approx = true} : vector<16x1xf32> -> vector<16x1xf32>
    %18 = vector.broadcast %17 : vector<16x1xf32> to vector<16x16xf32>
    %19 = arith.mulf %14, %18 : vector<16x16xf32>
    %20 = vector.extract_strided_slice %6 {offsets = [0, 0], sizes = [16, 32], strides = [1, 1]} : vector<16x128xf32> to vector<16x32xf32>
    %cst_5 = arith.constant dense<0.000000e+00> : vector<16x32xf32>
    %21 = tpu.matmul %19, %20, %cst_5 {dimension_numbers = #tpu.dot_dimension_numbers<[1], [0], [0], [1], [0, 0, 1, 1], [], []>} : vector<16x16xf32>, vector<16x32xf32>, vector<16x32xf32> -> vector<16x32xf32>
    %22 = vector.extract_strided_slice %4 {offsets = [0, 32], sizes = [16, 32], strides = [1, 1]} : vector<16x128xf32> to vector<16x32xf32>
    %23 = vector.extract_strided_slice %5 {offsets = [0, 32], sizes = [16, 32], strides = [1, 1]} : vector<16x128xf32> to vector<16x32xf32>
    %cst_6 = arith.constant dense<0.000000e+00> : vector<16x16xf32>
    %24 = tpu.matmul %22, %23, %cst_6 {dimension_numbers = #tpu.dot_dimension_numbers<[1], [1], [0], [0], [0, 0, 1, 0], [], []>} : vector<16x32xf32>, vector<16x32xf32>, vector<16x16xf32> -> vector<16x16xf32>
    %cst_7 = arith.constant dense<0xFF800000> : vector<16xf32>
    %25 = vector.multi_reduction <maximumf>, %24, %cst_7 [1] : vector<16x16xf32> to vector<16xf32>
    %26 = vector.shape_cast %25 : vector<16xf32> to vector<16x1xf32>
    %27 = vector.broadcast %26 : vector<16x1xf32> to vector<16x16xf32>
    %28 = arith.subf %24, %27 : vector<16x16xf32>
    %29 = math.exp %28 : vector<16x16xf32>
    %cst_8 = arith.constant dense<0.000000e+00> : vector<16xf32>
    %30 = vector.multi_reduction <add>, %29, %cst_8 [1] : vector<16x16xf32> to vector<16xf32>
    %31 = vector.shape_cast %30 : vector<16xf32> to vector<16x1xf32>
    %32 = tpu.reciprocal %31 {approx = true} : vector<16x1xf32> -> vector<16x1xf32>
    %33 = vector.broadcast %32 : vector<16x1xf32> to vector<16x16xf32>
    %34 = arith.mulf %29, %33 : vector<16x16xf32>
    %35 = vector.extract_strided_slice %6 {offsets = [0, 32], sizes = [16, 32], strides = [1, 1]} : vector<16x128xf32> to vector<16x32xf32>
    %cst_9 = arith.constant dense<0.000000e+00> : vector<16x32xf32>
    %36 = tpu.matmul %34, %35, %cst_9 {dimension_numbers = #tpu.dot_dimension_numbers<[1], [0], [0], [1], [0, 0, 1, 1], [], []>} : vector<16x16xf32>, vector<16x32xf32>, vector<16x32xf32> -> vector<16x32xf32>
    %37 = vector.extract_strided_slice %4 {offsets = [0, 64], sizes = [16, 32], strides = [1, 1]} : vector<16x128xf32> to vector<16x32xf32>
    %38 = vector.extract_strided_slice %5 {offsets = [0, 64], sizes = [16, 32], strides = [1, 1]} : vector<16x128xf32> to vector<16x32xf32>
    %cst_10 = arith.constant dense<0.000000e+00> : vector<16x16xf32>
    %39 = tpu.matmul %37, %38, %cst_10 {dimension_numbers = #tpu.dot_dimension_numbers<[1], [1], [0], [0], [0, 0, 1, 0], [], []>} : vector<16x32xf32>, vector<16x32xf32>, vector<16x16xf32> -> vector<16x16xf32>
    %cst_11 = arith.constant dense<0xFF800000> : vector<16xf32>
    %40 = vector.multi_reduction <maximumf>, %39, %cst_11 [1] : vector<16x16xf32> to vector<16xf32>
    %41 = vector.shape_cast %40 : vector<16xf32> to vector<16x1xf32>
    %42 = vector.broadcast %41 : vector<16x1xf32> to vector<16x16xf32>
    %43 = arith.subf %39, %42 : vector<16x16xf32>
    %44 = math.exp %43 : vector<16x16xf32>
    %cst_12 = arith.constant dense<0.000000e+00> : vector<16xf32>
    %45 = vector.multi_reduction <add>, %44, %cst_12 [1] : vector<16x16xf32> to vector<16xf32>
    %46 = vector.shape_cast %45 : vector<16xf32> to vector<16x1xf32>
    %47 = tpu.reciprocal %46 {approx = true} : vector<16x1xf32> -> vector<16x1xf32>
    %48 = vector.broadcast %47 : vector<16x1xf32> to vector<16x16xf32>
    %49 = arith.mulf %44, %48 : vector<16x16xf32>
    %50 = vector.extract_strided_slice %6 {offsets = [0, 64], sizes = [16, 32], strides = [1, 1]} : vector<16x128xf32> to vector<16x32xf32>
    %cst_13 = arith.constant dense<0.000000e+00> : vector<16x32xf32>
    %51 = tpu.matmul %49, %50, %cst_13 {dimension_numbers = #tpu.dot_dimension_numbers<[1], [0], [0], [1], [0, 0, 1, 1], [], []>} : vector<16x16xf32>, vector<16x32xf32>, vector<16x32xf32> -> vector<16x32xf32>
    %52 = vector.extract_strided_slice %4 {offsets = [0, 96], sizes = [16, 32], strides = [1, 1]} : vector<16x128xf32> to vector<16x32xf32>
    %53 = vector.extract_strided_slice %5 {offsets = [0, 96], sizes = [16, 32], strides = [1, 1]} : vector<16x128xf32> to vector<16x32xf32>
    %cst_14 = arith.constant dense<0.000000e+00> : vector<16x16xf32>
    %54 = tpu.matmul %52, %53, %cst_14 {dimension_numbers = #tpu.dot_dimension_numbers<[1], [1], [0], [0], [0, 0, 1, 0], [], []>} : vector<16x32xf32>, vector<16x32xf32>, vector<16x16xf32> -> vector<16x16xf32>
    %cst_15 = arith.constant dense<0xFF800000> : vector<16xf32>
    %55 = vector.multi_reduction <maximumf>, %54, %cst_15 [1] : vector<16x16xf32> to vector<16xf32>
    %56 = vector.shape_cast %55 : vector<16xf32> to vector<16x1xf32>
    %57 = vector.broadcast %56 : vector<16x1xf32> to vector<16x16xf32>
    %58 = arith.subf %54, %57 : vector<16x16xf32>
    %59 = math.exp %58 : vector<16x16xf32>
    %cst_16 = arith.constant dense<0.000000e+00> : vector<16xf32>
    %60 = vector.multi_reduction <add>, %59, %cst_16 [1] : vector<16x16xf32> to vector<16xf32>
    %61 = vector.shape_cast %60 : vector<16xf32> to vector<16x1xf32>
    %62 = tpu.reciprocal %61 {approx = true} : vector<16x1xf32> -> vector<16x1xf32>
    %63 = vector.broadcast %62 : vector<16x1xf32> to vector<16x16xf32>
    %64 = arith.mulf %59, %63 : vector<16x16xf32>
    %65 = vector.extract_strided_slice %6 {offsets = [0, 96], sizes = [16, 32], strides = [1, 1]} : vector<16x128xf32> to vector<16x32xf32>
    %cst_17 = arith.constant dense<0.000000e+00> : vector<16x32xf32>
    %66 = tpu.matmul %64, %65, %cst_17 {dimension_numbers = #tpu.dot_dimension_numbers<[1], [0], [0], [1], [0, 0, 1, 1], [], []>} : vector<16x16xf32>, vector<16x32xf32>, vector<16x32xf32> -> vector<16x32xf32>
    %67 = tpu.concatenate %21, %36, %51, %66 in 1 : vector<16x32xf32>, vector<16x32xf32>, vector<16x32xf32>, vector<16x32xf32> -> vector<16x128xf32>
    %c0_18 = arith.constant 0 : index
    %c0_19 = arith.constant 0 : index
    %c0_20 = arith.constant 0 : index
    %68 = vector.load %arg2[%c0_18, %c0_19, %c0_20] : memref<1x16x128xf32, #tpu.memory_space<vmem>>, vector<1x16x128xf32>
    %69 = vector.shape_cast %68 : vector<1x16x128xf32> to vector<16x128xf32>
    %70 = vector.shape_cast %67 : vector<16x128xf32> to vector<1x16x128xf32>
    tpu.vector_store %arg2[%c0_18, %c0_19, %c0_20], %70 {strides = array<i32>} : memref<1x16x128xf32, #tpu.memory_space<vmem>>, vector<1x16x128xf32>,
    return
  }
  func.func @transform_0(%arg0: i32) -> (i32, i32, i32) {
    %c0_i32 = arith.constant 0 : i32
    %c0_i32_0 = arith.constant 0 : i32
    %c0_i32_1 = arith.constant 0 : i32
    return %arg0, %c0_i32, %c0_i32_0 : i32, i32, i32
  }
  func.func @transform_1(%arg0: i32) -> (i32, i32, i32) {
    %c0_i32 = arith.constant 0 : i32
    %c0_i32_0 = arith.constant 0 : i32
    %c0_i32_1 = arith.constant 0 : i32
    return %arg0, %c0_i32, %c0_i32_0 : i32, i32, i32
  }
}

module attributes {stable_mosaic.version = 11 : i64} {
  func.func @_linear_kernel(%arg0: i32, %arg1: i32, %arg2: i32, %arg3: memref<32x128xf32, #tpu.memory_space<vmem>>, %arg4: memref<128x128xf32, #tpu.memory_space<vmem>>, %arg5: memref<1x128xf32, #tpu.memory_space<vmem>>, %arg6: memref<32x128xf32, #tpu.memory_space<vmem>>, %arg7: memref<32x128xf32, #tpu.memory_space<vmem>>, %arg8: memref<32x128xf32, #tpu.memory_space<vmem>>) attributes {dimension_semantics = [#tpu.dimension_semantics<parallel>, #tpu.dimension_semantics<parallel>, #tpu.dimension_semantics<arbitrary>], iteration_bounds = array<i64: 1, 1, 1>, scalar_prefetch = 0 : i64, scratch_operands = 1 : i64, tpu.core_type = #tpu.core_type<tc>, window_params = [{transform_indices = @transform_0, window_bounds = array<i64: 32, 128>}, {transform_indices = @transform_1, window_bounds = array<i64: 128, 128>}, {transform_indices = @transform_2, window_bounds = array<i64: 1, 128>}, {transform_indices = @transform_3, window_bounds = array<i64: 32, 128>}, {transform_indices = @transform_4, window_bounds = array<i64: 32, 128>}]} {
    %c0_i32 = arith.constant 0 : i32
    %0 = arith.cmpi eq, %arg2, %c0_i32 : i32
    %1 = arith.extui %0 : i1 to i32
    %c0_i32_0 = arith.constant 0 : i32
    %2 = arith.cmpi ne, %1, %c0_i32_0 : i32
    scf.if %2 {
      %cst_10 = arith.constant 0.000000e+00 : f32
      %12 = vector.broadcast %cst_10 : f32 to vector<32x128xf32>
      %c0_11 = arith.constant 0 : index
      %c0_12 = arith.constant 0 : index
      %13 = vector.load %arg8[%c0_11, %c0_12] : memref<32x128xf32, #tpu.memory_space<vmem>>, vector<32x128xf32>
      tpu.vector_store %arg8[%c0_11, %c0_12], %12 {strides = array<i32>} : memref<32x128xf32, #tpu.memory_space<vmem>>, vector<32x128xf32>,
    } else {
    }
    %c0 = arith.constant 0 : index
    %c0_1 = arith.constant 0 : index
    %3 = vector.load %arg3[%c0, %c0_1] : memref<32x128xf32, #tpu.memory_space<vmem>>, vector<32x128xf32>
    %c0_2 = arith.constant 0 : index
    %c0_3 = arith.constant 0 : index
    %4 = vector.load %arg4[%c0_2, %c0_3] : memref<128x128xf32, #tpu.memory_space<vmem>>, vector<128x128xf32>
    %c0_4 = arith.constant 0 : index
    %c0_5 = arith.constant 0 : index
    %5 = vector.load %arg8[%c0_4, %c0_5] : memref<32x128xf32, #tpu.memory_space<vmem>>, vector<32x128xf32>
    %cst = arith.constant dense<0.000000e+00> : vector<32x128xf32>
    %6 = tpu.matmul %3, %4, %cst {dimension_numbers = #tpu.dot_dimension_numbers<[1], [0], [0], [1], [0, 0, 1, 1], [], []>} : vector<32x128xf32>, vector<128x128xf32>, vector<32x128xf32> -> vector<32x128xf32>
    %7 = arith.addf %5, %6 : vector<32x128xf32>
    %c0_6 = arith.constant 0 : index
    %c0_7 = arith.constant 0 : index
    %8 = vector.load %arg8[%c0_6, %c0_7] : memref<32x128xf32, #tpu.memory_space<vmem>>, vector<32x128xf32>
    tpu.vector_store %arg8[%c0_6, %c0_7], %7 {strides = array<i32>} : memref<32x128xf32, #tpu.memory_space<vmem>>, vector<32x128xf32>,
    %c0_i32_8 = arith.constant 0 : i32
    %9 = arith.cmpi eq, %arg2, %c0_i32_8 : i32
    %10 = arith.extui %9 : i1 to i32
    %c0_i32_9 = arith.constant 0 : i32
    %11 = arith.cmpi ne, %10, %c0_i32_9 : i32
    scf.if %11 {
      %c0_10 = arith.constant 0 : index
      %c0_11 = arith.constant 0 : index
      %12 = vector.load %arg8[%c0_10, %c0_11] : memref<32x128xf32, #tpu.memory_space<vmem>>, vector<32x128xf32>
      %c0_12 = arith.constant 0 : index
      %c0_13 = arith.constant 0 : index
      %13 = vector.load %arg5[%c0_12, %c0_13] : memref<1x128xf32, #tpu.memory_space<vmem>>, vector<1x128xf32>
      %14 = vector.broadcast %13 : vector<1x128xf32> to vector<32x128xf32>
      %15 = arith.addf %12, %14 : vector<32x128xf32>
      %c0_14 = arith.constant 0 : index
      %c0_15 = arith.constant 0 : index
      %16 = vector.load %arg6[%c0_14, %c0_15] : memref<32x128xf32, #tpu.memory_space<vmem>>, vector<32x128xf32>
      %17 = arith.addf %15, %16 : vector<32x128xf32>
      %c0_16 = arith.constant 0 : index
      %c0_17 = arith.constant 0 : index
      %18 = vector.load %arg7[%c0_16, %c0_17] : memref<32x128xf32, #tpu.memory_space<vmem>>, vector<32x128xf32>
      tpu.vector_store %arg7[%c0_16, %c0_17], %17 {strides = array<i32>} : memref<32x128xf32, #tpu.memory_space<vmem>>, vector<32x128xf32>,
    } else {
    }
    return
  }
  func.func @transform_0(%arg0: i32, %arg1: i32, %arg2: i32) -> (i32, i32) {
    %c0_i32 = arith.constant 0 : i32
    return %arg0, %arg2 : i32, i32
  }
  func.func @transform_1(%arg0: i32, %arg1: i32, %arg2: i32) -> (i32, i32) {
    %c0_i32 = arith.constant 0 : i32
    return %arg2, %arg1 : i32, i32
  }
  func.func @transform_2(%arg0: i32, %arg1: i32, %arg2: i32) -> (i32, i32) {
    %c0_i32 = arith.constant 0 : i32
    %c0_i32_0 = arith.constant 0 : i32
    return %c0_i32, %arg1 : i32, i32
  }
  func.func @transform_3(%arg0: i32, %arg1: i32, %arg2: i32) -> (i32, i32) {
    %c0_i32 = arith.constant 0 : i32
    return %arg0, %arg1 : i32, i32
  }
  func.func @transform_4(%arg0: i32, %arg1: i32, %arg2: i32) -> (i32, i32) {
    %c0_i32 = arith.constant 0 : i32
    return %arg0, %arg1 : i32, i32
  }
}

module attributes {stable_mosaic.version = 11 : i64} {
  func.func @_layernorm_kernel(%arg0: i32, %arg1: memref<32x128xf32, #tpu.memory_space<vmem>>, %arg2: memref<1x128xf32, #tpu.memory_space<vmem>>, %arg3: memref<1x128xf32, #tpu.memory_space<vmem>>, %arg4: memref<32x128xf32, #tpu.memory_space<vmem>>) attributes {dimension_semantics = [#tpu.dimension_semantics<parallel>], iteration_bounds = array<i64: 1>, scalar_prefetch = 0 : i64, scratch_operands = 0 : i64, tpu.core_type = #tpu.core_type<tc>, window_params = [{transform_indices = @transform_0, window_bounds = array<i64: 32, 128>}, {pipeline_mode = #tpu.pipeline_mode<synchronous>, transform_indices = @transform_1, window_bounds = array<i64: 1, 128>}, {pipeline_mode = #tpu.pipeline_mode<synchronous>, transform_indices = @transform_2, window_bounds = array<i64: 1, 128>}, {transform_indices = @transform_3, window_bounds = array<i64: 32, 128>}]} {
    %c0 = arith.constant 0 : index
    %c0_0 = arith.constant 0 : index
    %0 = vector.load %arg1[%c0, %c0_0] : memref<32x128xf32, #tpu.memory_space<vmem>>, vector<32x128xf32>
    %cst = arith.constant dense<0.000000e+00> : vector<32xf32>
    %1 = vector.multi_reduction <add>, %0, %cst [1] : vector<32x128xf32> to vector<32xf32>
    %2 = vector.shape_cast %1 : vector<32xf32> to vector<32x1xf32>
    %cst_1 = arith.constant 1.280000e+02 : f32
    %3 = vector.broadcast %cst_1 : f32 to vector<32x1xf32>
    %4 = arith.divf %2, %3 : vector<32x1xf32>
    %5 = vector.broadcast %4 : vector<32x1xf32> to vector<32x128xf32>
    %6 = arith.subf %0, %5 : vector<32x128xf32>
    %7 = arith.mulf %6, %6 : vector<32x128xf32>
    %cst_2 = arith.constant dense<0.000000e+00> : vector<32xf32>
    %8 = vector.multi_reduction <add>, %7, %cst_2 [1] : vector<32x128xf32> to vector<32xf32>
    %9 = vector.shape_cast %8 : vector<32xf32> to vector<32x1xf32>
    %cst_3 = arith.constant 1.280000e+02 : f32
    %10 = vector.broadcast %cst_3 : f32 to vector<32x1xf32>
    %11 = arith.divf %9, %10 : vector<32x1xf32>
    %cst_4 = arith.constant 9.99999996E-13 : f32
    %12 = vector.broadcast %cst_4 : f32 to vector<32x1xf32>
    %13 = arith.addf %11, %12 : vector<32x1xf32>
    %14 = math.rsqrt %13 : vector<32x1xf32>
    %15 = vector.broadcast %14 : vector<32x1xf32> to vector<32x128xf32>
    %16 = arith.mulf %6, %15 : vector<32x128xf32>
    %c0_5 = arith.constant 0 : index
    %c0_6 = arith.constant 0 : index
    %17 = vector.load %arg2[%c0_5, %c0_6] : memref<1x128xf32, #tpu.memory_space<vmem>>, vector<1x128xf32>
    %18 = vector.broadcast %17 : vector<1x128xf32> to vector<32x128xf32>
    %19 = arith.mulf %16, %18 : vector<32x128xf32>
    %c0_7 = arith.constant 0 : index
    %c0_8 = arith.constant 0 : index
    %20 = vector.load %arg3[%c0_7, %c0_8] : memref<1x128xf32, #tpu.memory_space<vmem>>, vector<1x128xf32>
    %21 = vector.broadcast %20 : vector<1x128xf32> to vector<32x128xf32>
    %22 = arith.addf %19, %21 : vector<32x128xf32>
    %c0_9 = arith.constant 0 : index
    %c0_10 = arith.constant 0 : index
    %23 = vector.load %arg4[%c0_9, %c0_10] : memref<32x128xf32, #tpu.memory_space<vmem>>, vector<32x128xf32>
    tpu.vector_store %arg4[%c0_9, %c0_10], %22 {strides = array<i32>} : memref<32x128xf32, #tpu.memory_space<vmem>>, vector<32x128xf32>,
    return
  }
  func.func @transform_0(%arg0: i32) -> (i32, i32) {
    %c0_i32 = arith.constant 0 : i32
    %c0_i32_0 = arith.constant 0 : i32
    return %arg0, %c0_i32 : i32, i32
  }
  func.func @transform_1(%arg0: i32) -> (i32, i32) {
    %c0_i32 = arith.constant 0 : i32
    %c0_i32_0 = arith.constant 0 : i32
    %c0_i32_1 = arith.constant 0 : i32
    return %c0_i32, %c0_i32_0 : i32, i32
  }
  func.func @transform_2(%arg0: i32) -> (i32, i32) {
    %c0_i32 = arith.constant 0 : i32
    %c0_i32_0 = arith.constant 0 : i32
    %c0_i32_1 = arith.constant 0 : i32
    return %c0_i32, %c0_i32_0 : i32, i32
  }
  func.func @transform_3(%arg0: i32) -> (i32, i32) {
    %c0_i32 = arith.constant 0 : i32
    %c0_i32_0 = arith.constant 0 : i32
    return %arg0, %c0_i32 : i32, i32
  }
}

module attributes {stable_mosaic.version = 11 : i64} {
  func.func @_linear_kernel(%arg0: i32, %arg1: i32, %arg2: i32, %arg3: memref<32x128xf32, #tpu.memory_space<vmem>>, %arg4: memref<128x256xf32, #tpu.memory_space<vmem>>, %arg5: memref<1x256xf32, #tpu.memory_space<vmem>>, %arg6: memref<32x256xf32, #tpu.memory_space<vmem>>, %arg7: memref<32x256xf32, #tpu.memory_space<vmem>>) attributes {dimension_semantics = [#tpu.dimension_semantics<parallel>, #tpu.dimension_semantics<parallel>, #tpu.dimension_semantics<arbitrary>], iteration_bounds = array<i64: 1, 1, 1>, scalar_prefetch = 0 : i64, scratch_operands = 1 : i64, tpu.core_type = #tpu.core_type<tc>, window_params = [{transform_indices = @transform_0, window_bounds = array<i64: 32, 128>}, {transform_indices = @transform_1, window_bounds = array<i64: 128, 256>}, {transform_indices = @transform_2, window_bounds = array<i64: 1, 256>}, {transform_indices = @transform_3, window_bounds = array<i64: 32, 256>}]} {
    %c0_i32 = arith.constant 0 : i32
    %0 = arith.cmpi eq, %arg2, %c0_i32 : i32
    %1 = arith.extui %0 : i1 to i32
    %c0_i32_0 = arith.constant 0 : i32
    %2 = arith.cmpi ne, %1, %c0_i32_0 : i32
    scf.if %2 {
      %cst_10 = arith.constant 0.000000e+00 : f32
      %12 = vector.broadcast %cst_10 : f32 to vector<32x256xf32>
      %c0_11 = arith.constant 0 : index
      %c0_12 = arith.constant 0 : index
      %13 = vector.load %arg7[%c0_11, %c0_12] : memref<32x256xf32, #tpu.memory_space<vmem>>, vector<32x256xf32>
      tpu.vector_store %arg7[%c0_11, %c0_12], %12 {strides = array<i32>} : memref<32x256xf32, #tpu.memory_space<vmem>>, vector<32x256xf32>,
    } else {
    }
    %c0 = arith.constant 0 : index
    %c0_1 = arith.constant 0 : index
    %3 = vector.load %arg3[%c0, %c0_1] : memref<32x128xf32, #tpu.memory_space<vmem>>, vector<32x128xf32>
    %c0_2 = arith.constant 0 : index
    %c0_3 = arith.constant 0 : index
    %4 = vector.load %arg4[%c0_2, %c0_3] : memref<128x256xf32, #tpu.memory_space<vmem>>, vector<128x256xf32>
    %c0_4 = arith.constant 0 : index
    %c0_5 = arith.constant 0 : index
    %5 = vector.load %arg7[%c0_4, %c0_5] : memref<32x256xf32, #tpu.memory_space<vmem>>, vector<32x256xf32>
    %cst = arith.constant dense<0.000000e+00> : vector<32x256xf32>
    %6 = tpu.matmul %3, %4, %cst {dimension_numbers = #tpu.dot_dimension_numbers<[1], [0], [0], [1], [0, 0, 1, 1], [], []>} : vector<32x128xf32>, vector<128x256xf32>, vector<32x256xf32> -> vector<32x256xf32>
    %7 = arith.addf %5, %6 : vector<32x256xf32>
    %c0_6 = arith.constant 0 : index
    %c0_7 = arith.constant 0 : index
    %8 = vector.load %arg7[%c0_6, %c0_7] : memref<32x256xf32, #tpu.memory_space<vmem>>, vector<32x256xf32>
    tpu.vector_store %arg7[%c0_6, %c0_7], %7 {strides = array<i32>} : memref<32x256xf32, #tpu.memory_space<vmem>>, vector<32x256xf32>,
    %c0_i32_8 = arith.constant 0 : i32
    %9 = arith.cmpi eq, %arg2, %c0_i32_8 : i32
    %10 = arith.extui %9 : i1 to i32
    %c0_i32_9 = arith.constant 0 : i32
    %11 = arith.cmpi ne, %10, %c0_i32_9 : i32
    scf.if %11 {
      %c0_10 = arith.constant 0 : index
      %c0_11 = arith.constant 0 : index
      %12 = vector.load %arg7[%c0_10, %c0_11] : memref<32x256xf32, #tpu.memory_space<vmem>>, vector<32x256xf32>
      %c0_12 = arith.constant 0 : index
      %c0_13 = arith.constant 0 : index
      %13 = vector.load %arg5[%c0_12, %c0_13] : memref<1x256xf32, #tpu.memory_space<vmem>>, vector<1x256xf32>
      %14 = vector.broadcast %13 : vector<1x256xf32> to vector<32x256xf32>
      %15 = arith.addf %12, %14 : vector<32x256xf32>
      %cst_14 = arith.constant 5.000000e-01 : f32
      %16 = vector.broadcast %cst_14 : f32 to vector<32x256xf32>
      %17 = arith.mulf %16, %15 : vector<32x256xf32>
      %cst_15 = arith.constant 0.707106769 : f32
      %18 = vector.broadcast %cst_15 : f32 to vector<32x256xf32>
      %19 = arith.mulf %15, %18 : vector<32x256xf32>
      %cst_16 = arith.constant 0.000000e+00 : f32
      %20 = vector.broadcast %cst_16 : f32 to vector<32x256xf32>
      %21 = arith.cmpf oge, %19, %20 : vector<32x256xf32>
      %cst_17 = arith.constant 1.000000e+00 : f32
      %cst_18 = arith.constant -1.000000e+00 : f32
      %22 = vector.broadcast %cst_17 : f32 to vector<32x256xf32>
      %23 = vector.broadcast %cst_18 : f32 to vector<32x256xf32>
      %24 = arith.select %21, %22, %23 : vector<32x256xi1>, vector<32x256xf32>
      %25 = math.absf %19 : vector<32x256xf32>
      %cst_19 = arith.constant 0.327591091 : f32
      %26 = vector.broadcast %cst_19 : f32 to vector<32x256xf32>
      %27 = arith.mulf %26, %25 : vector<32x256xf32>
      %cst_20 = arith.constant 1.000000e+00 : f32
      %28 = vector.broadcast %cst_20 : f32 to vector<32x256xf32>
      %29 = arith.addf %28, %27 : vector<32x256xf32>
      %cst_21 = arith.constant 1.000000e+00 : f32
      %30 = vector.broadcast %cst_21 : f32 to vector<32x256xf32>
      %31 = arith.divf %30, %29 : vector<32x256xf32>
      %cst_22 = arith.constant 1.06140542 : f32
      %32 = vector.broadcast %cst_22 : f32 to vector<32x256xf32>
      %33 = arith.mulf %31, %32 : vector<32x256xf32>
      %cst_23 = arith.constant -1.45315206 : f32
      %34 = vector.broadcast %cst_23 : f32 to vector<32x256xf32>
      %35 = arith.addf %34, %33 : vector<32x256xf32>
      %36 = arith.mulf %31, %35 : vector<32x256xf32>
      %cst_24 = arith.constant 1.42141378 : f32
      %37 = vector.broadcast %cst_24 : f32 to vector<32x256xf32>
      %38 = arith.addf %37, %36 : vector<32x256xf32>
      %39 = arith.mulf %31, %38 : vector<32x256xf32>
      %cst_25 = arith.constant -0.284496725 : f32
      %40 = vector.broadcast %cst_25 : f32 to vector<32x256xf32>
      %41 = arith.addf %40, %39 : vector<32x256xf32>
      %42 = arith.mulf %31, %41 : vector<32x256xf32>
      %cst_26 = arith.constant 0.254829586 : f32
      %43 = vector.broadcast %cst_26 : f32 to vector<32x256xf32>
      %44 = arith.addf %43, %42 : vector<32x256xf32>
      %45 = arith.mulf %31, %44 : vector<32x256xf32>
      %cst_27 = arith.constant 0.000000e+00 : f32
      %46 = vector.broadcast %cst_27 : f32 to vector<32x256xf32>
      %47 = arith.subf %46, %25 : vector<32x256xf32>
      %48 = arith.mulf %47, %25 : vector<32x256xf32>
      %49 = math.exp %48 : vector<32x256xf32>
      %50 = arith.mulf %45, %49 : vector<32x256xf32>
      %cst_28 = arith.constant 1.000000e+00 : f32
      %51 = vector.broadcast %cst_28 : f32 to vector<32x256xf32>
      %52 = arith.subf %51, %50 : vector<32x256xf32>
      %53 = arith.mulf %24, %52 : vector<32x256xf32>
      %cst_29 = arith.constant 1.000000e+00 : f32
      %54 = vector.broadcast %cst_29 : f32 to vector<32x256xf32>
      %55 = arith.addf %54, %53 : vector<32x256xf32>
      %56 = arith.mulf %17, %55 : vector<32x256xf32>
      %c0_30 = arith.constant 0 : index
      %c0_31 = arith.constant 0 : index
      %57 = vector.load %arg6[%c0_30, %c0_31] : memref<32x256xf32, #tpu.memory_space<vmem>>, vector<32x256xf32>
      tpu.vector_store %arg6[%c0_30, %c0_31], %56 {strides = array<i32>} : memref<32x256xf32, #tpu.memory_space<vmem>>, vector<32x256xf32>,
    } else {
    }
    return
  }
  func.func @transform_0(%arg0: i32, %arg1: i32, %arg2: i32) -> (i32, i32) {
    %c0_i32 = arith.constant 0 : i32
    return %arg0, %arg2 : i32, i32
  }
  func.func @transform_1(%arg0: i32, %arg1: i32, %arg2: i32) -> (i32, i32) {
    %c0_i32 = arith.constant 0 : i32
    return %arg2, %arg1 : i32, i32
  }
  func.func @transform_2(%arg0: i32, %arg1: i32, %arg2: i32) -> (i32, i32) {
    %c0_i32 = arith.constant 0 : i32
    %c0_i32_0 = arith.constant 0 : i32
    return %c0_i32, %arg1 : i32, i32
  }
  func.func @transform_3(%arg0: i32, %arg1: i32, %arg2: i32) -> (i32, i32) {
    %c0_i32 = arith.constant 0 : i32
    return %arg0, %arg1 : i32, i32
  }
}

module attributes {stable_mosaic.version = 11 : i64} {
  func.func @_linear_kernel(%arg0: i32, %arg1: i32, %arg2: i32, %arg3: memref<32x256xf32, #tpu.memory_space<vmem>>, %arg4: memref<256x128xf32, #tpu.memory_space<vmem>>, %arg5: memref<1x128xf32, #tpu.memory_space<vmem>>, %arg6: memref<32x128xf32, #tpu.memory_space<vmem>>, %arg7: memref<32x128xf32, #tpu.memory_space<vmem>>, %arg8: memref<32x128xf32, #tpu.memory_space<vmem>>) attributes {dimension_semantics = [#tpu.dimension_semantics<parallel>, #tpu.dimension_semantics<parallel>, #tpu.dimension_semantics<arbitrary>], iteration_bounds = array<i64: 1, 1, 1>, scalar_prefetch = 0 : i64, scratch_operands = 1 : i64, tpu.core_type = #tpu.core_type<tc>, window_params = [{transform_indices = @transform_0, window_bounds = array<i64: 32, 256>}, {transform_indices = @transform_1, window_bounds = array<i64: 256, 128>}, {transform_indices = @transform_2, window_bounds = array<i64: 1, 128>}, {transform_indices = @transform_3, window_bounds = array<i64: 32, 128>}, {transform_indices = @transform_4, window_bounds = array<i64: 32, 128>}]} {
    %c0_i32 = arith.constant 0 : i32
    %0 = arith.cmpi eq, %arg2, %c0_i32 : i32
    %1 = arith.extui %0 : i1 to i32
    %c0_i32_0 = arith.constant 0 : i32
    %2 = arith.cmpi ne, %1, %c0_i32_0 : i32
    scf.if %2 {
      %cst_10 = arith.constant 0.000000e+00 : f32
      %12 = vector.broadcast %cst_10 : f32 to vector<32x128xf32>
      %c0_11 = arith.constant 0 : index
      %c0_12 = arith.constant 0 : index
      %13 = vector.load %arg8[%c0_11, %c0_12] : memref<32x128xf32, #tpu.memory_space<vmem>>, vector<32x128xf32>
      tpu.vector_store %arg8[%c0_11, %c0_12], %12 {strides = array<i32>} : memref<32x128xf32, #tpu.memory_space<vmem>>, vector<32x128xf32>,
    } else {
    }
    %c0 = arith.constant 0 : index
    %c0_1 = arith.constant 0 : index
    %3 = vector.load %arg3[%c0, %c0_1] : memref<32x256xf32, #tpu.memory_space<vmem>>, vector<32x256xf32>
    %c0_2 = arith.constant 0 : index
    %c0_3 = arith.constant 0 : index
    %4 = vector.load %arg4[%c0_2, %c0_3] : memref<256x128xf32, #tpu.memory_space<vmem>>, vector<256x128xf32>
    %c0_4 = arith.constant 0 : index
    %c0_5 = arith.constant 0 : index
    %5 = vector.load %arg8[%c0_4, %c0_5] : memref<32x128xf32, #tpu.memory_space<vmem>>, vector<32x128xf32>
    %cst = arith.constant dense<0.000000e+00> : vector<32x128xf32>
    %6 = tpu.matmul %3, %4, %cst {dimension_numbers = #tpu.dot_dimension_numbers<[1], [0], [0], [1], [0, 0, 1, 1], [], []>} : vector<32x256xf32>, vector<256x128xf32>, vector<32x128xf32> -> vector<32x128xf32>
    %7 = arith.addf %5, %6 : vector<32x128xf32>
    %c0_6 = arith.constant 0 : index
    %c0_7 = arith.constant 0 : index
    %8 = vector.load %arg8[%c0_6, %c0_7] : memref<32x128xf32, #tpu.memory_space<vmem>>, vector<32x128xf32>
    tpu.vector_store %arg8[%c0_6, %c0_7], %7 {strides = array<i32>} : memref<32x128xf32, #tpu.memory_space<vmem>>, vector<32x128xf32>,
    %c0_i32_8 = arith.constant 0 : i32
    %9 = arith.cmpi eq, %arg2, %c0_i32_8 : i32
    %10 = arith.extui %9 : i1 to i32
    %c0_i32_9 = arith.constant 0 : i32
    %11 = arith.cmpi ne, %10, %c0_i32_9 : i32
    scf.if %11 {
      %c0_10 = arith.constant 0 : index
      %c0_11 = arith.constant 0 : index
      %12 = vector.load %arg8[%c0_10, %c0_11] : memref<32x128xf32, #tpu.memory_space<vmem>>, vector<32x128xf32>
      %c0_12 = arith.constant 0 : index
      %c0_13 = arith.constant 0 : index
      %13 = vector.load %arg5[%c0_12, %c0_13] : memref<1x128xf32, #tpu.memory_space<vmem>>, vector<1x128xf32>
      %14 = vector.broadcast %13 : vector<1x128xf32> to vector<32x128xf32>
      %15 = arith.addf %12, %14 : vector<32x128xf32>
      %c0_14 = arith.constant 0 : index
      %c0_15 = arith.constant 0 : index
      %16 = vector.load %arg6[%c0_14, %c0_15] : memref<32x128xf32, #tpu.memory_space<vmem>>, vector<32x128xf32>
      %17 = arith.addf %15, %16 : vector<32x128xf32>
      %c0_16 = arith.constant 0 : index
      %c0_17 = arith.constant 0 : index
      %18 = vector.load %arg7[%c0_16, %c0_17] : memref<32x128xf32, #tpu.memory_space<vmem>>, vector<32x128xf32>
      tpu.vector_store %arg7[%c0_16, %c0_17], %17 {strides = array<i32>} : memref<32x128xf32, #tpu.memory_space<vmem>>, vector<32x128xf32>,
    } else {
    }
    return
  }
  func.func @transform_0(%arg0: i32, %arg1: i32, %arg2: i32) -> (i32, i32) {
    %c0_i32 = arith.constant 0 : i32
    return %arg0, %arg2 : i32, i32
  }
  func.func @transform_1(%arg0: i32, %arg1: i32, %arg2: i32) -> (i32, i32) {
    %c0_i32 = arith.constant 0 : i32
    return %arg2, %arg1 : i32, i32
  }
  func.func @transform_2(%arg0: i32, %arg1: i32, %arg2: i32) -> (i32, i32) {
    %c0_i32 = arith.constant 0 : i32
    %c0_i32_0 = arith.constant 0 : i32
    return %c0_i32, %arg1 : i32, i32
  }
  func.func @transform_3(%arg0: i32, %arg1: i32, %arg2: i32) -> (i32, i32) {
    %c0_i32 = arith.constant 0 : i32
    return %arg0, %arg1 : i32, i32
  }
  func.func @transform_4(%arg0: i32, %arg1: i32, %arg2: i32) -> (i32, i32) {
    %c0_i32 = arith.constant 0 : i32
    return %arg0, %arg1 : i32, i32
  }
}

module attributes {stable_mosaic.version = 11 : i64} {
  func.func @_layernorm_kernel(%arg0: i32, %arg1: memref<32x128xf32, #tpu.memory_space<vmem>>, %arg2: memref<1x128xf32, #tpu.memory_space<vmem>>, %arg3: memref<1x128xf32, #tpu.memory_space<vmem>>, %arg4: memref<32x128xf32, #tpu.memory_space<vmem>>) attributes {dimension_semantics = [#tpu.dimension_semantics<parallel>], iteration_bounds = array<i64: 1>, scalar_prefetch = 0 : i64, scratch_operands = 0 : i64, tpu.core_type = #tpu.core_type<tc>, window_params = [{transform_indices = @transform_0, window_bounds = array<i64: 32, 128>}, {pipeline_mode = #tpu.pipeline_mode<synchronous>, transform_indices = @transform_1, window_bounds = array<i64: 1, 128>}, {pipeline_mode = #tpu.pipeline_mode<synchronous>, transform_indices = @transform_2, window_bounds = array<i64: 1, 128>}, {transform_indices = @transform_3, window_bounds = array<i64: 32, 128>}]} {
    %c0 = arith.constant 0 : index
    %c0_0 = arith.constant 0 : index
    %0 = vector.load %arg1[%c0, %c0_0] : memref<32x128xf32, #tpu.memory_space<vmem>>, vector<32x128xf32>
    %cst = arith.constant dense<0.000000e+00> : vector<32xf32>
    %1 = vector.multi_reduction <add>, %0, %cst [1] : vector<32x128xf32> to vector<32xf32>
    %2 = vector.shape_cast %1 : vector<32xf32> to vector<32x1xf32>
    %cst_1 = arith.constant 1.280000e+02 : f32
    %3 = vector.broadcast %cst_1 : f32 to vector<32x1xf32>
    %4 = arith.divf %2, %3 : vector<32x1xf32>
    %5 = vector.broadcast %4 : vector<32x1xf32> to vector<32x128xf32>
    %6 = arith.subf %0, %5 : vector<32x128xf32>
    %7 = arith.mulf %6, %6 : vector<32x128xf32>
    %cst_2 = arith.constant dense<0.000000e+00> : vector<32xf32>
    %8 = vector.multi_reduction <add>, %7, %cst_2 [1] : vector<32x128xf32> to vector<32xf32>
    %9 = vector.shape_cast %8 : vector<32xf32> to vector<32x1xf32>
    %cst_3 = arith.constant 1.280000e+02 : f32
    %10 = vector.broadcast %cst_3 : f32 to vector<32x1xf32>
    %11 = arith.divf %9, %10 : vector<32x1xf32>
    %cst_4 = arith.constant 9.99999996E-13 : f32
    %12 = vector.broadcast %cst_4 : f32 to vector<32x1xf32>
    %13 = arith.addf %11, %12 : vector<32x1xf32>
    %14 = math.rsqrt %13 : vector<32x1xf32>
    %15 = vector.broadcast %14 : vector<32x1xf32> to vector<32x128xf32>
    %16 = arith.mulf %6, %15 : vector<32x128xf32>
    %c0_5 = arith.constant 0 : index
    %c0_6 = arith.constant 0 : index
    %17 = vector.load %arg2[%c0_5, %c0_6] : memref<1x128xf32, #tpu.memory_space<vmem>>, vector<1x128xf32>
    %18 = vector.broadcast %17 : vector<1x128xf32> to vector<32x128xf32>
    %19 = arith.mulf %16, %18 : vector<32x128xf32>
    %c0_7 = arith.constant 0 : index
    %c0_8 = arith.constant 0 : index
    %20 = vector.load %arg3[%c0_7, %c0_8] : memref<1x128xf32, #tpu.memory_space<vmem>>, vector<1x128xf32>
    %21 = vector.broadcast %20 : vector<1x128xf32> to vector<32x128xf32>
    %22 = arith.addf %19, %21 : vector<32x128xf32>
    %c0_9 = arith.constant 0 : index
    %c0_10 = arith.constant 0 : index
    %23 = vector.load %arg4[%c0_9, %c0_10] : memref<32x128xf32, #tpu.memory_space<vmem>>, vector<32x128xf32>
    tpu.vector_store %arg4[%c0_9, %c0_10], %22 {strides = array<i32>} : memref<32x128xf32, #tpu.memory_space<vmem>>, vector<32x128xf32>,
    return
  }
  func.func @transform_0(%arg0: i32) -> (i32, i32) {
    %c0_i32 = arith.constant 0 : i32
    %c0_i32_0 = arith.constant 0 : i32
    return %arg0, %c0_i32 : i32, i32
  }
  func.func @transform_1(%arg0: i32) -> (i32, i32) {
    %c0_i32 = arith.constant 0 : i32
    %c0_i32_0 = arith.constant 0 : i32
    %c0_i32_1 = arith.constant 0 : i32
    return %c0_i32, %c0_i32_0 : i32, i32
  }
  func.func @transform_2(%arg0: i32) -> (i32, i32) {
    %c0_i32 = arith.constant 0 : i32
    %c0_i32_0 = arith.constant 0 : i32
    %c0_i32_1 = arith.constant 0 : i32
    return %c0_i32, %c0_i32_0 : i32, i32
  }
  func.func @transform_3(%arg0: i32) -> (i32, i32) {
    %c0_i32 = arith.constant 0 : i32
    %c0_i32_0 = arith.constant 0 : i32
    return %arg0, %c0_i32 : i32, i32
  }
}

module attributes {stable_mosaic.version = 11 : i64} {
  func.func @_linear_kernel(%arg0: i32, %arg1: i32, %arg2: i32, %arg3: memref<2x128xf32, #tpu.memory_space<vmem>>, %arg4: memref<128x128xf32, #tpu.memory_space<vmem>>, %arg5: memref<1x128xf32, #tpu.memory_space<vmem>>, %arg6: memref<2x128xf32, #tpu.memory_space<vmem>>, %arg7: memref<2x128xf32, #tpu.memory_space<vmem>>) attributes {dimension_semantics = [#tpu.dimension_semantics<parallel>, #tpu.dimension_semantics<parallel>, #tpu.dimension_semantics<arbitrary>], iteration_bounds = array<i64: 1, 1, 1>, scalar_prefetch = 0 : i64, scratch_operands = 1 : i64, tpu.core_type = #tpu.core_type<tc>, window_params = [{transform_indices = @transform_0, window_bounds = array<i64: 2, 128>}, {transform_indices = @transform_1, window_bounds = array<i64: 128, 128>}, {transform_indices = @transform_2, window_bounds = array<i64: 1, 128>}, {transform_indices = @transform_3, window_bounds = array<i64: 2, 128>}]} {
    %c0_i32 = arith.constant 0 : i32
    %0 = arith.cmpi eq, %arg2, %c0_i32 : i32
    %1 = arith.extui %0 : i1 to i32
    %c0_i32_0 = arith.constant 0 : i32
    %2 = arith.cmpi ne, %1, %c0_i32_0 : i32
    scf.if %2 {
      %cst_10 = arith.constant 0.000000e+00 : f32
      %12 = vector.broadcast %cst_10 : f32 to vector<2x128xf32>
      %c0_11 = arith.constant 0 : index
      %c0_12 = arith.constant 0 : index
      %13 = vector.load %arg7[%c0_11, %c0_12] : memref<2x128xf32, #tpu.memory_space<vmem>>, vector<2x128xf32>
      tpu.vector_store %arg7[%c0_11, %c0_12], %12 {strides = array<i32>} : memref<2x128xf32, #tpu.memory_space<vmem>>, vector<2x128xf32>,
    } else {
    }
    %c0 = arith.constant 0 : index
    %c0_1 = arith.constant 0 : index
    %3 = vector.load %arg3[%c0, %c0_1] : memref<2x128xf32, #tpu.memory_space<vmem>>, vector<2x128xf32>
    %c0_2 = arith.constant 0 : index
    %c0_3 = arith.constant 0 : index
    %4 = vector.load %arg4[%c0_2, %c0_3] : memref<128x128xf32, #tpu.memory_space<vmem>>, vector<128x128xf32>
    %c0_4 = arith.constant 0 : index
    %c0_5 = arith.constant 0 : index
    %5 = vector.load %arg7[%c0_4, %c0_5] : memref<2x128xf32, #tpu.memory_space<vmem>>, vector<2x128xf32>
    %cst = arith.constant dense<0.000000e+00> : vector<2x128xf32>
    %6 = tpu.matmul %3, %4, %cst {dimension_numbers = #tpu.dot_dimension_numbers<[1], [0], [0], [1], [0, 0, 1, 1], [], []>} : vector<2x128xf32>, vector<128x128xf32>, vector<2x128xf32> -> vector<2x128xf32>
    %7 = arith.addf %5, %6 : vector<2x128xf32>
    %c0_6 = arith.constant 0 : index
    %c0_7 = arith.constant 0 : index
    %8 = vector.load %arg7[%c0_6, %c0_7] : memref<2x128xf32, #tpu.memory_space<vmem>>, vector<2x128xf32>
    tpu.vector_store %arg7[%c0_6, %c0_7], %7 {strides = array<i32>} : memref<2x128xf32, #tpu.memory_space<vmem>>, vector<2x128xf32>,
    %c0_i32_8 = arith.constant 0 : i32
    %9 = arith.cmpi eq, %arg2, %c0_i32_8 : i32
    %10 = arith.extui %9 : i1 to i32
    %c0_i32_9 = arith.constant 0 : i32
    %11 = arith.cmpi ne, %10, %c0_i32_9 : i32
    scf.if %11 {
      %c0_10 = arith.constant 0 : index
      %c0_11 = arith.constant 0 : index
      %12 = vector.load %arg7[%c0_10, %c0_11] : memref<2x128xf32, #tpu.memory_space<vmem>>, vector<2x128xf32>
      %c0_12 = arith.constant 0 : index
      %c0_13 = arith.constant 0 : index
      %13 = vector.load %arg5[%c0_12, %c0_13] : memref<1x128xf32, #tpu.memory_space<vmem>>, vector<1x128xf32>
      %14 = vector.broadcast %13 : vector<1x128xf32> to vector<2x128xf32>
      %15 = arith.addf %12, %14 : vector<2x128xf32>
      %16 = math.tanh %15 : vector<2x128xf32>
      %c0_14 = arith.constant 0 : index
      %c0_15 = arith.constant 0 : index
      %17 = vector.load %arg6[%c0_14, %c0_15] : memref<2x128xf32, #tpu.memory_space<vmem>>, vector<2x128xf32>
      tpu.vector_store %arg6[%c0_14, %c0_15], %16 {strides = array<i32>} : memref<2x128xf32, #tpu.memory_space<vmem>>, vector<2x128xf32>,
    } else {
    }
    return
  }
  func.func @transform_0(%arg0: i32, %arg1: i32, %arg2: i32) -> (i32, i32) {
    %c0_i32 = arith.constant 0 : i32
    return %arg0, %arg2 : i32, i32
  }
  func.func @transform_1(%arg0: i32, %arg1: i32, %arg2: i32) -> (i32, i32) {
    %c0_i32 = arith.constant 0 : i32
    return %arg2, %arg1 : i32, i32
  }
  func.func @transform_2(%arg0: i32, %arg1: i32, %arg2: i32) -> (i32, i32) {
    %c0_i32 = arith.constant 0 : i32
    %c0_i32_0 = arith.constant 0 : i32
    return %c0_i32, %arg1 : i32, i32
  }
  func.func @transform_3(%arg0: i32, %arg1: i32, %arg2: i32) -> (i32, i32) {
    %c0_i32 = arith.constant 0 : i32
    return %arg0, %arg1 : i32, i32
  }
}

</mosaic_0001>

<llo_original>
// kernel: vit_model_forward.17
$region0: #{vit_model_forward.17}
  #allocation0 [shape = 'u32[]', space=smem, size = 0x4, offset = 0x4, fixed_abs, tag = 'smem constant byte address 0x4 - core index']
  #allocation1 [shape = 'u32[144,128]{1,0:T(1,128)}', space=vmem, size = 0x12000, scoped, tag = 'internal scratch']
  #allocation2 [shape = 'f32[30,128]{1,0:T(8,128)}', space=vmem, size = 0x4000, scoped, tag = 'scratch operand']
  %s0 = inlined_call_operand.hbm [shape: f32[30,8], index: 0, kind: input, shape index: {}]
  %s1 = inlined_call_operand.hbm [shape: f32[8,128], index: 1, kind: input, shape index: {}]
  %s2 = inlined_call_operand.hbm [shape: f32[1,128], index: 2, kind: input, shape index: {}]
  %s3 = inlined_call_operand.hbm [shape: f32[30,128], index: 3, kind: output, shape index: {}]
  %s4 = sld [smem:[#allocation0]]
  $region42: #{vit_model_forward.17} parent=0
    _
  %s6 = ssub.s32 1, %s4
  %s7 = scalar_select 0, %s6, %s4
  $region1: #{vit_model_forward.17} parent=0
    #allocation3 [shape = 'u8[16384]{0}', space=vmem, size = 0x4000, scoped, tag = 'input window, operand 0, single buffered']
    #allocation4 [shape = 's32[1]{0}', space=sflag, size = 0x4, scoped, tag = 'scoped memory for vit_model_forward.17']
    #allocation5 [shape = 's32[1]{0}', space=sflag, size = 0x4, scoped, tag = 'scoped memory for vit_model_forward.17']
    #allocation6 [shape = 'u8[4096]{0}', space=vmem, size = 0x1000, scoped, tag = 'input window, operand 1, single buffered']
    #allocation7 [shape = 's32[1]{0}', space=sflag, size = 0x4, scoped, tag = 'scoped memory for vit_model_forward.17']
    #allocation8 [shape = 'u8[512]{0}', space=vmem, size = 0x400, scoped, tag = 'input window, operand 2, single buffered']
    #allocation9 [shape = 'u8[16384]{0}', space=vmem, size = 0x4000, scoped, tag = 'output window, operand 0, single buffered']
    %8 = vsyncpa [#allocation4], 0
    %9 = vsyncpa [#allocation7], 0
    %10 = vsyncpa [#allocation5], 0
    // Predicated region
    $region2: #{vit_model_forward.17} parent=1 // pred_check
      _
    $region3: #{vit_model_forward.17} parent=1 // pred_check_branch
      %12 = sbr.rel (0) target = $region5
    $region4: #{vit_model_forward.17} parent=1 // pred_region
      %s14 = ssub.s32 512, 512
      %15 = vsyncadd [#allocation4], %s14
      %s16 = sshll.u32 [#allocation3], 4
      %s17 = int_to_ptr.vmem [resolvable:$true] %s16
      %22 = dma.hbm_to_vmem [thread:$0]  %s0, 512, %s17, [#allocation4], 128, 128, 8
    $region5: #{vit_model_forward.17} parent=1 // pred_fallthru
      _
    // Predicated region
    $region6: #{vit_model_forward.17} parent=1 // pred_check
      _
    $region7: #{vit_model_forward.17} parent=1 // pred_check_branch
      %24 = sbr.rel (0) target = $region9
    $region8: #{vit_model_forward.17} parent=1 // pred_region
      %s26 = ssub.s32 128, 128
      %27 = vsyncadd [#allocation7], %s26
      %s29 = sshll.u32 [#allocation6], 4
      %s30 = int_to_ptr.vmem [resolvable:$true] %s29
      %32 = dma.hbm_to_vmem [thread:$0]  %s1, 128, %s30, [#allocation7]
    $region9: #{vit_model_forward.17} parent=1 // pred_fallthru
      _
    // Predicated region
    $region10: #{vit_model_forward.17} parent=1 // pred_check
      _
    $region11: #{vit_model_forward.17} parent=1 // pred_check_branch
      %34 = sbr.rel (0) target = $region13
    $region12: #{vit_model_forward.17} parent=1 // pred_region
      %s36 = ssub.s32 16, 16
      %37 = vsyncadd [#allocation7], %s36
      %s39 = sshll.u32 [#allocation8], 4
      %s40 = int_to_ptr.vmem [resolvable:$true] %s39
      %42 = dma.hbm_to_vmem [thread:$0]  %s2, 16, %s40, [#allocation7]
    $region13: #{vit_model_forward.17} parent=1 // pred_fallthru
      _
    // Predicated region
    $region14: #{vit_model_forward.17} parent=1 // pred_check
      _
    $region15: #{vit_model_forward.17} parent=1 // pred_check_branch
      %44 = sbr.rel (0) target = $region17
    $region16: #{vit_model_forward.17} parent=1 // pred_region
      %45 = dma.done [#allocation4], 512
    $region17: #{vit_model_forward.17} parent=1 // pred_fallthru
      _
    // Predicated region
    $region18: #{vit_model_forward.17} parent=1 // pred_check
      _
    $region19: #{vit_model_forward.17} parent=1 // pred_check_branch
      %47 = sbr.rel (0) target = $region21
    $region20: #{vit_model_forward.17} parent=1 // pred_region
      %48 = dma.done [#allocation7], 128
    $region21: #{vit_model_forward.17} parent=1 // pred_fallthru
      _
    // Predicated region
    $region22: #{vit_model_forward.17} parent=1 // pred_check
      _
    $region23: #{vit_model_forward.17} parent=1 // pred_check_branch
      %50 = sbr.rel (0) target = $region25
    $region24: #{vit_model_forward.17} parent=1 // pred_region
      %51 = dma.done [#allocation7], 16
    $region25: #{vit_model_forward.17} parent=1 // pred_fallthru
      _
    %p52 = scmp.eq.s32.totalorder 0, 0
    // Predicated region
    $region26: #{vit_model_forward.17} parent=1 // pred_check
      %p53 = pneg %p52
    $region27: #{vit_model_forward.17} parent=1 // pred_check_branch
      %55 = sbr.rel (%p53) target = $region29
    $region28: #{vit_model_forward.17} parent=1 // pred_region
      %56 = vst [vmem:[#allocation2] sm:$0xff] 0.0
      %57 = vst [vmem:[#allocation2 + $0x8] sm:$0xff] 0.0
      %58 = vst [vmem:[#allocation2 + $0x10] sm:$0xff] 0.0
      %59 = vst [vmem:[#allocation2 + $0x18] sm:$0x3f] 0.0
    $region29: #{vit_model_forward.17} parent=1 // pred_fallthru
      _
    %v60 = vld [vmem:[#allocation3] sm:$0xff]
    %v61 = vld [vmem:[#allocation3 + $0x8] sm:$0xff]
    %v62 = vld [vmem:[#allocation3 + $0x10] sm:$0xff]
    %v63 = vld [vmem:[#allocation3 + $0x18] sm:$0x3f]
    %v64 = vld [vmem:[#allocation6] sm:$0xff]
    %v65 = vld [vmem:[#allocation2] sm:$0xff]
    %v66 = vld [vmem:[#allocation2 + $0x8] sm:$0xff]
    %v67 = vld [vmem:[#allocation2 + $0x10] sm:$0xff]
    %v68 = vld [vmem:[#allocation2 + $0x18] sm:$0x3f]
    %vm69 = vcmask 64512
    %v71 = vsel %vm69, %v60, 0
    %v74 = vsel %vm69, %v61, 0
    %v77 = vsel %vm69, %v62, 0
    %v80 = vsel %vm69, %v63, 0
    %82 = vmatprep.subr.mxu0 0.0
    %83 = vmatpush1.msra.mxu0 %v64
    %84 = vmatprep.subr.mxu0 0.0
    %85 = vmatpush1.msra.mxu0 0.0
    %86 = vmatprep.subr.mxu0 0.0
    %87 = vmatpush1.msra.mxu0 0.0
    %88 = vmatprep.subr.mxu0 0.0
    %89 = vmatpush1.msra.mxu0 0.0
    %90 = vmatprep.subr.mxu0 0.0
    %91 = vmatpush1.msra.mxu0 0.0
    %92 = vmatprep.subr.mxu0 0.0
    %93 = vmatpush1.msra.mxu0 0.0
    %94 = vmatprep.subr.mxu0 0.0
    %95 = vmatpush1.msra.mxu0 0.0
    %96 = vmatprep.subr.mxu0 0.0
    %97 = vmatpush1.msra.mxu0 0.0
    %98 = vmatprep.subr.mxu0 0.0
    %99 = vmatpush1.msra.mxu0 0.0
    %100 = vmatprep.subr.mxu0 0.0
    %101 = vmatpush1.msra.mxu0 0.0
    %102 = vmatprep.subr.mxu0 0.0
    %103 = vmatpush1.msra.mxu0 0.0
    %104 = vmatprep.subr.mxu0 0.0
    %105 = vmatpush1.msra.mxu0 0.0
    %106 = vmatprep.subr.mxu0 0.0
    %107 = vmatpush1.msra.mxu0 0.0
    %108 = vmatprep.subr.mxu0 0.0
    %109 = vmatpush1.msra.mxu0 0.0
    %110 = vmatprep.subr.mxu0 0.0
    %111 = vmatpush1.msra.mxu0 0.0
    %112 = vmatprep.subr.mxu0 0.0
    %113 = vmatpush1.msra.mxu0 0.0
    %114 = vmatprep.subr.mxu0 0.0
    %115 = vmatpush1.msra.mxu0 0.0
    %116 = vmatprep.subr.mxu0 0.0
    %117 = vmatpush1.msra.mxu0 0.0
    %118 = vmatprep.subr.mxu0 0.0
    %119 = vmatpush1.msra.mxu0 0.0
    %120 = vmatprep.subr.mxu0 0.0
    %121 = vmatpush1.msra.mxu0 0.0
    %122 = vmatprep.subr.mxu0 0.0
    %123 = vmatpush1.msra.mxu0 0.0
    %124 = vmatprep.subr.mxu0 0.0
    %125 = vmatpush1.msra.mxu0 0.0
    %126 = vmatprep.subr.mxu0 0.0
    %127 = vmatpush1.msra.mxu0 0.0
    %128 = vmatprep.subr.mxu0 0.0
    %129 = vmatpush1.msra.mxu0 0.0
    %130 = vmatprep.subr.mxu0 0.0
    %131 = vmatpush1.msra.mxu0 0.0
    %132 = vmatprep.subr.mxu0 0.0
    %133 = vmatpush1.msra.mxu0 0.0
    %134 = vmatprep.subr.mxu0 0.0
    %135 = vmatpush1.msra.mxu0 0.0
    %136 = vmatprep.subr.mxu0 0.0
    %137 = vmatpush1.msra.mxu0 0.0
    %138 = vmatprep.subr.mxu0 0.0
    %139 = vmatpush1.msra.mxu0 0.0
    %140 = vmatprep.subr.mxu0 0.0
    %141 = vmatpush1.msra.mxu0 0.0
    %142 = vmatprep.subr.mxu0 0.0
    %143 = vmatpush1.msra.mxu0 0.0
    %144 = vmatprep.subr.mxu0 0.0
    %145 = vmatpush1.msra.mxu0 0.0
    %146 = vmatprep.mubr.f32.mxu0 0.0
    %147 = vmatmul.mubr.f32.gmra.mrb[0].mxu0 %v71
    %v148 = vpop.f32.mrb[0].mxu0
    %v149 = vadd.f32 0.0, %v148
    %v150 = vpop.f32.mrb[0].mxu0
    %151 = vmatprep.mubr.f32.mxu0 0.0
    %152 = vmatmul.mubr.f32.gmra.mrb[0].mxu0 %v74
    %v153 = vpop.f32.mrb[0].mxu0
    %v154 = vadd.f32 0.0, %v153
    %v155 = vpop.f32.mrb[0].mxu0
    %156 = vmatprep.mubr.f32.mxu0 0.0
    %157 = vmatmul.mubr.f32.gmra.mrb[0].mxu0 %v77
    %v158 = vpop.f32.mrb[0].mxu0
    %v159 = vadd.f32 0.0, %v158
    %v160 = vpop.f32.mrb[0].mxu0
    %161 = vmatprep.mubr.f32.mxu0 0.0
    %162 = vmatmul.mubr.f32.gmra.mrb[0].mxu0 %v80
    %v163 = vpop.f32.mrb[0].mxu0
    %v164 = vadd.f32 0.0, %v163
    %v165 = vpop.f32.mrb[0].mxu0
    %166 = vdwg.mxu0
    %v167 = vadd.f32 %v65, %v149
    %v168 = vadd.f32 %v66, %v154
    %v169 = vadd.f32 %v67, %v159
    %v170 = vadd.f32 %v68, %v164
    %171 = vst [vmem:[#allocation2] sm:$0xff] %v167
    %172 = vst [vmem:[#allocation2 + $0x8] sm:$0xff] %v168
    %173 = vst [vmem:[#allocation2 + $0x10] sm:$0xff] %v169
    %174 = vst [vmem:[#allocation2 + $0x18] sm:$0x3f] %v170
    // Predicated region
    $region30: #{vit_model_forward.17} parent=1 // pred_check
      %p175 = pneg %p52
    $region31: #{vit_model_forward.17} parent=1 // pred_check_branch
      %177 = sbr.rel (%p175) target = $region33
    $region32: #{vit_model_forward.17} parent=1 // pred_region
      %v178 = vld [vmem:[#allocation2] sm:$0xff]
      %v179 = vld [vmem:[#allocation2 + $0x8] sm:$0xff]
      %v180 = vld [vmem:[#allocation2 + $0x10] sm:$0xff]
      %v181 = vld [vmem:[#allocation2 + $0x18] sm:$0x3f]
      %v182 = vld [vmem:[#allocation8] sm:$0x1]
      %v184 = vlaneseq
      %v185 = vshrl.u32 %v184, 7
      %v186 = vsub.s32 0, %v185
      %v187 = vrot.slane %v182, %v186
      %v189 = vadd.f32 %v178, %v187
      %v190 = vadd.f32 %v179, %v187
      %v191 = vadd.f32 %v180, %v187
      %v192 = vadd.f32 %v181, %v187
      %193 = vst [vmem:[#allocation9] sm:$0xff] %v189
      %194 = vst [vmem:[#allocation9 + $0x8] sm:$0xff] %v190
      %195 = vst [vmem:[#allocation9 + $0x10] sm:$0xff] %v191
      %196 = vst [vmem:[#allocation9 + $0x18] sm:$0x3f] %v192
    $region33: #{vit_model_forward.17} parent=1 // pred_fallthru
      _
    // Predicated region
    $region34: #{vit_model_forward.17} parent=1 // pred_check
      _
    $region35: #{vit_model_forward.17} parent=1 // pred_check_branch
      %198 = sbr.rel (0) target = $region37
    $region36: #{vit_model_forward.17} parent=1 // pred_region
      %s200 = ssub.s32 512, 512
      %201 = vsyncadd [#allocation5], %s200
      %s202 = sshll.u32 [#allocation9], 4
      %s203 = int_to_ptr.vmem [resolvable:$true] %s202
      %208 = dma.vmem_to_hbm [thread:$0]  %s203, 512, %s3, [#allocation5], 128, 128, 8
    $region37: #{vit_model_forward.17} parent=1 // pred_fallthru
      _
    // Predicated region
    $region38: #{vit_model_forward.17} parent=1 // pred_check
      _
    $region39: #{vit_model_forward.17} parent=1 // pred_check_branch
      %210 = sbr.rel (0) target = $region41
    $region40: #{vit_model_forward.17} parent=1 // pred_region
      %211 = dma.done [#allocation5], 512
    $region41: #{vit_model_forward.17} parent=1 // pred_fallthru
      _
    %212 = vsyncpa [#allocation4], 1
    %213 = vsyncpa [#allocation7], 1
    %214 = vsyncpa [#allocation5], 1

// kernel: vit_model_forward.18
$region0: #{vit_model_forward.18}
  #allocation0 [shape = 'u32[]', space=smem, size = 0x4, offset = 0x4, fixed_abs, tag = 'smem constant byte address 0x4 - core index']
  #allocation1 [shape = 'u32[144,128]{1,0:T(1,128)}', space=vmem, size = 0x12000, scoped, tag = 'internal scratch']
  %s0 = inlined_call_operand.vmem [shape: f32[32,128], index: 0, kind: input, shape index: {}]
  %s1 = inlined_call_operand.vmem [shape: f32[1,128], index: 1, kind: input, shape index: {}]
  %s2 = inlined_call_operand.vmem [shape: f32[1,128], index: 2, kind: input, shape index: {}]
  %s3 = inlined_call_operand.hbm [shape: f32[32,128], index: 3, kind: output, shape index: {}]
  %s4 = sld [smem:[#allocation0]]
  $region22: #{vit_model_forward.18} parent=0
    _
  %s6 = ssub.s32 1, %s4
  %s7 = scalar_select 0, %s6, %s4
  $region1: #{vit_model_forward.18} parent=0
    #allocation2 [shape = 'u8[16384]{0}', space=vmem, size = 0x4000, scoped, tag = 'output window, operand 0, single buffered']
    #allocation3 [shape = 's32[1]{0}', space=sflag, size = 0x4, scoped, tag = 'scoped memory for vit_model_forward.18']
    %8 = vsyncpa [#allocation3], 0
    // Predicated region
    $region2: #{vit_model_forward.18} parent=1 // pred_check
      _
    $region3: #{vit_model_forward.18} parent=1 // pred_check_branch
      %10 = sbr.rel (0) target = $region5
    $region4: #{vit_model_forward.18} parent=1 // pred_region
      _
    $region5: #{vit_model_forward.18} parent=1 // pred_fallthru
      _
    // Predicated region
    $region6: #{vit_model_forward.18} parent=1 // pred_check
      _
    $region7: #{vit_model_forward.18} parent=1 // pred_check_branch
      %12 = sbr.rel (0) target = $region9
    $region8: #{vit_model_forward.18} parent=1 // pred_region
      _
    $region9: #{vit_model_forward.18} parent=1 // pred_fallthru
      _
    // Predicated region
    $region10: #{vit_model_forward.18} parent=1 // pred_check
      _
    $region11: #{vit_model_forward.18} parent=1 // pred_check_branch
      %14 = sbr.rel (0) target = $region13
    $region12: #{vit_model_forward.18} parent=1 // pred_region
      _
    $region13: #{vit_model_forward.18} parent=1 // pred_fallthru
      _
    %v15 = vld [vmem:[%s0] sm:$0xff]
    %v16 = vld [vmem:[%s0 + $0x8] sm:$0xff]
    %v17 = vld [vmem:[%s0 + $0x10] sm:$0xff]
    %v18 = vld [vmem:[%s0 + $0x18] sm:$0xff]
    %19 = vadd.xlane.f32.xlu0 %v15
    %v20 = vpop.xlane.xlu0 %19
    %21 = vadd.xlane.f32.xlu0 %v16
    %v22 = vpop.xlane.xlu0 %21
    %23 = vadd.xlane.f32.xlu0 %v17
    %v24 = vpop.xlane.xlu0 %23
    %25 = vadd.xlane.f32.xlu0 %v18
    %v26 = vpop.xlane.xlu0 %25
    %v27 = vrcp.pop 128.0
    %v28 = vmul.f32 %v20, %v27
    %v29 = vmul.f32 %v22, %v27
    %v30 = vmul.f32 %v24, %v27
    %v31 = vmul.f32 %v26, %v27
    %v32 = vsub.f32 %v15, %v28
    %v33 = vsub.f32 %v16, %v29
    %v34 = vsub.f32 %v17, %v30
    %v35 = vsub.f32 %v18, %v31
    %v36 = vmul.f32 %v32, %v32
    %v37 = vmul.f32 %v33, %v33
    %v38 = vmul.f32 %v34, %v34
    %v39 = vmul.f32 %v35, %v35
    %40 = vadd.xlane.f32.xlu0 %v36
    %v41 = vpop.xlane.xlu0 %40
    %42 = vadd.xlane.f32.xlu0 %v37
    %v43 = vpop.xlane.xlu0 %42
    %44 = vadd.xlane.f32.xlu0 %v38
    %v45 = vpop.xlane.xlu0 %44
    %46 = vadd.xlane.f32.xlu0 %v39
    %v47 = vpop.xlane.xlu0 %46
    %v48 = vmul.f32 %v41, %v27
    %v49 = vmul.f32 %v43, %v27
    %v50 = vmul.f32 %v45, %v27
    %v51 = vmul.f32 %v47, %v27
    %v52 = vadd.f32 %v48, 1e-12
    %v53 = vadd.f32 %v49, 1e-12
    %v54 = vadd.f32 %v50, 1e-12
    %v55 = vadd.f32 %v51, 1e-12
    %v56 = vrsqrt.pop %v52
    %v57 = vrsqrt.pop %v53
    %v58 = vrsqrt.pop %v54
    %v59 = vrsqrt.pop %v55
    %v60 = vmul.f32 %v32, %v56
    %v61 = vmul.f32 %v33, %v57
    %v62 = vmul.f32 %v34, %v58
    %v63 = vmul.f32 %v35, %v59
    %v64 = vld [vmem:[%s1] sm:$0x1]
    %v66 = vlaneseq
    %v67 = vshrl.u32 %v66, 7
    %v68 = vsub.s32 0, %v67
    %v69 = vrot.slane %v64, %v68
    %v71 = vmul.f32 %v60, %v69
    %v72 = vmul.f32 %v61, %v69
    %v73 = vmul.f32 %v62, %v69
    %v74 = vmul.f32 %v63, %v69
    %v75 = vld [vmem:[%s2] sm:$0x1]
    %v77 = vlaneseq
    %v78 = vshrl.u32 %v77, 7
    %v79 = vsub.s32 0, %v78
    %v80 = vrot.slane %v75, %v79
    %v82 = vadd.f32 %v71, %v80
    %v83 = vadd.f32 %v72, %v80
    %v84 = vadd.f32 %v73, %v80
    %v85 = vadd.f32 %v74, %v80
    %86 = vst [vmem:[#allocation2] sm:$0xff] %v82
    %87 = vst [vmem:[#allocation2 + $0x8] sm:$0xff] %v83
    %88 = vst [vmem:[#allocation2 + $0x10] sm:$0xff] %v84
    %89 = vst [vmem:[#allocation2 + $0x18] sm:$0xff] %v85
    // Predicated region
    $region14: #{vit_model_forward.18} parent=1 // pred_check
      _
    $region15: #{vit_model_forward.18} parent=1 // pred_check_branch
      %91 = sbr.rel (0) target = $region17
    $region16: #{vit_model_forward.18} parent=1 // pred_region
      %s93 = ssub.s32 512, 512
      %94 = vsyncadd [#allocation3], %s93
      %s95 = sshll.u32 [#allocation2], 4
      %s96 = int_to_ptr.vmem [resolvable:$true] %s95
      %101 = dma.vmem_to_hbm [thread:$0]  %s96, 512, %s3, [#allocation3], 128, 128, 8
    $region17: #{vit_model_forward.18} parent=1 // pred_fallthru
      _
    // Predicated region
    $region18: #{vit_model_forward.18} parent=1 // pred_check
      _
    $region19: #{vit_model_forward.18} parent=1 // pred_check_branch
      %103 = sbr.rel (0) target = $region21
    $region20: #{vit_model_forward.18} parent=1 // pred_region
      %104 = dma.done [#allocation3], 512
    $region21: #{vit_model_forward.18} parent=1 // pred_fallthru
      _
    %105 = vsyncpa [#allocation3], 1

// kernel: vit_model_forward.19
$region0: #{vit_model_forward.19}
  #allocation0 [shape = 'u32[]', space=smem, size = 0x4, offset = 0x4, fixed_abs, tag = 'smem constant byte address 0x4 - core index']
  #allocation1 [shape = 'u32[144,128]{1,0:T(1,128)}', space=vmem, size = 0x12000, scoped, tag = 'internal scratch']
  #allocation2 [shape = 'f32[32,384]{1,0:T(8,128)}', space=vmem, size = 0xc000, scoped, tag = 'scratch operand']
  %s0 = inlined_call_operand.hbm [shape: f32[32,128], index: 0, kind: input, shape index: {}]
  %s1 = inlined_call_operand.hbm [shape: f32[128,384], index: 1, kind: input, shape index: {}]
  %s2 = inlined_call_operand.hbm [shape: f32[1,384], index: 2, kind: input, shape index: {}]
  %s3 = inlined_call_operand.hbm [shape: f32[32,384], index: 3, kind: output, shape index: {}]
  %s4 = sld [smem:[#allocation0]]
  $region42: #{vit_model_forward.19} parent=0
    _
  %s6 = ssub.s32 1, %s4
  %s7 = scalar_select 0, %s6, %s4
  $region1: #{vit_model_forward.19} parent=0
    #allocation3 [shape = 'u8[16384]{0}', space=vmem, size = 0x4000, scoped, tag = 'input window, operand 0, single buffered']
    #allocation4 [shape = 's32[1]{0}', space=sflag, size = 0x4, scoped, tag = 'scoped memory for vit_model_forward.19']
    #allocation5 [shape = 's32[1]{0}', space=sflag, size = 0x4, scoped, tag = 'scoped memory for vit_model_forward.19']
    #allocation6 [shape = 'u8[196608]{0}', space=vmem, size = 0x30000, scoped, tag = 'input window, operand 1, single buffered']
    #allocation7 [shape = 's32[1]{0}', space=sflag, size = 0x4, scoped, tag = 'scoped memory for vit_model_forward.19']
    #allocation8 [shape = 'u8[1536]{0}', space=vmem, size = 0x800, scoped, tag = 'input window, operand 2, single buffered']
    #allocation9 [shape = 'u8[49152]{0}', space=vmem, size = 0xc000, scoped, tag = 'output window, operand 0, single buffered']
    %8 = vsyncpa [#allocation4], 0
    %9 = vsyncpa [#allocation7], 0
    %10 = vsyncpa [#allocation5], 0
    // Predicated region
    $region2: #{vit_model_forward.19} parent=1 // pred_check
      _
    $region3: #{vit_model_forward.19} parent=1 // pred_check_branch
      %12 = sbr.rel (0) target = $region5
    $region4: #{vit_model_forward.19} parent=1 // pred_region
      %s14 = ssub.s32 512, 512
      %15 = vsyncadd [#allocation4], %s14
      %s16 = sshll.u32 [#allocation3], 4
      %s17 = int_to_ptr.vmem [resolvable:$true] %s16
      %22 = dma.hbm_to_vmem [thread:$0]  %s0, 512, %s17, [#allocation4], 128, 128, 8
    $region5: #{vit_model_forward.19} parent=1 // pred_fallthru
      _
    // Predicated region
    $region6: #{vit_model_forward.19} parent=1 // pred_check
      _
    $region7: #{vit_model_forward.19} parent=1 // pred_check_branch
      %24 = sbr.rel (0) target = $region9
    $region8: #{vit_model_forward.19} parent=1 // pred_region
      %s26 = ssub.s32 6144, 6144
      %27 = vsyncadd [#allocation7], %s26
      %s28 = sshll.u32 [#allocation6], 4
      %s29 = int_to_ptr.vmem [resolvable:$true] %s28
      %34 = dma.hbm_to_vmem [thread:$0]  %s1, 6144, %s29, [#allocation7], 384, 384, 24
    $region9: #{vit_model_forward.19} parent=1 // pred_fallthru
      _
    // Predicated region
    $region10: #{vit_model_forward.19} parent=1 // pred_check
      _
    $region11: #{vit_model_forward.19} parent=1 // pred_check_branch
      %36 = sbr.rel (0) target = $region13
    $region12: #{vit_model_forward.19} parent=1 // pred_region
      %s38 = ssub.s32 48, 48
      %39 = vsyncadd [#allocation7], %s38
      %s41 = sshll.u32 [#allocation8], 4
      %s42 = int_to_ptr.vmem [resolvable:$true] %s41
      %44 = dma.hbm_to_vmem [thread:$0]  %s2, 48, %s42, [#allocation7]
    $region13: #{vit_model_forward.19} parent=1 // pred_fallthru
      _
    // Predicated region
    $region14: #{vit_model_forward.19} parent=1 // pred_check
      _
    $region15: #{vit_model_forward.19} parent=1 // pred_check_branch
      %46 = sbr.rel (0) target = $region17
    $region16: #{vit_model_forward.19} parent=1 // pred_region
      %47 = dma.done [#allocation4], 512
    $region17: #{vit_model_forward.19} parent=1 // pred_fallthru
      _
    // Predicated region
    $region18: #{vit_model_forward.19} parent=1 // pred_check
      _
    $region19: #{vit_model_forward.19} parent=1 // pred_check_branch
      %49 = sbr.rel (0) target = $region21
    $region20: #{vit_model_forward.19} parent=1 // pred_region
      %50 = dma.done [#allocation7], 6144
    $region21: #{vit_model_forward.19} parent=1 // pred_fallthru
      _
    // Predicated region
    $region22: #{vit_model_forward.19} parent=1 // pred_check
      _
    $region23: #{vit_model_forward.19} parent=1 // pred_check_branch
      %52 = sbr.rel (0) target = $region25
    $region24: #{vit_model_forward.19} parent=1 // pred_region
      %53 = dma.done [#allocation7], 48
    $region25: #{vit_model_forward.19} parent=1 // pred_fallthru
      _
    %p54 = scmp.eq.s32.totalorder 0, 0
    // Predicated region
    $region26: #{vit_model_forward.19} parent=1 // pred_check
      %p55 = pneg %p54
    $region27: #{vit_model_forward.19} parent=1 // pred_check_branch
      %57 = sbr.rel (%p55) target = $region29
    $region28: #{vit_model_forward.19} parent=1 // pred_region
      %58 = vst [vmem:[#allocation2] sm:$0xff] 0.0
      %59 = vst [vmem:[#allocation2 + $0x8] sm:$0xff] 0.0
      %60 = vst [vmem:[#allocation2 + $0x10] sm:$0xff] 0.0
      %61 = vst [vmem:[#allocation2 + $0x18] sm:$0xff] 0.0
      %62 = vst [vmem:[#allocation2 + $0x20] sm:$0xff] 0.0
      %63 = vst [vmem:[#allocation2 + $0x28] sm:$0xff] 0.0
      %64 = vst [vmem:[#allocation2 + $0x30] sm:$0xff] 0.0
      %65 = vst [vmem:[#allocation2 + $0x38] sm:$0xff] 0.0
      %66 = vst [vmem:[#allocation2 + $0x40] sm:$0xff] 0.0
      %67 = vst [vmem:[#allocation2 + $0x48] sm:$0xff] 0.0
      %68 = vst [vmem:[#allocation2 + $0x50] sm:$0xff] 0.0
      %69 = vst [vmem:[#allocation2 + $0x58] sm:$0xff] 0.0
    $region29: #{vit_model_forward.19} parent=1 // pred_fallthru
      _
    %v70 = vld [vmem:[#allocation3] sm:$0xff]
    %v71 = vld [vmem:[#allocation3 + $0x8] sm:$0xff]
    %v72 = vld [vmem:[#allocation3 + $0x10] sm:$0xff]
    %v73 = vld [vmem:[#allocation3 + $0x18] sm:$0xff]
    %v74 = vld [vmem:[#allocation6] sm:$0xff]
    %v75 = vld [vmem:[#allocation6 + $0x8] sm:$0xff]
    %v76 = vld [vmem:[#allocation6 + $0x10] sm:$0xff]
    %v77 = vld [vmem:[#allocation6 + $0x18] sm:$0xff]
    %v78 = vld [vmem:[#allocation6 + $0x20] sm:$0xff]
    %v79 = vld [vmem:[#allocation6 + $0x28] sm:$0xff]
    %v80 = vld [vmem:[#allocation6 + $0x30] sm:$0xff]
    %v81 = vld [vmem:[#allocation6 + $0x38] sm:$0xff]
    %v82 = vld [vmem:[#allocation6 + $0x40] sm:$0xff]
    %v83 = vld [vmem:[#allocation6 + $0x48] sm:$0xff]
    %v84 = vld [vmem:[#allocation6 + $0x50] sm:$0xff]
    %v85 = vld [vmem:[#allocation6 + $0x58] sm:$0xff]
    %v86 = vld [vmem:[#allocation6 + $0x60] sm:$0xff]
    %v87 = vld [vmem:[#allocation6 + $0x68] sm:$0xff]
    %v88 = vld [vmem:[#allocation6 + $0x70] sm:$0xff]
    %v89 = vld [vmem:[#allocation6 + $0x78] sm:$0xff]
    %v90 = vld [vmem:[#allocation6 + $0x80] sm:$0xff]
    %v91 = vld [vmem:[#allocation6 + $0x88] sm:$0xff]
    %v92 = vld [vmem:[#allocation6 + $0x90] sm:$0xff]
    %v93 = vld [vmem:[#allocation6 + $0x98] sm:$0xff]
    %v94 = vld [vmem:[#allocation6 + $0xa0] sm:$0xff]
    %v95 = vld [vmem:[#allocation6 + $0xa8] sm:$0xff]
    %v96 = vld [vmem:[#allocation6 + $0xb0] sm:$0xff]
    %v97 = vld [vmem:[#allocation6 + $0xb8] sm:$0xff]
    %v98 = vld [vmem:[#allocation6 + $0xc0] sm:$0xff]
    %v99 = vld [vmem:[#allocation6 + $0xc8] sm:$0xff]
    %v100 = vld [vmem:[#allocation6 + $0xd0] sm:$0xff]
    %v101 = vld [vmem:[#allocation6 + $0xd8] sm:$0xff]
    %v102 = vld [vmem:[#allocation6 + $0xe0] sm:$0xff]
    %v103 = vld [vmem:[#allocation6 + $0xe8] sm:$0xff]
    %v104 = vld [vmem:[#allocation6 + $0xf0] sm:$0xff]
    %v105 = vld [vmem:[#allocation6 + $0xf8] sm:$0xff]
    %v106 = vld [vmem:[#allocation6 + $0x100] sm:$0xff]
    %v107 = vld [vmem:[#allocation6 + $0x108] sm:$0xff]
    %v108 = vld [vmem:[#allocation6 + $0x110] sm:$0xff]
    %v109 = vld [vmem:[#allocation6 + $0x118] sm:$0xff]
    %v110 = vld [vmem:[#allocation6 + $0x120] sm:$0xff]
    %v111 = vld [vmem:[#allocation6 + $0x128] sm:$0xff]
    %v112 = vld [vmem:[#allocation6 + $0x130] sm:$0xff]
    %v113 = vld [vmem:[#allocation6 + $0x138] sm:$0xff]
    %v114 = vld [vmem:[#allocation6 + $0x140] sm:$0xff]
    %v115 = vld [vmem:[#allocation6 + $0x148] sm:$0xff]
    %v116 = vld [vmem:[#allocation6 + $0x150] sm:$0xff]
    %v117 = vld [vmem:[#allocation6 + $0x158] sm:$0xff]
    %v118 = vld [vmem:[#allocation6 + $0x160] sm:$0xff]
    %v119 = vld [vmem:[#allocation6 + $0x168] sm:$0xff]
    %v120 = vld [vmem:[#allocation6 + $0x170] sm:$0xff]
    %v121 = vld [vmem:[#allocation6 + $0x178] sm:$0xff]
    %v122 = vld [vmem:[#allocation2] sm:$0xff]
    %v123 = vld [vmem:[#allocation2 + $0x8] sm:$0xff]
    %v124 = vld [vmem:[#allocation2 + $0x10] sm:$0xff]
    %v125 = vld [vmem:[#allocation2 + $0x18] sm:$0xff]
    %v126 = vld [vmem:[#allocation2 + $0x20] sm:$0xff]
    %v127 = vld [vmem:[#allocation2 + $0x28] sm:$0xff]
    %v128 = vld [vmem:[#allocation2 + $0x30] sm:$0xff]
    %v129 = vld [vmem:[#allocation2 + $0x38] sm:$0xff]
    %v130 = vld [vmem:[#allocation2 + $0x40] sm:$0xff]
    %v131 = vld [vmem:[#allocation2 + $0x48] sm:$0xff]
    %v132 = vld [vmem:[#allocation2 + $0x50] sm:$0xff]
    %v133 = vld [vmem:[#allocation2 + $0x58] sm:$0xff]
    %134 = vmatprep.subr.mxu0 %v75
    %135 = vmatpush1.msra.mxu0 %v74
    %136 = vmatprep.subr.mxu0 %v78
    %137 = vmatpush1.msra.mxu0 %v77
    %138 = vmatprep.subr.mxu0 %v81
    %139 = vmatpush1.msra.mxu0 %v80
    %140 = vmatprep.subr.mxu0 %v84
    %141 = vmatpush1.msra.mxu0 %v83
    %142 = vmatprep.subr.mxu0 %v87
    %143 = vmatpush1.msra.mxu0 %v86
    %144 = vmatprep.subr.mxu0 %v90
    %145 = vmatpush1.msra.mxu0 %v89
    %146 = vmatprep.subr.mxu0 %v93
    %147 = vmatpush1.msra.mxu0 %v92
    %148 = vmatprep.subr.mxu0 %v96
    %149 = vmatpush1.msra.mxu0 %v95
    %150 = vmatprep.subr.mxu0 %v99
    %151 = vmatpush1.msra.mxu0 %v98
    %152 = vmatprep.subr.mxu0 %v102
    %153 = vmatpush1.msra.mxu0 %v101
    %154 = vmatprep.subr.mxu0 %v105
    %155 = vmatpush1.msra.mxu0 %v104
    %156 = vmatprep.subr.mxu0 %v108
    %157 = vmatpush1.msra.mxu0 %v107
    %158 = vmatprep.subr.mxu0 %v111
    %159 = vmatpush1.msra.mxu0 %v110
    %160 = vmatprep.subr.mxu0 %v114
    %161 = vmatpush1.msra.mxu0 %v113
    %162 = vmatprep.subr.mxu0 %v117
    %163 = vmatpush1.msra.mxu0 %v116
    %164 = vmatprep.subr.mxu0 %v120
    %165 = vmatpush1.msra.mxu0 %v119
    %166 = vmatprep.subr.mxu0 0.0
    %167 = vmatpush1.msra.mxu0 0.0
    %168 = vmatprep.subr.mxu0 0.0
    %169 = vmatpush1.msra.mxu0 0.0
    %170 = vmatprep.subr.mxu0 0.0
    %171 = vmatpush1.msra.mxu0 0.0
    %172 = vmatprep.subr.mxu0 0.0
    %173 = vmatpush1.msra.mxu0 0.0
    %174 = vmatprep.subr.mxu0 0.0
    %175 = vmatpush1.msra.mxu0 0.0
    %176 = vmatprep.subr.mxu0 0.0
    %177 = vmatpush1.msra.mxu0 0.0
    %178 = vmatprep.subr.mxu0 0.0
    %179 = vmatpush1.msra.mxu0 0.0
    %180 = vmatprep.subr.mxu0 0.0
    %181 = vmatpush1.msra.mxu0 0.0
    %182 = vmatprep.subr.mxu0 0.0
    %183 = vmatpush1.msra.mxu0 0.0
    %184 = vmatprep.subr.mxu0 0.0
    %185 = vmatpush1.msra.mxu0 0.0
    %186 = vmatprep.subr.mxu0 0.0
    %187 = vmatpush1.msra.mxu0 0.0
    %188 = vmatprep.subr.mxu0 0.0
    %189 = vmatpush1.msra.mxu0 0.0
    %190 = vmatprep.subr.mxu0 0.0
    %191 = vmatpush1.msra.mxu0 0.0
    %192 = vmatprep.subr.mxu0 0.0
    %193 = vmatpush1.msra.mxu0 0.0
    %194 = vmatprep.subr.mxu0 0.0
    %195 = vmatpush1.msra.mxu0 0.0
    %196 = vmatprep.subr.mxu0 0.0
    %197 = vmatpush1.msra.mxu0 0.0
    %198 = vmatprep.mubr.f32.mxu0 0.0
    %199 = vmatmul.mubr.f32.gmra.mrb[0].mxu0 %v70
    %v200 = vpop.f32.mrb[0].mxu0
    %v201 = vadd.f32 0.0, %v200
    %v202 = vpop.f32.mrb[0].mxu0
    %v203 = vadd.f32 0.0, %v202
    %204 = vmatprep.mubr.f32.mxu0 0.0
    %205 = vmatmul.mubr.f32.gmra.mrb[0].mxu0 %v71
    %v206 = vpop.f32.mrb[0].mxu0
    %v207 = vadd.f32 0.0, %v206
    %v208 = vpop.f32.mrb[0].mxu0
    %v209 = vadd.f32 0.0, %v208
    %210 = vmatprep.mubr.f32.mxu0 0.0
    %211 = vmatmul.mubr.f32.gmra.mrb[0].mxu0 %v72
    %v212 = vpop.f32.mrb[0].mxu0
    %v213 = vadd.f32 0.0, %v212
    %v214 = vpop.f32.mrb[0].mxu0
    %v215 = vadd.f32 0.0, %v214
    %216 = vmatprep.mubr.f32.mxu0 0.0
    %217 = vmatmul.mubr.f32.gmra.mrb[0].mxu0 %v73
    %v218 = vpop.f32.mrb[0].mxu0
    %v219 = vadd.f32 0.0, %v218
    %v220 = vpop.f32.mrb[0].mxu0
    %v221 = vadd.f32 0.0, %v220
    %222 = vdwg.mxu0
    %223 = vmatprep.subr.mxu0 0.0
    %224 = vmatpush1.msra.mxu0 %v76
    %225 = vmatprep.subr.mxu0 0.0
    %226 = vmatpush1.msra.mxu0 %v79
    %227 = vmatprep.subr.mxu0 0.0
    %228 = vmatpush1.msra.mxu0 %v82
    %229 = vmatprep.subr.mxu0 0.0
    %230 = vmatpush1.msra.mxu0 %v85
    %231 = vmatprep.subr.mxu0 0.0
    %232 = vmatpush1.msra.mxu0 %v88
    %233 = vmatprep.subr.mxu0 0.0
    %234 = vmatpush1.msra.mxu0 %v91
    %235 = vmatprep.subr.mxu0 0.0
    %236 = vmatpush1.msra.mxu0 %v94
    %237 = vmatprep.subr.mxu0 0.0
    %238 = vmatpush1.msra.mxu0 %v97
    %239 = vmatprep.subr.mxu0 0.0
    %240 = vmatpush1.msra.mxu0 %v100
    %241 = vmatprep.subr.mxu0 0.0
    %242 = vmatpush1.msra.mxu0 %v103
    %243 = vmatprep.subr.mxu0 0.0
    %244 = vmatpush1.msra.mxu0 %v106
    %245 = vmatprep.subr.mxu0 0.0
    %246 = vmatpush1.msra.mxu0 %v109
    %247 = vmatprep.subr.mxu0 0.0
    %248 = vmatpush1.msra.mxu0 %v112
    %249 = vmatprep.subr.mxu0 0.0
    %250 = vmatpush1.msra.mxu0 %v115
    %251 = vmatprep.subr.mxu0 0.0
    %252 = vmatpush1.msra.mxu0 %v118
    %253 = vmatprep.subr.mxu0 0.0
    %254 = vmatpush1.msra.mxu0 %v121
    %255 = vmatprep.subr.mxu0 0.0
    %256 = vmatpush1.msra.mxu0 0.0
    %257 = vmatprep.subr.mxu0 0.0
    %258 = vmatpush1.msra.mxu0 0.0
    %259 = vmatprep.subr.mxu0 0.0
    %260 = vmatpush1.msra.mxu0 0.0
    %261 = vmatprep.subr.mxu0 0.0
    %262 = vmatpush1.msra.mxu0 0.0
    %263 = vmatprep.subr.mxu0 0.0
    %264 = vmatpush1.msra.mxu0 0.0
    %265 = vmatprep.subr.mxu0 0.0
    %266 = vmatpush1.msra.mxu0 0.0
    %267 = vmatprep.subr.mxu0 0.0
    %268 = vmatpush1.msra.mxu0 0.0
    %269 = vmatprep.subr.mxu0 0.0
    %270 = vmatpush1.msra.mxu0 0.0
    %271 = vmatprep.subr.mxu0 0.0
    %272 = vmatpush1.msra.mxu0 0.0
    %273 = vmatprep.subr.mxu0 0.0
    %274 = vmatpush1.msra.mxu0 0.0
    %275 = vmatprep.subr.mxu0 0.0
    %276 = vmatpush1.msra.mxu0 0.0
    %277 = vmatprep.subr.mxu0 0.0
    %278 = vmatpush1.msra.mxu0 0.0
    %279 = vmatprep.subr.mxu0 0.0
    %280 = vmatpush1.msra.mxu0 0.0
    %281 = vmatprep.subr.mxu0 0.0
    %282 = vmatpush1.msra.mxu0 0.0
    %283 = vmatprep.subr.mxu0 0.0
    %284 = vmatpush1.msra.mxu0 0.0
    %285 = vmatprep.subr.mxu0 0.0
    %286 = vmatpush1.msra.mxu0 0.0
    %287 = vmatprep.mubr.f32.mxu0 0.0
    %288 = vmatmul.mubr.f32.gmra.mrb[0].mxu0 %v70
    %v289 = vpop.f32.mrb[0].mxu0
    %v290 = vadd.f32 0.0, %v289
    %v291 = vpop.f32.mrb[0].mxu0
    %292 = vmatprep.mubr.f32.mxu0 0.0
    %293 = vmatmul.mubr.f32.gmra.mrb[0].mxu0 %v71
    %v294 = vpop.f32.mrb[0].mxu0
    %v295 = vadd.f32 0.0, %v294
    %v296 = vpop.f32.mrb[0].mxu0
    %297 = vmatprep.mubr.f32.mxu0 0.0
    %298 = vmatmul.mubr.f32.gmra.mrb[0].mxu0 %v72
    %v299 = vpop.f32.mrb[0].mxu0
    %v300 = vadd.f32 0.0, %v299
    %v301 = vpop.f32.mrb[0].mxu0
    %302 = vmatprep.mubr.f32.mxu0 0.0
    %303 = vmatmul.mubr.f32.gmra.mrb[0].mxu0 %v73
    %v304 = vpop.f32.mrb[0].mxu0
    %v305 = vadd.f32 0.0, %v304
    %v306 = vpop.f32.mrb[0].mxu0
    %307 = vdwg.mxu0
    %v308 = vadd.f32 %v122, %v201
    %v309 = vadd.f32 %v123, %v203
    %v310 = vadd.f32 %v124, %v290
    %v311 = vadd.f32 %v125, %v207
    %v312 = vadd.f32 %v126, %v209
    %v313 = vadd.f32 %v127, %v295
    %v314 = vadd.f32 %v128, %v213
    %v315 = vadd.f32 %v129, %v215
    %v316 = vadd.f32 %v130, %v300
    %v317 = vadd.f32 %v131, %v219
    %v318 = vadd.f32 %v132, %v221
    %v319 = vadd.f32 %v133, %v305
    %320 = vst [vmem:[#allocation2] sm:$0xff] %v308
    %321 = vst [vmem:[#allocation2 + $0x8] sm:$0xff] %v309
    %322 = vst [vmem:[#allocation2 + $0x10] sm:$0xff] %v310
    %323 = vst [vmem:[#allocation2 + $0x18] sm:$0xff] %v311
    %324 = vst [vmem:[#allocation2 + $0x20] sm:$0xff] %v312
    %325 = vst [vmem:[#allocation2 + $0x28] sm:$0xff] %v313
    %326 = vst [vmem:[#allocation2 + $0x30] sm:$0xff] %v314
    %327 = vst [vmem:[#allocation2 + $0x38] sm:$0xff] %v315
    %328 = vst [vmem:[#allocation2 + $0x40] sm:$0xff] %v316
    %329 = vst [vmem:[#allocation2 + $0x48] sm:$0xff] %v317
    %330 = vst [vmem:[#allocation2 + $0x50] sm:$0xff] %v318
    %331 = vst [vmem:[#allocation2 + $0x58] sm:$0xff] %v319
    // Predicated region
    $region30: #{vit_model_forward.19} parent=1 // pred_check
      %p332 = pneg %p54
    $region31: #{vit_model_forward.19} parent=1 // pred_check_branch
      %334 = sbr.rel (%p332) target = $region33
    $region32: #{vit_model_forward.19} parent=1 // pred_region
      %v335 = vld [vmem:[#allocation2] sm:$0xff]
      %v336 = vld [vmem:[#allocation2 + $0x8] sm:$0xff]
      %v337 = vld [vmem:[#allocation2 + $0x10] sm:$0xff]
      %v338 = vld [vmem:[#allocation2 + $0x18] sm:$0xff]
      %v339 = vld [vmem:[#allocation2 + $0x20] sm:$0xff]
      %v340 = vld [vmem:[#allocation2 + $0x28] sm:$0xff]
      %v341 = vld [vmem:[#allocation2 + $0x30] sm:$0xff]
      %v342 = vld [vmem:[#allocation2 + $0x38] sm:$0xff]
      %v343 = vld [vmem:[#allocation2 + $0x40] sm:$0xff]
      %v344 = vld [vmem:[#allocation2 + $0x48] sm:$0xff]
      %v345 = vld [vmem:[#allocation2 + $0x50] sm:$0xff]
      %v346 = vld [vmem:[#allocation2 + $0x58] sm:$0xff]
      %v347 = vld [vmem:[#allocation8] sm:$0x7]
      %v349 = vlaneseq
      %v350 = vshrl.u32 %v349, 7
      %v351 = vsub.s32 0, %v350
      %v352 = vrot.slane %v347, %v351
      %v353 = vlaneseq
      %v354 = vshrl.u32 %v353, 7
      %v355 = vsub.s32 1, %v354
      %v356 = vrot.slane %v347, %v355
      %v357 = vlaneseq
      %v358 = vshrl.u32 %v357, 7
      %v359 = vsub.s32 2, %v358
      %v360 = vrot.slane %v347, %v359
      %v364 = vadd.f32 %v335, %v352
      %v365 = vadd.f32 %v336, %v356
      %v366 = vadd.f32 %v337, %v360
      %v367 = vadd.f32 %v338, %v352
      %v368 = vadd.f32 %v339, %v356
      %v369 = vadd.f32 %v340, %v360
      %v370 = vadd.f32 %v341, %v352
      %v371 = vadd.f32 %v342, %v356
      %v372 = vadd.f32 %v343, %v360
      %v373 = vadd.f32 %v344, %v352
      %v374 = vadd.f32 %v345, %v356
      %v375 = vadd.f32 %v346, %v360
      %376 = vst [vmem:[#allocation9] sm:$0xff] %v364
      %377 = vst [vmem:[#allocation9 + $0x8] sm:$0xff] %v365
      %378 = vst [vmem:[#allocation9 + $0x10] sm:$0xff] %v366
      %379 = vst [vmem:[#allocation9 + $0x18] sm:$0xff] %v367
      %380 = vst [vmem:[#allocation9 + $0x20] sm:$0xff] %v368
      %381 = vst [vmem:[#allocation9 + $0x28] sm:$0xff] %v369
      %382 = vst [vmem:[#allocation9 + $0x30] sm:$0xff] %v370
      %383 = vst [vmem:[#allocation9 + $0x38] sm:$0xff] %v371
      %384 = vst [vmem:[#allocation9 + $0x40] sm:$0xff] %v372
      %385 = vst [vmem:[#allocation9 + $0x48] sm:$0xff] %v373
      %386 = vst [vmem:[#allocation9 + $0x50] sm:$0xff] %v374
      %387 = vst [vmem:[#allocation9 + $0x58] sm:$0xff] %v375
    $region33: #{vit_model_forward.19} parent=1 // pred_fallthru
      _
    // Predicated region
    $region34: #{vit_model_forward.19} parent=1 // pred_check
      _
    $region35: #{vit_model_forward.19} parent=1 // pred_check_branch
      %389 = sbr.rel (0) target = $region37
    $region36: #{vit_model_forward.19} parent=1 // pred_region
      %s391 = ssub.s32 1536, 1536
      %392 = vsyncadd [#allocation5], %s391
      %s393 = sshll.u32 [#allocation9], 4
      %s394 = int_to_ptr.vmem [resolvable:$true] %s393
      %399 = dma.vmem_to_hbm [thread:$0]  %s394, 1536, %s3, [#allocation5], 384, 384, 24
    $region37: #{vit_model_forward.19} parent=1 // pred_fallthru
      _
    // Predicated region
    $region38: #{vit_model_forward.19} parent=1 // pred_check
      _
    $region39: #{vit_model_forward.19} parent=1 // pred_check_branch
      %401 = sbr.rel (0) target = $region41
    $region40: #{vit_model_forward.19} parent=1 // pred_region
      %402 = dma.done [#allocation5], 1536
    $region41: #{vit_model_forward.19} parent=1 // pred_fallthru
      _
    %403 = vsyncpa [#allocation4], 1
    %404 = vsyncpa [#allocation7], 1
    %405 = vsyncpa [#allocation5], 1

// kernel: vit_model_forward.20
$region0: #{vit_model_forward.20}
  #allocation0 [shape = 'u32[]', space=smem, size = 0x4, offset = 0x4, fixed_abs, tag = 'smem constant byte address 0x4 - core index']
  #allocation1 [shape = 'u32[144,128]{1,0:T(1,128)}', space=vmem, size = 0x12000, scoped, tag = 'internal scratch']
  %s0 = inlined_call_operand.hbm [shape: f32[2,16,384], index: 0, kind: input, shape index: {}]
  %s1 = inlined_call_operand.hbm [shape: f32[2,16,128], index: 1, kind: output, shape index: {}]
  %s2 = sld [smem:[#allocation0]]
  $region41: #{vit_model_forward.20} parent=0
    _
  %s4 = ssub.s32 1, %s2
  %s5 = scalar_select 0, %s4, %s2
  $region1: #{vit_model_forward.20} parent=0
    #allocation2 [shape = 'u8[49152]{0}', space=vmem, size = 0xc000, scoped, tag = 'input window, operand 0']
    #allocation3 [shape = 's32[2]{0}', space=sflag, size = 0x8, scoped, tag = 'scoped memory for vit_model_forward.20']
    #allocation4 [shape = 's32[2]{0}', space=sflag, size = 0x8, scoped, tag = 'scoped memory for vit_model_forward.20']
    #allocation5 [shape = 'u8[16384]{0}', space=vmem, size = 0x4000, scoped, tag = 'output window, operand 0']
    %6 = vsyncpa [#allocation3], 0
    %s7 = scalar_lea.sflag [#allocation3], 1
    %8 = vsyncpa %s7, 0
    %9 = vsyncpa [#allocation4], 0
    %s10 = scalar_lea.sflag [#allocation4], 1
    %11 = vsyncpa %s10, 0
    loop: start=0, step=1, limit=4
    $region2: #{vit_model_forward.20} parent=1 // loop_pre_header
      _
    $region3: #{vit_model_forward.20} parent=1 // loop_header
      %s13 = sphi 0, %s17
      %p14 = scmp.ge.s32.totalorder %s13, 4
      %s23 = sphi 0, %s25
      %s26 = sphi 0, %s23
      %s27 = sphi 0, %s26
      %s43 = sphi 0, %s27
      %s49 = sphi 0, %s51
      %s52 = sphi 0, %s49
      %s53 = sphi 0, %s52
      %s69 = sphi 0, %s53
    $region4: #{vit_model_forward.20} parent=1 // loop_header_branch
      %16 = sbr.rel (%p14) target = $region8
    $region5: #{vit_model_forward.20} parent=1 // loop_body
      %s18 = ssub.s32 %s13, 1
      %s19 = ssub.s32 %s13, 2
      %s20 = sadd.s32 %s13, 1
      %s21 = ssub.s32 %s13, %s20
      %p22 = scmp.eq.s32.totalorder %s21, 0
      %s24 = sadd.s32 %s23, 1
      %s25 = scalar_select %p22, %s23, %s24
      %p28 = pneg %p22
      %p29 = scmp.eq.s32.totalorder %s13, 1
      %p30 = por %p28, %p29
      %p31 = scmp.ne.s32.totalorder %s23, %s26
      %p32 = scmp.eq.s32.totalorder %s13, 0
      %p33 = por %p31, %p32
      %p34 = scmp.ne.s32.totalorder %s23, %s26
      %p35 = scmp.eq.s32.totalorder %s18, 1
      %p36 = por %p34, %p35
      %p37 = scmp.ne.s32.totalorder %s26, %s27
      %p38 = scmp.eq.s32.totalorder %s18, 0
      %p39 = por %p37, %p38
      %p40 = scmp.ne.s32.totalorder %s26, %s27
      %p41 = scmp.eq.s32.totalorder %s19, 1
      %p42 = por %p40, %p41
      %p44 = scmp.ne.s32.totalorder %s27, %s43
      %p45 = scmp.eq.s32.totalorder %s19, 0
      %p46 = por %p44, %p45
      %s47 = ssub.s32 %s13, %s20
      %p48 = scmp.eq.s32.totalorder %s47, 0
      %s50 = sadd.s32 %s49, 1
      %s51 = scalar_select %p48, %s49, %s50
      %p54 = pneg %p48
      %p55 = scmp.eq.s32.totalorder %s13, 1
      %p56 = por %p54, %p55
      %p57 = scmp.ne.s32.totalorder %s49, %s52
      %p58 = scmp.eq.s32.totalorder %s13, 0
      %p59 = por %p57, %p58
      %p60 = scmp.ne.s32.totalorder %s49, %s52
      %p61 = scmp.eq.s32.totalorder %s18, 1
      %p62 = por %p60, %p61
      %p63 = scmp.ne.s32.totalorder %s52, %s53
      %p64 = scmp.eq.s32.totalorder %s18, 0
      %p65 = por %p63, %p64
      %p66 = scmp.ne.s32.totalorder %s52, %s53
      %p67 = scmp.eq.s32.totalorder %s19, 1
      %p68 = por %p66, %p67
      %p70 = scmp.ne.s32.totalorder %s53, %s69
      %p71 = scmp.eq.s32.totalorder %s19, 0
      %p72 = por %p70, %p71
      %p73 = scmp.le.s32.totalorder 1, %s13
      %p74 = scmp.lt.s32.totalorder %s13, 3
      %p75 = pnand %p73, %p74
      %p76 = pneg %p75
      // Predicated region
      $region9: #{vit_model_forward.20} parent=5 // pred_check
        _
      $region10: #{vit_model_forward.20} parent=5 // pred_check_branch
        %78 = sbr.rel (%p75) target = $region12
      $region11: #{vit_model_forward.20} parent=5 // pred_region
        %s79 = ssub.s32 %s13, 1
      $region12: #{vit_model_forward.20} parent=5 // pred_fallthru
        _
      %p80 = scmp.lt.s32.totalorder %s13, 2
      // Predicated region
      $region13: #{vit_model_forward.20} parent=5 // pred_check
        %p81 = pneg %p80
      $region14: #{vit_model_forward.20} parent=5 // pred_check_branch
        %83 = sbr.rel (%p81) target = $region16
      $region15: #{vit_model_forward.20} parent=5 // pred_region
        // Predicated region
        $region17: #{vit_model_forward.20} parent=15 // pred_check
          %p84 = pneg %p33
        $region18: #{vit_model_forward.20} parent=15 // pred_check_branch
          %86 = sbr.rel (%p84) target = $region20
        $region19: #{vit_model_forward.20} parent=15 // pred_region
          %s87 = sand.u32 %s23, 1
          %s88 = scalar_lea.sflag [#allocation3], %s87
          %s89 = sand.u32 %s23, 1
          %s90 = smul.addr %s89, 48
          %s91 = scalar_lea.vmem [#allocation2], %s90
          %s93 = ssub.s32 768, 768
          %94 = vsyncadd %s88, %s93
          %s95 = smul.addr %s13, 6
          %s96 = smul.addr %s95, 128
          %s97 = scalar_lea.hbm %s0, %s96
          %s98 = sshll.u32 %s91, 4
          %s99 = int_to_ptr.vmem [resolvable:$true] %s98
          %104 = dma.hbm_to_vmem [thread:$0]  %s97, 768, %s99, %s88, 384, 384, 24
        $region20: #{vit_model_forward.20} parent=15 // pred_fallthru
          _
      $region16: #{vit_model_forward.20} parent=5 // pred_fallthru
        _
      %p105 = scmp.le.s32.totalorder 1, %s13
      %p106 = scmp.lt.s32.totalorder %s13, 3
      %p107 = pnand %p105, %p106
      %p108 = pneg %p107
      // Predicated region
      $region21: #{vit_model_forward.20} parent=5 // pred_check
        _
      $region22: #{vit_model_forward.20} parent=5 // pred_check_branch
        %110 = sbr.rel (%p107) target = $region24
      $region23: #{vit_model_forward.20} parent=5 // pred_region
        %s111 = ssub.s32 %s13, 1
        %s112 = sand.u32 %s26, 1
        %s113 = scalar_lea.sflag [#allocation3], %s112
        %s114 = sand.u32 %s26, 1
        %s115 = smul.addr %s114, 48
        %s116 = scalar_lea.vmem [#allocation2], %s115
        // Predicated region
        $region25: #{vit_model_forward.20} parent=23 // pred_check
          %p117 = pneg %p39
        $region26: #{vit_model_forward.20} parent=23 // pred_check_branch
          %119 = sbr.rel (%p117) target = $region28
        $region27: #{vit_model_forward.20} parent=23 // pred_region
          %120 = dma.done %s113, 768
        $region28: #{vit_model_forward.20} parent=23 // pred_fallthru
          _
        %s121 = sand.u32 %s26, 1
        %s122 = scalar_lea.sflag [#allocation3], %s121
        %s123 = sand.u32 %s26, 1
        %s124 = smul.addr %s123, 48
        %s125 = scalar_lea.vmem [#allocation2], %s124
        %p126 = pneg %p39
        %p127 = pneg %p36
        %p128 = pneg %p65
        %p129 = pneg %p62
        %s130 = sand.u32 %s52, 1
        %s131 = scalar_lea.sflag [#allocation4], %s130
        %s132 = sand.u32 %s52, 1
        %s133 = smul.addr %s132, 16
        %s134 = scalar_lea.vmem [#allocation5], %s133
        %v135 = vld [vmem:[%s116] sm:$0xff]
        %v136 = vld [vmem:[%s116 + $0x8] sm:$0xff]
        %v137 = vld [vmem:[%s116 + $0x10] sm:$0xff]
        %v138 = vld [vmem:[%s116 + $0x18] sm:$0xff]
        %v139 = vld [vmem:[%s116 + $0x20] sm:$0xff]
        %v140 = vld [vmem:[%s116 + $0x28] sm:$0xff]
        %v141 = vmul.f32 %v135, 0.17677669
        %v142 = vmul.f32 %v138, 0.17677669
        %vm143 = vcmask 261120
        %v145 = vsel %vm143, %v141, 0
        %v148 = vsel %vm143, %v142, 0
        %v151 = vsel %vm143, %v136, 0
        %v154 = vsel %vm143, %v139, 0
        %156 = vmatprep.subr.mxu0 0.0
        %157 = vmatpush1.xpose.msra.mxu0 %v151
        %158 = vmatprep.subr.mxu0 0.0
        %159 = vmatpush1.xpose.msra.mxu0 %v154
        %160 = vmatprep.subr.mxu0 0.0
        %161 = vmatpush1.xpose.msra.mxu0 0.0
        %162 = vmatprep.subr.mxu0 0.0
        %163 = vmatpush1.xpose.msra.mxu0 0.0
        %164 = vmatprep.subr.mxu0 0.0
        %165 = vmatpush1.xpose.msra.mxu0 0.0
        %166 = vmatprep.subr.mxu0 0.0
        %167 = vmatpush1.xpose.msra.mxu0 0.0
        %168 = vmatprep.subr.mxu0 0.0
        %169 = vmatpush1.xpose.msra.mxu0 0.0
        %170 = vmatprep.subr.mxu0 0.0
        %171 = vmatpush1.xpose.msra.mxu0 0.0
        %172 = vmatprep.subr.mxu0 0.0
        %173 = vmatpush1.xpose.msra.mxu0 0.0
        %174 = vmatprep.subr.mxu0 0.0
        %175 = vmatpush1.xpose.msra.mxu0 0.0
        %176 = vmatprep.subr.mxu0 0.0
        %177 = vmatpush1.xpose.msra.mxu0 0.0
        %178 = vmatprep.subr.mxu0 0.0
        %179 = vmatpush1.xpose.msra.mxu0 0.0
        %180 = vmatprep.subr.mxu0 0.0
        %181 = vmatpush1.xpose.msra.mxu0 0.0
        %182 = vmatprep.subr.mxu0 0.0
        %183 = vmatpush1.xpose.msra.mxu0 0.0
        %184 = vmatprep.subr.mxu0 0.0
        %185 = vmatpush1.xpose.msra.mxu0 0.0
        %186 = vmatprep.subr.mxu0 0.0
        %187 = vmatpush1.xpose.msra.mxu0 0.0
        %188 = vmatprep.subr.mxu0 0.0
        %189 = vmatpush1.xpose.msra.mxu0 0.0
        %190 = vmatprep.subr.mxu0 0.0
        %191 = vmatpush1.xpose.msra.mxu0 0.0
        %192 = vmatprep.subr.mxu0 0.0
        %193 = vmatpush1.xpose.msra.mxu0 0.0
        %194 = vmatprep.subr.mxu0 0.0
        %195 = vmatpush1.xpose.msra.mxu0 0.0
        %196 = vmatprep.subr.mxu0 0.0
        %197 = vmatpush1.xpose.msra.mxu0 0.0
        %198 = vmatprep.subr.mxu0 0.0
        %199 = vmatpush1.xpose.msra.mxu0 0.0
        %200 = vmatprep.subr.mxu0 0.0
        %201 = vmatpush1.xpose.msra.mxu0 0.0
        %202 = vmatprep.subr.mxu0 0.0
        %203 = vmatpush1.xpose.msra.mxu0 0.0
        %204 = vmatprep.subr.mxu0 0.0
        %205 = vmatpush1.xpose.msra.mxu0 0.0
        %206 = vmatprep.subr.mxu0 0.0
        %207 = vmatpush1.xpose.msra.mxu0 0.0
        %208 = vmatprep.subr.mxu0 0.0
        %209 = vmatpush1.xpose.msra.mxu0 0.0
        %210 = vmatprep.subr.mxu0 0.0
        %211 = vmatpush1.xpose.msra.mxu0 0.0
        %212 = vmatprep.subr.mxu0 0.0
        %213 = vmatpush1.xpose.msra.mxu0 0.0
        %214 = vmatprep.subr.mxu0 0.0
        %215 = vmatpush1.xpose.msra.mxu0 0.0
        %216 = vmatprep.subr.mxu0 0.0
        %217 = vmatpush1.xpose.msra.mxu0 0.0
        %218 = vmatprep.subr.mxu0 0.0
        %219 = vmatpush1.xpose.msra.mxu0 0.0
        %220 = vmatprep.mubr.f32.mxu0 0.0
        %221 = vmatmul.mubr.f32.gmra.mrb[0].mxu0 %v145
        %v222 = vpop.f32.mrb[0].mxu0
        %v223 = vadd.f32 0.0, %v222
        %v224 = vpop.f32.mrb[0].mxu0
        %225 = vmatprep.mubr.f32.mxu0 0.0
        %226 = vmatmul.mubr.f32.gmra.mrb[0].mxu0 %v148
        %v227 = vpop.f32.mrb[0].mxu0
        %v228 = vadd.f32 0.0, %v227
        %v229 = vpop.f32.mrb[0].mxu0
        %230 = vdwg.mxu0
        %vm231 = vcmask 130048
        %v232 = vsel %vm231, %v223, -inf
        %233 = vmax.xlane.f32.xlu0 %v232
        %v234 = vpop.xlane.xlu0 %233
        %v235 = vsel %vm231, %v228, -inf
        %236 = vmax.xlane.f32.xlu0 %v235
        %v237 = vpop.xlane.xlu0 %236
        %v238 = vsub.f32 %v223, %v234
        %v239 = vsub.f32 %v228, %v237
        %v240 = vmul.f32 %v238, 1.442695
        %v241 = vpow.pop %v240
        %v242 = vmul.f32 %v239, 1.442695
        %v243 = vpow.pop %v242
        %v244 = vsel %vm231, %v241, 0.0
        %245 = vadd.xlane.f32.xlu0 %v244
        %v246 = vpop.xlane.xlu0 %245
        %v247 = vsel %vm231, %v243, 0.0
        %248 = vadd.xlane.f32.xlu0 %v247
        %v249 = vpop.xlane.xlu0 %248
        %v250 = vrcp.pop %v246
        %v251 = vrcp.pop %v249
        %v252 = vmul.f32 %v241, %v250
        %v253 = vmul.f32 %v243, %v251
        %v255 = vsel %vm231, %v252, 0
        %v258 = vsel %vm231, %v253, 0
        %260 = vmatprep.subr.mxu0 0.0
        %261 = vmatpush1.msra.mxu0 %v137
        %262 = vmatprep.subr.mxu0 0.0
        %263 = vmatpush1.msra.mxu0 %v140
        %264 = vmatprep.subr.mxu0 0.0
        %265 = vmatpush1.msra.mxu0 0.0
        %266 = vmatprep.subr.mxu0 0.0
        %267 = vmatpush1.msra.mxu0 0.0
        %268 = vmatprep.subr.mxu0 0.0
        %269 = vmatpush1.msra.mxu0 0.0
        %270 = vmatprep.subr.mxu0 0.0
        %271 = vmatpush1.msra.mxu0 0.0
        %272 = vmatprep.subr.mxu0 0.0
        %273 = vmatpush1.msra.mxu0 0.0
        %274 = vmatprep.subr.mxu0 0.0
        %275 = vmatpush1.msra.mxu0 0.0
        %276 = vmatprep.subr.mxu0 0.0
        %277 = vmatpush1.msra.mxu0 0.0
        %278 = vmatprep.subr.mxu0 0.0
        %279 = vmatpush1.msra.mxu0 0.0
        %280 = vmatprep.subr.mxu0 0.0
        %281 = vmatpush1.msra.mxu0 0.0
        %282 = vmatprep.subr.mxu0 0.0
        %283 = vmatpush1.msra.mxu0 0.0
        %284 = vmatprep.subr.mxu0 0.0
        %285 = vmatpush1.msra.mxu0 0.0
        %286 = vmatprep.subr.mxu0 0.0
        %287 = vmatpush1.msra.mxu0 0.0
        %288 = vmatprep.subr.mxu0 0.0
        %289 = vmatpush1.msra.mxu0 0.0
        %290 = vmatprep.subr.mxu0 0.0
        %291 = vmatpush1.msra.mxu0 0.0
        %292 = vmatprep.subr.mxu0 0.0
        %293 = vmatpush1.msra.mxu0 0.0
        %294 = vmatprep.subr.mxu0 0.0
        %295 = vmatpush1.msra.mxu0 0.0
        %296 = vmatprep.subr.mxu0 0.0
        %297 = vmatpush1.msra.mxu0 0.0
        %298 = vmatprep.subr.mxu0 0.0
        %299 = vmatpush1.msra.mxu0 0.0
        %300 = vmatprep.subr.mxu0 0.0
        %301 = vmatpush1.msra.mxu0 0.0
        %302 = vmatprep.subr.mxu0 0.0
        %303 = vmatpush1.msra.mxu0 0.0
        %304 = vmatprep.subr.mxu0 0.0
        %305 = vmatpush1.msra.mxu0 0.0
        %306 = vmatprep.subr.mxu0 0.0
        %307 = vmatpush1.msra.mxu0 0.0
        %308 = vmatprep.subr.mxu0 0.0
        %309 = vmatpush1.msra.mxu0 0.0
        %310 = vmatprep.subr.mxu0 0.0
        %311 = vmatpush1.msra.mxu0 0.0
        %312 = vmatprep.subr.mxu0 0.0
        %313 = vmatpush1.msra.mxu0 0.0
        %314 = vmatprep.subr.mxu0 0.0
        %315 = vmatpush1.msra.mxu0 0.0
        %316 = vmatprep.subr.mxu0 0.0
        %317 = vmatpush1.msra.mxu0 0.0
        %318 = vmatprep.subr.mxu0 0.0
        %319 = vmatpush1.msra.mxu0 0.0
        %320 = vmatprep.subr.mxu0 0.0
        %321 = vmatpush1.msra.mxu0 0.0
        %322 = vmatprep.subr.mxu0 0.0
        %323 = vmatpush1.msra.mxu0 0.0
        %324 = vmatprep.mubr.f32.mxu0 0.0
        %325 = vmatmul.mubr.f32.gmra.mrb[0].mxu0 %v255
        %v326 = vpop.f32.mrb[0].mxu0
        %v327 = vadd.f32 0.0, %v326
        %v328 = vpop.f32.mrb[0].mxu0
        %329 = vmatprep.mubr.f32.mxu0 0.0
        %330 = vmatmul.mubr.f32.gmra.mrb[0].mxu0 %v258
        %v331 = vpop.f32.mrb[0].mxu0
        %v332 = vadd.f32 0.0, %v331
        %v333 = vpop.f32.mrb[0].mxu0
        %334 = vdwg.mxu0
        %335 = vrot.lane.b32.xlu0 %v141, 96
        %v336 = vpop.permute.xlu0 %335
        %337 = vrot.lane.b32.xlu0 %v142, 96
        %v338 = vpop.permute.xlu0 %337
        %339 = vrot.lane.b32.xlu0 %v136, 96
        %v340 = vpop.permute.xlu0 %339
        %341 = vrot.lane.b32.xlu0 %v139, 96
        %v342 = vpop.permute.xlu0 %341
        %v343 = vsel %vm143, %v336, 0
        %v345 = vsel %vm143, %v338, 0
        %v347 = vsel %vm143, %v340, 0
        %v349 = vsel %vm143, %v342, 0
        %351 = vmatprep.subr.mxu0 0.0
        %352 = vmatpush1.xpose.msra.mxu0 %v347
        %353 = vmatprep.subr.mxu0 0.0
        %354 = vmatpush1.xpose.msra.mxu0 %v349
        %355 = vmatprep.subr.mxu0 0.0
        %356 = vmatpush1.xpose.msra.mxu0 0.0
        %357 = vmatprep.subr.mxu0 0.0
        %358 = vmatpush1.xpose.msra.mxu0 0.0
        %359 = vmatprep.subr.mxu0 0.0
        %360 = vmatpush1.xpose.msra.mxu0 0.0
        %361 = vmatprep.subr.mxu0 0.0
        %362 = vmatpush1.xpose.msra.mxu0 0.0
        %363 = vmatprep.subr.mxu0 0.0
        %364 = vmatpush1.xpose.msra.mxu0 0.0
        %365 = vmatprep.subr.mxu0 0.0
        %366 = vmatpush1.xpose.msra.mxu0 0.0
        %367 = vmatprep.subr.mxu0 0.0
        %368 = vmatpush1.xpose.msra.mxu0 0.0
        %369 = vmatprep.subr.mxu0 0.0
        %370 = vmatpush1.xpose.msra.mxu0 0.0
        %371 = vmatprep.subr.mxu0 0.0
        %372 = vmatpush1.xpose.msra.mxu0 0.0
        %373 = vmatprep.subr.mxu0 0.0
        %374 = vmatpush1.xpose.msra.mxu0 0.0
        %375 = vmatprep.subr.mxu0 0.0
        %376 = vmatpush1.xpose.msra.mxu0 0.0
        %377 = vmatprep.subr.mxu0 0.0
        %378 = vmatpush1.xpose.msra.mxu0 0.0
        %379 = vmatprep.subr.mxu0 0.0
        %380 = vmatpush1.xpose.msra.mxu0 0.0
        %381 = vmatprep.subr.mxu0 0.0
        %382 = vmatpush1.xpose.msra.mxu0 0.0
        %383 = vmatprep.subr.mxu0 0.0
        %384 = vmatpush1.xpose.msra.mxu0 0.0
        %385 = vmatprep.subr.mxu0 0.0
        %386 = vmatpush1.xpose.msra.mxu0 0.0
        %387 = vmatprep.subr.mxu0 0.0
        %388 = vmatpush1.xpose.msra.mxu0 0.0
        %389 = vmatprep.subr.mxu0 0.0
        %390 = vmatpush1.xpose.msra.mxu0 0.0
        %391 = vmatprep.subr.mxu0 0.0
        %392 = vmatpush1.xpose.msra.mxu0 0.0
        %393 = vmatprep.subr.mxu0 0.0
        %394 = vmatpush1.xpose.msra.mxu0 0.0
        %395 = vmatprep.subr.mxu0 0.0
        %396 = vmatpush1.xpose.msra.mxu0 0.0
        %397 = vmatprep.subr.mxu0 0.0
        %398 = vmatpush1.xpose.msra.mxu0 0.0
        %399 = vmatprep.subr.mxu0 0.0
        %400 = vmatpush1.xpose.msra.mxu0 0.0
        %401 = vmatprep.subr.mxu0 0.0
        %402 = vmatpush1.xpose.msra.mxu0 0.0
        %403 = vmatprep.subr.mxu0 0.0
        %404 = vmatpush1.xpose.msra.mxu0 0.0
        %405 = vmatprep.subr.mxu0 0.0
        %406 = vmatpush1.xpose.msra.mxu0 0.0
        %407 = vmatprep.subr.mxu0 0.0
        %408 = vmatpush1.xpose.msra.mxu0 0.0
        %409 = vmatprep.subr.mxu0 0.0
        %410 = vmatpush1.xpose.msra.mxu0 0.0
        %411 = vmatprep.subr.mxu0 0.0
        %412 = vmatpush1.xpose.msra.mxu0 0.0
        %413 = vmatprep.subr.mxu0 0.0
        %414 = vmatpush1.xpose.msra.mxu0 0.0
        %415 = vmatprep.mubr.f32.mxu0 0.0
        %416 = vmatmul.mubr.f32.gmra.mrb[0].mxu0 %v343
        %v417 = vpop.f32.mrb[0].mxu0
        %v418 = vadd.f32 0.0, %v417
        %v419 = vpop.f32.mrb[0].mxu0
        %420 = vmatprep.mubr.f32.mxu0 0.0
        %421 = vmatmul.mubr.f32.gmra.mrb[0].mxu0 %v345
        %v422 = vpop.f32.mrb[0].mxu0
        %v423 = vadd.f32 0.0, %v422
        %v424 = vpop.f32.mrb[0].mxu0
        %425 = vdwg.mxu0
        %v426 = vsel %vm231, %v418, -inf
        %427 = vmax.xlane.f32.xlu0 %v426
        %v428 = vpop.xlane.xlu0 %427
        %v429 = vsel %vm231, %v423, -inf
        %430 = vmax.xlane.f32.xlu0 %v429
        %v431 = vpop.xlane.xlu0 %430
        %v432 = vsub.f32 %v418, %v428
        %v433 = vsub.f32 %v423, %v431
        %v434 = vmul.f32 %v432, 1.442695
        %v435 = vpow.pop %v434
        %v436 = vmul.f32 %v433, 1.442695
        %v437 = vpow.pop %v436
        %v438 = vsel %vm231, %v435, 0.0
        %439 = vadd.xlane.f32.xlu0 %v438
        %v440 = vpop.xlane.xlu0 %439
        %v441 = vsel %vm231, %v437, 0.0
        %442 = vadd.xlane.f32.xlu0 %v441
        %v443 = vpop.xlane.xlu0 %442
        %v444 = vrcp.pop %v440
        %v445 = vrcp.pop %v443
        %v446 = vmul.f32 %v435, %v444
        %v447 = vmul.f32 %v437, %v445
        %450 = vrot.lane.b32.xlu0 %v137, 96
        %v451 = vpop.permute.xlu0 %450
        %452 = vrot.lane.b32.xlu0 %v140, 96
        %v453 = vpop.permute.xlu0 %452
        %v457 = vsel %vm231, %v446, 0
        %v460 = vsel %vm231, %v447, 0
        %462 = vmatprep.subr.mxu0 0.0
        %463 = vmatpush1.msra.mxu0 %v451
        %464 = vmatprep.subr.mxu0 0.0
        %465 = vmatpush1.msra.mxu0 %v453
        %466 = vmatprep.subr.mxu0 0.0
        %467 = vmatpush1.msra.mxu0 0.0
        %468 = vmatprep.subr.mxu0 0.0
        %469 = vmatpush1.msra.mxu0 0.0
        %470 = vmatprep.subr.mxu0 0.0
        %471 = vmatpush1.msra.mxu0 0.0
        %472 = vmatprep.subr.mxu0 0.0
        %473 = vmatpush1.msra.mxu0 0.0
        %474 = vmatprep.subr.mxu0 0.0
        %475 = vmatpush1.msra.mxu0 0.0
        %476 = vmatprep.subr.mxu0 0.0
        %477 = vmatpush1.msra.mxu0 0.0
        %478 = vmatprep.subr.mxu0 0.0
        %479 = vmatpush1.msra.mxu0 0.0
        %480 = vmatprep.subr.mxu0 0.0
        %481 = vmatpush1.msra.mxu0 0.0
        %482 = vmatprep.subr.mxu0 0.0
        %483 = vmatpush1.msra.mxu0 0.0
        %484 = vmatprep.subr.mxu0 0.0
        %485 = vmatpush1.msra.mxu0 0.0
        %486 = vmatprep.subr.mxu0 0.0
        %487 = vmatpush1.msra.mxu0 0.0
        %488 = vmatprep.subr.mxu0 0.0
        %489 = vmatpush1.msra.mxu0 0.0
        %490 = vmatprep.subr.mxu0 0.0
        %491 = vmatpush1.msra.mxu0 0.0
        %492 = vmatprep.subr.mxu0 0.0
        %493 = vmatpush1.msra.mxu0 0.0
        %494 = vmatprep.subr.mxu0 0.0
        %495 = vmatpush1.msra.mxu0 0.0
        %496 = vmatprep.subr.mxu0 0.0
        %497 = vmatpush1.msra.mxu0 0.0
        %498 = vmatprep.subr.mxu0 0.0
        %499 = vmatpush1.msra.mxu0 0.0
        %500 = vmatprep.subr.mxu0 0.0
        %501 = vmatpush1.msra.mxu0 0.0
        %502 = vmatprep.subr.mxu0 0.0
        %503 = vmatpush1.msra.mxu0 0.0
        %504 = vmatprep.subr.mxu0 0.0
        %505 = vmatpush1.msra.mxu0 0.0
        %506 = vmatprep.subr.mxu0 0.0
        %507 = vmatpush1.msra.mxu0 0.0
        %508 = vmatprep.subr.mxu0 0.0
        %509 = vmatpush1.msra.mxu0 0.0
        %510 = vmatprep.subr.mxu0 0.0
        %511 = vmatpush1.msra.mxu0 0.0
        %512 = vmatprep.subr.mxu0 0.0
        %513 = vmatpush1.msra.mxu0 0.0
        %514 = vmatprep.subr.mxu0 0.0
        %515 = vmatpush1.msra.mxu0 0.0
        %516 = vmatprep.subr.mxu0 0.0
        %517 = vmatpush1.msra.mxu0 0.0
        %518 = vmatprep.subr.mxu0 0.0
        %519 = vmatpush1.msra.mxu0 0.0
        %520 = vmatprep.subr.mxu0 0.0
        %521 = vmatpush1.msra.mxu0 0.0
        %522 = vmatprep.subr.mxu0 0.0
        %523 = vmatpush1.msra.mxu0 0.0
        %524 = vmatprep.subr.mxu0 0.0
        %525 = vmatpush1.msra.mxu0 0.0
        %526 = vmatprep.mubr.f32.mxu0 0.0
        %527 = vmatmul.mubr.f32.gmra.mrb[0].mxu0 %v457
        %v528 = vpop.f32.mrb[0].mxu0
        %v529 = vadd.f32 0.0, %v528
        %v530 = vpop.f32.mrb[0].mxu0
        %531 = vmatprep.mubr.f32.mxu0 0.0
        %532 = vmatmul.mubr.f32.gmra.mrb[0].mxu0 %v460
        %v533 = vpop.f32.mrb[0].mxu0
        %v534 = vadd.f32 0.0, %v533
        %v535 = vpop.f32.mrb[0].mxu0
        %536 = vdwg.mxu0
        %537 = vrot.lane.b32.xlu0 %v141, 64
        %v538 = vpop.permute.xlu0 %537
        %539 = vrot.lane.b32.xlu0 %v142, 64
        %v540 = vpop.permute.xlu0 %539
        %541 = vrot.lane.b32.xlu0 %v136, 64
        %v542 = vpop.permute.xlu0 %541
        %543 = vrot.lane.b32.xlu0 %v139, 64
        %v544 = vpop.permute.xlu0 %543
        %v545 = vsel %vm143, %v538, 0
        %v547 = vsel %vm143, %v540, 0
        %v549 = vsel %vm143, %v542, 0
        %v551 = vsel %vm143, %v544, 0
        %553 = vmatprep.subr.mxu0 0.0
        %554 = vmatpush1.xpose.msra.mxu0 %v549
        %555 = vmatprep.subr.mxu0 0.0
        %556 = vmatpush1.xpose.msra.mxu0 %v551
        %557 = vmatprep.subr.mxu0 0.0
        %558 = vmatpush1.xpose.msra.mxu0 0.0
        %559 = vmatprep.subr.mxu0 0.0
        %560 = vmatpush1.xpose.msra.mxu0 0.0
        %561 = vmatprep.subr.mxu0 0.0
        %562 = vmatpush1.xpose.msra.mxu0 0.0
        %563 = vmatprep.subr.mxu0 0.0
        %564 = vmatpush1.xpose.msra.mxu0 0.0
        %565 = vmatprep.subr.mxu0 0.0
        %566 = vmatpush1.xpose.msra.mxu0 0.0
        %567 = vmatprep.subr.mxu0 0.0
        %568 = vmatpush1.xpose.msra.mxu0 0.0
        %569 = vmatprep.subr.mxu0 0.0
        %570 = vmatpush1.xpose.msra.mxu0 0.0
        %571 = vmatprep.subr.mxu0 0.0
        %572 = vmatpush1.xpose.msra.mxu0 0.0
        %573 = vmatprep.subr.mxu0 0.0
        %574 = vmatpush1.xpose.msra.mxu0 0.0
        %575 = vmatprep.subr.mxu0 0.0
        %576 = vmatpush1.xpose.msra.mxu0 0.0
        %577 = vmatprep.subr.mxu0 0.0
        %578 = vmatpush1.xpose.msra.mxu0 0.0
        %579 = vmatprep.subr.mxu0 0.0
        %580 = vmatpush1.xpose.msra.mxu0 0.0
        %581 = vmatprep.subr.mxu0 0.0
        %582 = vmatpush1.xpose.msra.mxu0 0.0
        %583 = vmatprep.subr.mxu0 0.0
        %584 = vmatpush1.xpose.msra.mxu0 0.0
        %585 = vmatprep.subr.mxu0 0.0
        %586 = vmatpush1.xpose.msra.mxu0 0.0
        %587 = vmatprep.subr.mxu0 0.0
        %588 = vmatpush1.xpose.msra.mxu0 0.0
        %589 = vmatprep.subr.mxu0 0.0
        %590 = vmatpush1.xpose.msra.mxu0 0.0
        %591 = vmatprep.subr.mxu0 0.0
        %592 = vmatpush1.xpose.msra.mxu0 0.0
        %593 = vmatprep.subr.mxu0 0.0
        %594 = vmatpush1.xpose.msra.mxu0 0.0
        %595 = vmatprep.subr.mxu0 0.0
        %596 = vmatpush1.xpose.msra.mxu0 0.0
        %597 = vmatprep.subr.mxu0 0.0
        %598 = vmatpush1.xpose.msra.mxu0 0.0
        %599 = vmatprep.subr.mxu0 0.0
        %600 = vmatpush1.xpose.msra.mxu0 0.0
        %601 = vmatprep.subr.mxu0 0.0
        %602 = vmatpush1.xpose.msra.mxu0 0.0
        %603 = vmatprep.subr.mxu0 0.0
        %604 = vmatpush1.xpose.msra.mxu0 0.0
        %605 = vmatprep.subr.mxu0 0.0
        %606 = vmatpush1.xpose.msra.mxu0 0.0
        %607 = vmatprep.subr.mxu0 0.0
        %608 = vmatpush1.xpose.msra.mxu0 0.0
        %609 = vmatprep.subr.mxu0 0.0
        %610 = vmatpush1.xpose.msra.mxu0 0.0
        %611 = vmatprep.subr.mxu0 0.0
        %612 = vmatpush1.xpose.msra.mxu0 0.0
        %613 = vmatprep.subr.mxu0 0.0
        %614 = vmatpush1.xpose.msra.mxu0 0.0
        %615 = vmatprep.subr.mxu0 0.0
        %616 = vmatpush1.xpose.msra.mxu0 0.0
        %617 = vmatprep.mubr.f32.mxu0 0.0
        %618 = vmatmul.mubr.f32.gmra.mrb[0].mxu0 %v545
        %v619 = vpop.f32.mrb[0].mxu0
        %v620 = vadd.f32 0.0, %v619
        %v621 = vpop.f32.mrb[0].mxu0
        %622 = vmatprep.mubr.f32.mxu0 0.0
        %623 = vmatmul.mubr.f32.gmra.mrb[0].mxu0 %v547
        %v624 = vpop.f32.mrb[0].mxu0
        %v625 = vadd.f32 0.0, %v624
        %v626 = vpop.f32.mrb[0].mxu0
        %627 = vdwg.mxu0
        %v628 = vsel %vm231, %v620, -inf
        %629 = vmax.xlane.f32.xlu0 %v628
        %v630 = vpop.xlane.xlu0 %629
        %v631 = vsel %vm231, %v625, -inf
        %632 = vmax.xlane.f32.xlu0 %v631
        %v633 = vpop.xlane.xlu0 %632
        %v634 = vsub.f32 %v620, %v630
        %v635 = vsub.f32 %v625, %v633
        %v636 = vmul.f32 %v634, 1.442695
        %v637 = vpow.pop %v636
        %v638 = vmul.f32 %v635, 1.442695
        %v639 = vpow.pop %v638
        %v640 = vsel %vm231, %v637, 0.0
        %641 = vadd.xlane.f32.xlu0 %v640
        %v642 = vpop.xlane.xlu0 %641
        %v643 = vsel %vm231, %v639, 0.0
        %644 = vadd.xlane.f32.xlu0 %v643
        %v645 = vpop.xlane.xlu0 %644
        %v646 = vrcp.pop %v642
        %v647 = vrcp.pop %v645
        %v648 = vmul.f32 %v637, %v646
        %v649 = vmul.f32 %v639, %v647
        %650 = vrot.lane.b32.xlu0 %v137, 64
        %v651 = vpop.permute.xlu0 %650
        %652 = vrot.lane.b32.xlu0 %v140, 64
        %v653 = vpop.permute.xlu0 %652
        %v657 = vsel %vm231, %v648, 0
        %v660 = vsel %vm231, %v649, 0
        %662 = vmatprep.subr.mxu0 0.0
        %663 = vmatpush1.msra.mxu0 %v651
        %664 = vmatprep.subr.mxu0 0.0
        %665 = vmatpush1.msra.mxu0 %v653
        %666 = vmatprep.subr.mxu0 0.0
        %667 = vmatpush1.msra.mxu0 0.0
        %668 = vmatprep.subr.mxu0 0.0
        %669 = vmatpush1.msra.mxu0 0.0
        %670 = vmatprep.subr.mxu0 0.0
        %671 = vmatpush1.msra.mxu0 0.0
        %672 = vmatprep.subr.mxu0 0.0
        %673 = vmatpush1.msra.mxu0 0.0
        %674 = vmatprep.subr.mxu0 0.0
        %675 = vmatpush1.msra.mxu0 0.0
        %676 = vmatprep.subr.mxu0 0.0
        %677 = vmatpush1.msra.mxu0 0.0
        %678 = vmatprep.subr.mxu0 0.0
        %679 = vmatpush1.msra.mxu0 0.0
        %680 = vmatprep.subr.mxu0 0.0
        %681 = vmatpush1.msra.mxu0 0.0
        %682 = vmatprep.subr.mxu0 0.0
        %683 = vmatpush1.msra.mxu0 0.0
        %684 = vmatprep.subr.mxu0 0.0
        %685 = vmatpush1.msra.mxu0 0.0
        %686 = vmatprep.subr.mxu0 0.0
        %687 = vmatpush1.msra.mxu0 0.0
        %688 = vmatprep.subr.mxu0 0.0
        %689 = vmatpush1.msra.mxu0 0.0
        %690 = vmatprep.subr.mxu0 0.0
        %691 = vmatpush1.msra.mxu0 0.0
        %692 = vmatprep.subr.mxu0 0.0
        %693 = vmatpush1.msra.mxu0 0.0
        %694 = vmatprep.subr.mxu0 0.0
        %695 = vmatpush1.msra.mxu0 0.0
        %696 = vmatprep.subr.mxu0 0.0
        %697 = vmatpush1.msra.mxu0 0.0
        %698 = vmatprep.subr.mxu0 0.0
        %699 = vmatpush1.msra.mxu0 0.0
        %700 = vmatprep.subr.mxu0 0.0
        %701 = vmatpush1.msra.mxu0 0.0
        %702 = vmatprep.subr.mxu0 0.0
        %703 = vmatpush1.msra.mxu0 0.0
        %704 = vmatprep.subr.mxu0 0.0
        %705 = vmatpush1.msra.mxu0 0.0
        %706 = vmatprep.subr.mxu0 0.0
        %707 = vmatpush1.msra.mxu0 0.0
        %708 = vmatprep.subr.mxu0 0.0
        %709 = vmatpush1.msra.mxu0 0.0
        %710 = vmatprep.subr.mxu0 0.0
        %711 = vmatpush1.msra.mxu0 0.0
        %712 = vmatprep.subr.mxu0 0.0
        %713 = vmatpush1.msra.mxu0 0.0
        %714 = vmatprep.subr.mxu0 0.0
        %715 = vmatpush1.msra.mxu0 0.0
        %716 = vmatprep.subr.mxu0 0.0
        %717 = vmatpush1.msra.mxu0 0.0
        %718 = vmatprep.subr.mxu0 0.0
        %719 = vmatpush1.msra.mxu0 0.0
        %720 = vmatprep.subr.mxu0 0.0
        %721 = vmatpush1.msra.mxu0 0.0
        %722 = vmatprep.subr.mxu0 0.0
        %723 = vmatpush1.msra.mxu0 0.0
        %724 = vmatprep.subr.mxu0 0.0
        %725 = vmatpush1.msra.mxu0 0.0
        %726 = vmatprep.mubr.f32.mxu0 0.0
        %727 = vmatmul.mubr.f32.gmra.mrb[0].mxu0 %v657
        %v728 = vpop.f32.mrb[0].mxu0
        %v729 = vadd.f32 0.0, %v728
        %v730 = vpop.f32.mrb[0].mxu0
        %731 = vmatprep.mubr.f32.mxu0 0.0
        %732 = vmatmul.mubr.f32.gmra.mrb[0].mxu0 %v660
        %v733 = vpop.f32.mrb[0].mxu0
        %v734 = vadd.f32 0.0, %v733
        %v735 = vpop.f32.mrb[0].mxu0
        %736 = vdwg.mxu0
        %737 = vrot.lane.b32.xlu0 %v141, 32
        %v738 = vpop.permute.xlu0 %737
        %739 = vrot.lane.b32.xlu0 %v142, 32
        %v740 = vpop.permute.xlu0 %739
        %741 = vrot.lane.b32.xlu0 %v136, 32
        %v742 = vpop.permute.xlu0 %741
        %743 = vrot.lane.b32.xlu0 %v139, 32
        %v744 = vpop.permute.xlu0 %743
        %v745 = vsel %vm143, %v738, 0
        %v747 = vsel %vm143, %v740, 0
        %v749 = vsel %vm143, %v742, 0
        %v751 = vsel %vm143, %v744, 0
        %753 = vmatprep.subr.mxu0 0.0
        %754 = vmatpush1.xpose.msra.mxu0 %v749
        %755 = vmatprep.subr.mxu0 0.0
        %756 = vmatpush1.xpose.msra.mxu0 %v751
        %757 = vmatprep.subr.mxu0 0.0
        %758 = vmatpush1.xpose.msra.mxu0 0.0
        %759 = vmatprep.subr.mxu0 0.0
        %760 = vmatpush1.xpose.msra.mxu0 0.0
        %761 = vmatprep.subr.mxu0 0.0
        %762 = vmatpush1.xpose.msra.mxu0 0.0
        %763 = vmatprep.subr.mxu0 0.0
        %764 = vmatpush1.xpose.msra.mxu0 0.0
        %765 = vmatprep.subr.mxu0 0.0
        %766 = vmatpush1.xpose.msra.mxu0 0.0
        %767 = vmatprep.subr.mxu0 0.0
        %768 = vmatpush1.xpose.msra.mxu0 0.0
        %769 = vmatprep.subr.mxu0 0.0
        %770 = vmatpush1.xpose.msra.mxu0 0.0
        %771 = vmatprep.subr.mxu0 0.0
        %772 = vmatpush1.xpose.msra.mxu0 0.0
        %773 = vmatprep.subr.mxu0 0.0
        %774 = vmatpush1.xpose.msra.mxu0 0.0
        %775 = vmatprep.subr.mxu0 0.0
        %776 = vmatpush1.xpose.msra.mxu0 0.0
        %777 = vmatprep.subr.mxu0 0.0
        %778 = vmatpush1.xpose.msra.mxu0 0.0
        %779 = vmatprep.subr.mxu0 0.0
        %780 = vmatpush1.xpose.msra.mxu0 0.0
        %781 = vmatprep.subr.mxu0 0.0
        %782 = vmatpush1.xpose.msra.mxu0 0.0
        %783 = vmatprep.subr.mxu0 0.0
        %784 = vmatpush1.xpose.msra.mxu0 0.0
        %785 = vmatprep.subr.mxu0 0.0
        %786 = vmatpush1.xpose.msra.mxu0 0.0
        %787 = vmatprep.subr.mxu0 0.0
        %788 = vmatpush1.xpose.msra.mxu0 0.0
        %789 = vmatprep.subr.mxu0 0.0
        %790 = vmatpush1.xpose.msra.mxu0 0.0
        %791 = vmatprep.subr.mxu0 0.0
        %792 = vmatpush1.xpose.msra.mxu0 0.0
        %793 = vmatprep.subr.mxu0 0.0
        %794 = vmatpush1.xpose.msra.mxu0 0.0
        %795 = vmatprep.subr.mxu0 0.0
        %796 = vmatpush1.xpose.msra.mxu0 0.0
        %797 = vmatprep.subr.mxu0 0.0
        %798 = vmatpush1.xpose.msra.mxu0 0.0
        %799 = vmatprep.subr.mxu0 0.0
        %800 = vmatpush1.xpose.msra.mxu0 0.0
        %801 = vmatprep.subr.mxu0 0.0
        %802 = vmatpush1.xpose.msra.mxu0 0.0
        %803 = vmatprep.subr.mxu0 0.0
        %804 = vmatpush1.xpose.msra.mxu0 0.0
        %805 = vmatprep.subr.mxu0 0.0
        %806 = vmatpush1.xpose.msra.mxu0 0.0
        %807 = vmatprep.subr.mxu0 0.0
        %808 = vmatpush1.xpose.msra.mxu0 0.0
        %809 = vmatprep.subr.mxu0 0.0
        %810 = vmatpush1.xpose.msra.mxu0 0.0
        %811 = vmatprep.subr.mxu0 0.0
        %812 = vmatpush1.xpose.msra.mxu0 0.0
        %813 = vmatprep.subr.mxu0 0.0
        %814 = vmatpush1.xpose.msra.mxu0 0.0
        %815 = vmatprep.subr.mxu0 0.0
        %816 = vmatpush1.xpose.msra.mxu0 0.0
        %817 = vmatprep.mubr.f32.mxu0 0.0
        %818 = vmatmul.mubr.f32.gmra.mrb[0].mxu0 %v745
        %v819 = vpop.f32.mrb[0].mxu0
        %v820 = vadd.f32 0.0, %v819
        %v821 = vpop.f32.mrb[0].mxu0
        %822 = vmatprep.mubr.f32.mxu0 0.0
        %823 = vmatmul.mubr.f32.gmra.mrb[0].mxu0 %v747
        %v824 = vpop.f32.mrb[0].mxu0
        %v825 = vadd.f32 0.0, %v824
        %v826 = vpop.f32.mrb[0].mxu0
        %827 = vdwg.mxu0
        %v828 = vsel %vm231, %v820, -inf
        %829 = vmax.xlane.f32.xlu0 %v828
        %v830 = vpop.xlane.xlu0 %829
        %v831 = vsel %vm231, %v825, -inf
        %832 = vmax.xlane.f32.xlu0 %v831
        %v833 = vpop.xlane.xlu0 %832
        %v834 = vsub.f32 %v820, %v830
        %v835 = vsub.f32 %v825, %v833
        %v836 = vmul.f32 %v834, 1.442695
        %v837 = vpow.pop %v836
        %v838 = vmul.f32 %v835, 1.442695
        %v839 = vpow.pop %v838
        %v840 = vsel %vm231, %v837, 0.0
        %841 = vadd.xlane.f32.xlu0 %v840
        %v842 = vpop.xlane.xlu0 %841
        %v843 = vsel %vm231, %v839, 0.0
        %844 = vadd.xlane.f32.xlu0 %v843
        %v845 = vpop.xlane.xlu0 %844
        %v846 = vrcp.pop %v842
        %v847 = vrcp.pop %v845
        %v848 = vmul.f32 %v837, %v846
        %v849 = vmul.f32 %v839, %v847
        %850 = vrot.lane.b32.xlu0 %v137, 32
        %v851 = vpop.permute.xlu0 %850
        %852 = vrot.lane.b32.xlu0 %v140, 32
        %v853 = vpop.permute.xlu0 %852
        %v857 = vsel %vm231, %v848, 0
        %v860 = vsel %vm231, %v849, 0
        %862 = vmatprep.subr.mxu0 0.0
        %863 = vmatpush1.msra.mxu0 %v851
        %864 = vmatprep.subr.mxu0 0.0
        %865 = vmatpush1.msra.mxu0 %v853
        %866 = vmatprep.subr.mxu0 0.0
        %867 = vmatpush1.msra.mxu0 0.0
        %868 = vmatprep.subr.mxu0 0.0
        %869 = vmatpush1.msra.mxu0 0.0
        %870 = vmatprep.subr.mxu0 0.0
        %871 = vmatpush1.msra.mxu0 0.0
        %872 = vmatprep.subr.mxu0 0.0
        %873 = vmatpush1.msra.mxu0 0.0
        %874 = vmatprep.subr.mxu0 0.0
        %875 = vmatpush1.msra.mxu0 0.0
        %876 = vmatprep.subr.mxu0 0.0
        %877 = vmatpush1.msra.mxu0 0.0
        %878 = vmatprep.subr.mxu0 0.0
        %879 = vmatpush1.msra.mxu0 0.0
        %880 = vmatprep.subr.mxu0 0.0
        %881 = vmatpush1.msra.mxu0 0.0
        %882 = vmatprep.subr.mxu0 0.0
        %883 = vmatpush1.msra.mxu0 0.0
        %884 = vmatprep.subr.mxu0 0.0
        %885 = vmatpush1.msra.mxu0 0.0
        %886 = vmatprep.subr.mxu0 0.0
        %887 = vmatpush1.msra.mxu0 0.0
        %888 = vmatprep.subr.mxu0 0.0
        %889 = vmatpush1.msra.mxu0 0.0
        %890 = vmatprep.subr.mxu0 0.0
        %891 = vmatpush1.msra.mxu0 0.0
        %892 = vmatprep.subr.mxu0 0.0
        %893 = vmatpush1.msra.mxu0 0.0
        %894 = vmatprep.subr.mxu0 0.0
        %895 = vmatpush1.msra.mxu0 0.0
        %896 = vmatprep.subr.mxu0 0.0
        %897 = vmatpush1.msra.mxu0 0.0
        %898 = vmatprep.subr.mxu0 0.0
        %899 = vmatpush1.msra.mxu0 0.0
        %900 = vmatprep.subr.mxu0 0.0
        %901 = vmatpush1.msra.mxu0 0.0
        %902 = vmatprep.subr.mxu0 0.0
        %903 = vmatpush1.msra.mxu0 0.0
        %904 = vmatprep.subr.mxu0 0.0
        %905 = vmatpush1.msra.mxu0 0.0
        %906 = vmatprep.subr.mxu0 0.0
        %907 = vmatpush1.msra.mxu0 0.0
        %908 = vmatprep.subr.mxu0 0.0
        %909 = vmatpush1.msra.mxu0 0.0
        %910 = vmatprep.subr.mxu0 0.0
        %911 = vmatpush1.msra.mxu0 0.0
        %912 = vmatprep.subr.mxu0 0.0
        %913 = vmatpush1.msra.mxu0 0.0
        %914 = vmatprep.subr.mxu0 0.0
        %915 = vmatpush1.msra.mxu0 0.0
        %916 = vmatprep.subr.mxu0 0.0
        %917 = vmatpush1.msra.mxu0 0.0
        %918 = vmatprep.subr.mxu0 0.0
        %919 = vmatpush1.msra.mxu0 0.0
        %920 = vmatprep.subr.mxu0 0.0
        %921 = vmatpush1.msra.mxu0 0.0
        %922 = vmatprep.subr.mxu0 0.0
        %923 = vmatpush1.msra.mxu0 0.0
        %924 = vmatprep.subr.mxu0 0.0
        %925 = vmatpush1.msra.mxu0 0.0
        %926 = vmatprep.mubr.f32.mxu0 0.0
        %927 = vmatmul.mubr.f32.gmra.mrb[0].mxu0 %v857
        %v928 = vpop.f32.mrb[0].mxu0
        %v929 = vadd.f32 0.0, %v928
        %v930 = vpop.f32.mrb[0].mxu0
        %931 = vmatprep.mubr.f32.mxu0 0.0
        %932 = vmatmul.mubr.f32.gmra.mrb[0].mxu0 %v860
        %v933 = vpop.f32.mrb[0].mxu0
        %v934 = vadd.f32 0.0, %v933
        %v935 = vpop.f32.mrb[0].mxu0
        %936 = vdwg.mxu0
        %939 = vrot.lane.b32.xlu0 %v529, 32
        %v940 = vpop.permute.xlu0 %939
        %941 = vrot.lane.b32.xlu0 %v534, 32
        %v942 = vpop.permute.xlu0 %941
        %947 = vrot.lane.b32.xlu0 %v729, 64
        %v948 = vpop.permute.xlu0 %947
        %949 = vrot.lane.b32.xlu0 %v734, 64
        %v950 = vpop.permute.xlu0 %949
        %955 = vrot.lane.b32.xlu0 %v929, 96
        %v956 = vpop.permute.xlu0 %955
        %957 = vrot.lane.b32.xlu0 %v934, 96
        %v958 = vpop.permute.xlu0 %957
        %v961 = vsel %vm143, %v327, %v940
        %v962 = vsel %vm143, %v332, %v942
        %vm963 = vcmask 523264
        %v964 = vsel %vm963, %v961, %v948
        %v965 = vsel %vm963, %v962, %v950
        %vm966 = vcmask 785408
        %v967 = vsel %vm966, %v964, %v956
        %v968 = vsel %vm966, %v965, %v958
        %969 = vst [vmem:[%s134] sm:$0xff] %v967
        %970 = vst [vmem:[%s134 + $0x8] sm:$0xff] %v968
        %s971 = sand.u32 %s52, 1
        %s972 = scalar_lea.sflag [#allocation4], %s971
        %s973 = sand.u32 %s52, 1
        %s974 = smul.addr %s973, 16
        %s975 = scalar_lea.vmem [#allocation5], %s974
        // Predicated region
        $region29: #{vit_model_forward.20} parent=23 // pred_check
          %p976 = pneg %p62
        $region30: #{vit_model_forward.20} parent=23 // pred_check_branch
          %978 = sbr.rel (%p976) target = $region32
        $region31: #{vit_model_forward.20} parent=23 // pred_region
          %s980 = ssub.s32 256, 256
          %981 = vsyncadd %s972, %s980
          %s982 = smul.addr %s18, 2
          %s983 = smul.addr %s982, 128
          %s984 = scalar_lea.hbm %s1, %s983
          %s985 = sshll.u32 %s975, 4
          %s986 = int_to_ptr.vmem [resolvable:$true] %s985
          %991 = dma.vmem_to_hbm [thread:$0]  %s986, 256, %s984, %s972, 128, 128, 8
        $region32: #{vit_model_forward.20} parent=23 // pred_fallthru
          _
      $region24: #{vit_model_forward.20} parent=5 // pred_fallthru
        _
      %p992 = scmp.le.s32.totalorder 2, %s13
      // Predicated region
      $region33: #{vit_model_forward.20} parent=5 // pred_check
        %p993 = pneg %p992
      $region34: #{vit_model_forward.20} parent=5 // pred_check_branch
        %995 = sbr.rel (%p993) target = $region36
      $region35: #{vit_model_forward.20} parent=5 // pred_region
        %s996 = ssub.s32 %s13, 2
        // Predicated region
        $region37: #{vit_model_forward.20} parent=35 // pred_check
          %p997 = pneg %p68
        $region38: #{vit_model_forward.20} parent=35 // pred_check_branch
          %999 = sbr.rel (%p997) target = $region40
        $region39: #{vit_model_forward.20} parent=35 // pred_region
          %s1000 = sand.u32 %s53, 1
          %s1001 = scalar_lea.sflag [#allocation4], %s1000
          %s1002 = sand.u32 %s53, 1
          %s1003 = smul.addr %s1002, 16
          %s1004 = scalar_lea.vmem [#allocation5], %s1003
          %1005 = dma.done %s1001, 256
        $region40: #{vit_model_forward.20} parent=35 // pred_fallthru
          _
      $region36: #{vit_model_forward.20} parent=5 // pred_fallthru
        _
    $region6: #{vit_model_forward.20} parent=1 // loop_footer
      %s17 = sadd.s32 1, %s13
    $region7: #{vit_model_forward.20} parent=1 // loop_footer_branch
      %12 = sbr.rel target = $region3
    $region8: #{vit_model_forward.20} parent=1 // loop_exit
      _
    %1006 = vsyncpa [#allocation3], 1
    %s1007 = scalar_lea.sflag [#allocation3], 1
    %1008 = vsyncpa %s1007, 1
    %1009 = vsyncpa [#allocation4], 1
    %s1010 = scalar_lea.sflag [#allocation4], 1
    %1011 = vsyncpa %s1010, 1

// kernel: vit_model_forward.22
$region0: #{vit_model_forward.22}
  #allocation0 [shape = 'u32[]', space=smem, size = 0x4, offset = 0x4, fixed_abs, tag = 'smem constant byte address 0x4 - core index']
  #allocation1 [shape = 'u32[144,128]{1,0:T(1,128)}', space=vmem, size = 0x12000, scoped, tag = 'internal scratch']
  %s0 = inlined_call_operand.hbm [shape: f32[32,128], index: 0, kind: input, shape index: {}]
  %s1 = inlined_call_operand.hbm [shape: f32[1,128], index: 1, kind: input, shape index: {}]
  %s2 = inlined_call_operand.hbm [shape: f32[1,128], index: 2, kind: input, shape index: {}]
  %s3 = inlined_call_operand.hbm [shape: f32[32,128], index: 3, kind: output, shape index: {}]
  %s4 = sld [smem:[#allocation0]]
  $region34: #{vit_model_forward.22} parent=0
    _
  %s6 = ssub.s32 1, %s4
  %s7 = scalar_select 0, %s6, %s4
  $region1: #{vit_model_forward.22} parent=0
    #allocation2 [shape = 'u8[16384]{0}', space=vmem, size = 0x4000, scoped, tag = 'input window, operand 0, single buffered']
    #allocation3 [shape = 's32[1]{0}', space=sflag, size = 0x4, scoped, tag = 'scoped memory for vit_model_forward.22']
    #allocation4 [shape = 's32[1]{0}', space=sflag, size = 0x4, scoped, tag = 'scoped memory for vit_model_forward.22']
    #allocation5 [shape = 'u8[512]{0}', space=vmem, size = 0x400, scoped, tag = 'input window, operand 1, single buffered']
    #allocation6 [shape = 's32[1]{0}', space=sflag, size = 0x4, scoped, tag = 'scoped memory for vit_model_forward.22']
    #allocation7 [shape = 'u8[512]{0}', space=vmem, size = 0x400, scoped, tag = 'input window, operand 2, single buffered']
    #allocation8 [shape = 'u8[16384]{0}', space=vmem, size = 0x4000, scoped, tag = 'output window, operand 0, single buffered']
    %8 = vsyncpa [#allocation3], 0
    %9 = vsyncpa [#allocation6], 0
    %10 = vsyncpa [#allocation4], 0
    // Predicated region
    $region2: #{vit_model_forward.22} parent=1 // pred_check
      _
    $region3: #{vit_model_forward.22} parent=1 // pred_check_branch
      %12 = sbr.rel (0) target = $region5
    $region4: #{vit_model_forward.22} parent=1 // pred_region
      %s14 = ssub.s32 512, 512
      %15 = vsyncadd [#allocation3], %s14
      %s16 = sshll.u32 [#allocation2], 4
      %s17 = int_to_ptr.vmem [resolvable:$true] %s16
      %22 = dma.hbm_to_vmem [thread:$0]  %s0, 512, %s17, [#allocation3], 128, 128, 8
    $region5: #{vit_model_forward.22} parent=1 // pred_fallthru
      _
    // Predicated region
    $region6: #{vit_model_forward.22} parent=1 // pred_check
      _
    $region7: #{vit_model_forward.22} parent=1 // pred_check_branch
      %24 = sbr.rel (0) target = $region9
    $region8: #{vit_model_forward.22} parent=1 // pred_region
      %s26 = ssub.s32 16, 16
      %27 = vsyncadd [#allocation6], %s26
      %s29 = sshll.u32 [#allocation5], 4
      %s30 = int_to_ptr.vmem [resolvable:$true] %s29
      %32 = dma.hbm_to_vmem [thread:$0]  %s1, 16, %s30, [#allocation6]
    $region9: #{vit_model_forward.22} parent=1 // pred_fallthru
      _
    // Predicated region
    $region10: #{vit_model_forward.22} parent=1 // pred_check
      _
    $region11: #{vit_model_forward.22} parent=1 // pred_check_branch
      %34 = sbr.rel (0) target = $region13
    $region12: #{vit_model_forward.22} parent=1 // pred_region
      %s36 = ssub.s32 16, 16
      %37 = vsyncadd [#allocation6], %s36
      %s39 = sshll.u32 [#allocation7], 4
      %s40 = int_to_ptr.vmem [resolvable:$true] %s39
      %42 = dma.hbm_to_vmem [thread:$0]  %s2, 16, %s40, [#allocation6]
    $region13: #{vit_model_forward.22} parent=1 // pred_fallthru
      _
    // Predicated region
    $region14: #{vit_model_forward.22} parent=1 // pred_check
      _
    $region15: #{vit_model_forward.22} parent=1 // pred_check_branch
      %44 = sbr.rel (0) target = $region17
    $region16: #{vit_model_forward.22} parent=1 // pred_region
      %45 = dma.done [#allocation3], 512
    $region17: #{vit_model_forward.22} parent=1 // pred_fallthru
      _
    // Predicated region
    $region18: #{vit_model_forward.22} parent=1 // pred_check
      _
    $region19: #{vit_model_forward.22} parent=1 // pred_check_branch
      %47 = sbr.rel (0) target = $region21
    $region20: #{vit_model_forward.22} parent=1 // pred_region
      %48 = dma.done [#allocation6], 16
    $region21: #{vit_model_forward.22} parent=1 // pred_fallthru
      _
    // Predicated region
    $region22: #{vit_model_forward.22} parent=1 // pred_check
      _
    $region23: #{vit_model_forward.22} parent=1 // pred_check_branch
      %50 = sbr.rel (0) target = $region25
    $region24: #{vit_model_forward.22} parent=1 // pred_region
      %51 = dma.done [#allocation6], 16
    $region25: #{vit_model_forward.22} parent=1 // pred_fallthru
      _
    %v52 = vld [vmem:[#allocation2] sm:$0xff]
    %v53 = vld [vmem:[#allocation2 + $0x8] sm:$0xff]
    %v54 = vld [vmem:[#allocation2 + $0x10] sm:$0xff]
    %v55 = vld [vmem:[#allocation2 + $0x18] sm:$0xff]
    %56 = vadd.xlane.f32.xlu0 %v52
    %v57 = vpop.xlane.xlu0 %56
    %58 = vadd.xlane.f32.xlu0 %v53
    %v59 = vpop.xlane.xlu0 %58
    %60 = vadd.xlane.f32.xlu0 %v54
    %v61 = vpop.xlane.xlu0 %60
    %62 = vadd.xlane.f32.xlu0 %v55
    %v63 = vpop.xlane.xlu0 %62
    %v64 = vrcp.pop 128.0
    %v65 = vmul.f32 %v57, %v64
    %v66 = vmul.f32 %v59, %v64
    %v67 = vmul.f32 %v61, %v64
    %v68 = vmul.f32 %v63, %v64
    %v69 = vsub.f32 %v52, %v65
    %v70 = vsub.f32 %v53, %v66
    %v71 = vsub.f32 %v54, %v67
    %v72 = vsub.f32 %v55, %v68
    %v73 = vmul.f32 %v69, %v69
    %v74 = vmul.f32 %v70, %v70
    %v75 = vmul.f32 %v71, %v71
    %v76 = vmul.f32 %v72, %v72
    %77 = vadd.xlane.f32.xlu0 %v73
    %v78 = vpop.xlane.xlu0 %77
    %79 = vadd.xlane.f32.xlu0 %v74
    %v80 = vpop.xlane.xlu0 %79
    %81 = vadd.xlane.f32.xlu0 %v75
    %v82 = vpop.xlane.xlu0 %81
    %83 = vadd.xlane.f32.xlu0 %v76
    %v84 = vpop.xlane.xlu0 %83
    %v85 = vmul.f32 %v78, %v64
    %v86 = vmul.f32 %v80, %v64
    %v87 = vmul.f32 %v82, %v64
    %v88 = vmul.f32 %v84, %v64
    %v89 = vadd.f32 %v85, 1e-12
    %v90 = vadd.f32 %v86, 1e-12
    %v91 = vadd.f32 %v87, 1e-12
    %v92 = vadd.f32 %v88, 1e-12
    %v93 = vrsqrt.pop %v89
    %v94 = vrsqrt.pop %v90
    %v95 = vrsqrt.pop %v91
    %v96 = vrsqrt.pop %v92
    %v97 = vmul.f32 %v69, %v93
    %v98 = vmul.f32 %v70, %v94
    %v99 = vmul.f32 %v71, %v95
    %v100 = vmul.f32 %v72, %v96
    %v101 = vld [vmem:[#allocation5] sm:$0x1]
    %v103 = vlaneseq
    %v104 = vshrl.u32 %v103, 7
    %v105 = vsub.s32 0, %v104
    %v106 = vrot.slane %v101, %v105
    %v108 = vmul.f32 %v97, %v106
    %v109 = vmul.f32 %v98, %v106
    %v110 = vmul.f32 %v99, %v106
    %v111 = vmul.f32 %v100, %v106
    %v112 = vld [vmem:[#allocation7] sm:$0x1]
    %v114 = vlaneseq
    %v115 = vshrl.u32 %v114, 7
    %v116 = vsub.s32 0, %v115
    %v117 = vrot.slane %v112, %v116
    %v119 = vadd.f32 %v108, %v117
    %v120 = vadd.f32 %v109, %v117
    %v121 = vadd.f32 %v110, %v117
    %v122 = vadd.f32 %v111, %v117
    %123 = vst [vmem:[#allocation8] sm:$0xff] %v119
    %124 = vst [vmem:[#allocation8 + $0x8] sm:$0xff] %v120
    %125 = vst [vmem:[#allocation8 + $0x10] sm:$0xff] %v121
    %126 = vst [vmem:[#allocation8 + $0x18] sm:$0xff] %v122
    // Predicated region
    $region26: #{vit_model_forward.22} parent=1 // pred_check
      _
    $region27: #{vit_model_forward.22} parent=1 // pred_check_branch
      %128 = sbr.rel (0) target = $region29
    $region28: #{vit_model_forward.22} parent=1 // pred_region
      %s130 = ssub.s32 512, 512
      %131 = vsyncadd [#allocation4], %s130
      %s132 = sshll.u32 [#allocation8], 4
      %s133 = int_to_ptr.vmem [resolvable:$true] %s132
      %138 = dma.vmem_to_hbm [thread:$0]  %s133, 512, %s3, [#allocation4], 128, 128, 8
    $region29: #{vit_model_forward.22} parent=1 // pred_fallthru
      _
    // Predicated region
    $region30: #{vit_model_forward.22} parent=1 // pred_check
      _
    $region31: #{vit_model_forward.22} parent=1 // pred_check_branch
      %140 = sbr.rel (0) target = $region33
    $region32: #{vit_model_forward.22} parent=1 // pred_region
      %141 = dma.done [#allocation4], 512
    $region33: #{vit_model_forward.22} parent=1 // pred_fallthru
      _
    %142 = vsyncpa [#allocation3], 1
    %143 = vsyncpa [#allocation6], 1
    %144 = vsyncpa [#allocation4], 1

// kernel: vit_model_forward.21
$region0: #{vit_model_forward.21}
  #allocation0 [shape = 'u32[]', space=smem, size = 0x4, offset = 0x4, fixed_abs, tag = 'smem constant byte address 0x4 - core index']
  #allocation1 [shape = 'u32[144,128]{1,0:T(1,128)}', space=vmem, size = 0x12000, scoped, tag = 'internal scratch']
  #allocation2 [shape = 'f32[32,128]{1,0:T(8,128)}', space=vmem, size = 0x4000, scoped, tag = 'scratch operand']
  %s0 = inlined_call_operand.hbm [shape: f32[32,128], index: 0, kind: input, shape index: {}]
  %s1 = inlined_call_operand.hbm [shape: f32[128,128], index: 1, kind: input, shape index: {}]
  %s2 = inlined_call_operand.hbm [shape: f32[1,128], index: 2, kind: input, shape index: {}]
  %s3 = inlined_call_operand.hbm [shape: f32[32,128], index: 3, kind: input, shape index: {}]
  %s4 = inlined_call_operand.hbm [shape: f32[32,128], index: 4, kind: output, shape index: {}]
  %s5 = sld [smem:[#allocation0]]
  $region50: #{vit_model_forward.21} parent=0
    _
  %s7 = ssub.s32 1, %s5
  %s8 = scalar_select 0, %s7, %s5
  $region1: #{vit_model_forward.21} parent=0
    #allocation3 [shape = 'u8[16384]{0}', space=vmem, size = 0x4000, scoped, tag = 'input window, operand 0, single buffered']
    #allocation4 [shape = 's32[1]{0}', space=sflag, size = 0x4, scoped, tag = 'scoped memory for vit_model_forward.21']
    #allocation5 [shape = 's32[1]{0}', space=sflag, size = 0x4, scoped, tag = 'scoped memory for vit_model_forward.21']
    #allocation6 [shape = 'u8[65536]{0}', space=vmem, size = 0x10000, scoped, tag = 'input window, operand 1, single buffered']
    #allocation7 [shape = 's32[1]{0}', space=sflag, size = 0x4, scoped, tag = 'scoped memory for vit_model_forward.21']
    #allocation8 [shape = 'u8[512]{0}', space=vmem, size = 0x400, scoped, tag = 'input window, operand 2, single buffered']
    #allocation9 [shape = 'u8[16384]{0}', space=vmem, size = 0x4000, scoped, tag = 'input window, operand 3, single buffered']
    #allocation10 [shape = 's32[1]{0}', space=sflag, size = 0x4, scoped, tag = 'scoped memory for vit_model_forward.21']
    #allocation11 [shape = 'u8[16384]{0}', space=vmem, size = 0x4000, scoped, tag = 'output window, operand 0, single buffered']
    %9 = vsyncpa [#allocation4], 0
    %10 = vsyncpa [#allocation7], 0
    %11 = vsyncpa [#allocation10], 0
    %12 = vsyncpa [#allocation5], 0
    // Predicated region
    $region2: #{vit_model_forward.21} parent=1 // pred_check
      _
    $region3: #{vit_model_forward.21} parent=1 // pred_check_branch
      %14 = sbr.rel (0) target = $region5
    $region4: #{vit_model_forward.21} parent=1 // pred_region
      %s16 = ssub.s32 512, 512
      %17 = vsyncadd [#allocation4], %s16
      %s18 = sshll.u32 [#allocation3], 4
      %s19 = int_to_ptr.vmem [resolvable:$true] %s18
      %24 = dma.hbm_to_vmem [thread:$0]  %s0, 512, %s19, [#allocation4], 128, 128, 8
    $region5: #{vit_model_forward.21} parent=1 // pred_fallthru
      _
    // Predicated region
    $region6: #{vit_model_forward.21} parent=1 // pred_check
      _
    $region7: #{vit_model_forward.21} parent=1 // pred_check_branch
      %26 = sbr.rel (0) target = $region9
    $region8: #{vit_model_forward.21} parent=1 // pred_region
      %s28 = ssub.s32 2048, 2048
      %29 = vsyncadd [#allocation7], %s28
      %s30 = sshll.u32 [#allocation6], 4
      %s31 = int_to_ptr.vmem [resolvable:$true] %s30
      %36 = dma.hbm_to_vmem [thread:$0]  %s1, 2048, %s31, [#allocation7], 128, 128, 8
    $region9: #{vit_model_forward.21} parent=1 // pred_fallthru
      _
    // Predicated region
    $region10: #{vit_model_forward.21} parent=1 // pred_check
      _
    $region11: #{vit_model_forward.21} parent=1 // pred_check_branch
      %38 = sbr.rel (0) target = $region13
    $region12: #{vit_model_forward.21} parent=1 // pred_region
      %s40 = ssub.s32 16, 16
      %41 = vsyncadd [#allocation7], %s40
      %s43 = sshll.u32 [#allocation8], 4
      %s44 = int_to_ptr.vmem [resolvable:$true] %s43
      %46 = dma.hbm_to_vmem [thread:$0]  %s2, 16, %s44, [#allocation7]
    $region13: #{vit_model_forward.21} parent=1 // pred_fallthru
      _
    // Predicated region
    $region14: #{vit_model_forward.21} parent=1 // pred_check
      _
    $region15: #{vit_model_forward.21} parent=1 // pred_check_branch
      %48 = sbr.rel (0) target = $region17
    $region16: #{vit_model_forward.21} parent=1 // pred_region
      %s50 = ssub.s32 512, 512
      %51 = vsyncadd [#allocation10], %s50
      %s52 = sshll.u32 [#allocation9], 4
      %s53 = int_to_ptr.vmem [resolvable:$true] %s52
      %58 = dma.hbm_to_vmem [thread:$0]  %s3, 512, %s53, [#allocation10], 128, 128, 8
    $region17: #{vit_model_forward.21} parent=1 // pred_fallthru
      _
    // Predicated region
    $region18: #{vit_model_forward.21} parent=1 // pred_check
      _
    $region19: #{vit_model_forward.21} parent=1 // pred_check_branch
      %60 = sbr.rel (0) target = $region21
    $region20: #{vit_model_forward.21} parent=1 // pred_region
      %61 = dma.done [#allocation4], 512
    $region21: #{vit_model_forward.21} parent=1 // pred_fallthru
      _
    // Predicated region
    $region22: #{vit_model_forward.21} parent=1 // pred_check
      _
    $region23: #{vit_model_forward.21} parent=1 // pred_check_branch
      %63 = sbr.rel (0) target = $region25
    $region24: #{vit_model_forward.21} parent=1 // pred_region
      %64 = dma.done [#allocation7], 2048
    $region25: #{vit_model_forward.21} parent=1 // pred_fallthru
      _
    // Predicated region
    $region26: #{vit_model_forward.21} parent=1 // pred_check
      _
    $region27: #{vit_model_forward.21} parent=1 // pred_check_branch
      %66 = sbr.rel (0) target = $region29
    $region28: #{vit_model_forward.21} parent=1 // pred_region
      %67 = dma.done [#allocation7], 16
    $region29: #{vit_model_forward.21} parent=1 // pred_fallthru
      _
    // Predicated region
    $region30: #{vit_model_forward.21} parent=1 // pred_check
      _
    $region31: #{vit_model_forward.21} parent=1 // pred_check_branch
      %69 = sbr.rel (0) target = $region33
    $region32: #{vit_model_forward.21} parent=1 // pred_region
      %70 = dma.done [#allocation10], 512
    $region33: #{vit_model_forward.21} parent=1 // pred_fallthru
      _
    %p71 = scmp.eq.s32.totalorder 0, 0
    // Predicated region
    $region34: #{vit_model_forward.21} parent=1 // pred_check
      %p72 = pneg %p71
    $region35: #{vit_model_forward.21} parent=1 // pred_check_branch
      %74 = sbr.rel (%p72) target = $region37
    $region36: #{vit_model_forward.21} parent=1 // pred_region
      %75 = vst [vmem:[#allocation2] sm:$0xff] 0.0
      %76 = vst [vmem:[#allocation2 + $0x8] sm:$0xff] 0.0
      %77 = vst [vmem:[#allocation2 + $0x10] sm:$0xff] 0.0
      %78 = vst [vmem:[#allocation2 + $0x18] sm:$0xff] 0.0
    $region37: #{vit_model_forward.21} parent=1 // pred_fallthru
      _
    %v79 = vld [vmem:[#allocation3] sm:$0xff]
    %v80 = vld [vmem:[#allocation3 + $0x8] sm:$0xff]
    %v81 = vld [vmem:[#allocation3 + $0x10] sm:$0xff]
    %v82 = vld [vmem:[#allocation3 + $0x18] sm:$0xff]
    %v83 = vld [vmem:[#allocation6] sm:$0xff]
    %v84 = vld [vmem:[#allocation6 + $0x8] sm:$0xff]
    %v85 = vld [vmem:[#allocation6 + $0x10] sm:$0xff]
    %v86 = vld [vmem:[#allocation6 + $0x18] sm:$0xff]
    %v87 = vld [vmem:[#allocation6 + $0x20] sm:$0xff]
    %v88 = vld [vmem:[#allocation6 + $0x28] sm:$0xff]
    %v89 = vld [vmem:[#allocation6 + $0x30] sm:$0xff]
    %v90 = vld [vmem:[#allocation6 + $0x38] sm:$0xff]
    %v91 = vld [vmem:[#allocation6 + $0x40] sm:$0xff]
    %v92 = vld [vmem:[#allocation6 + $0x48] sm:$0xff]
    %v93 = vld [vmem:[#allocation6 + $0x50] sm:$0xff]
    %v94 = vld [vmem:[#allocation6 + $0x58] sm:$0xff]
    %v95 = vld [vmem:[#allocation6 + $0x60] sm:$0xff]
    %v96 = vld [vmem:[#allocation6 + $0x68] sm:$0xff]
    %v97 = vld [vmem:[#allocation6 + $0x70] sm:$0xff]
    %v98 = vld [vmem:[#allocation6 + $0x78] sm:$0xff]
    %v99 = vld [vmem:[#allocation2] sm:$0xff]
    %v100 = vld [vmem:[#allocation2 + $0x8] sm:$0xff]
    %v101 = vld [vmem:[#allocation2 + $0x10] sm:$0xff]
    %v102 = vld [vmem:[#allocation2 + $0x18] sm:$0xff]
    %103 = vmatprep.subr.mxu0 0.0
    %104 = vmatpush1.msra.mxu0 %v83
    %105 = vmatprep.subr.mxu0 0.0
    %106 = vmatpush1.msra.mxu0 %v84
    %107 = vmatprep.subr.mxu0 0.0
    %108 = vmatpush1.msra.mxu0 %v85
    %109 = vmatprep.subr.mxu0 0.0
    %110 = vmatpush1.msra.mxu0 %v86
    %111 = vmatprep.subr.mxu0 0.0
    %112 = vmatpush1.msra.mxu0 %v87
    %113 = vmatprep.subr.mxu0 0.0
    %114 = vmatpush1.msra.mxu0 %v88
    %115 = vmatprep.subr.mxu0 0.0
    %116 = vmatpush1.msra.mxu0 %v89
    %117 = vmatprep.subr.mxu0 0.0
    %118 = vmatpush1.msra.mxu0 %v90
    %119 = vmatprep.subr.mxu0 0.0
    %120 = vmatpush1.msra.mxu0 %v91
    %121 = vmatprep.subr.mxu0 0.0
    %122 = vmatpush1.msra.mxu0 %v92
    %123 = vmatprep.subr.mxu0 0.0
    %124 = vmatpush1.msra.mxu0 %v93
    %125 = vmatprep.subr.mxu0 0.0
    %126 = vmatpush1.msra.mxu0 %v94
    %127 = vmatprep.subr.mxu0 0.0
    %128 = vmatpush1.msra.mxu0 %v95
    %129 = vmatprep.subr.mxu0 0.0
    %130 = vmatpush1.msra.mxu0 %v96
    %131 = vmatprep.subr.mxu0 0.0
    %132 = vmatpush1.msra.mxu0 %v97
    %133 = vmatprep.subr.mxu0 0.0
    %134 = vmatpush1.msra.mxu0 %v98
    %135 = vmatprep.subr.mxu0 0.0
    %136 = vmatpush1.msra.mxu0 0.0
    %137 = vmatprep.subr.mxu0 0.0
    %138 = vmatpush1.msra.mxu0 0.0
    %139 = vmatprep.subr.mxu0 0.0
    %140 = vmatpush1.msra.mxu0 0.0
    %141 = vmatprep.subr.mxu0 0.0
    %142 = vmatpush1.msra.mxu0 0.0
    %143 = vmatprep.subr.mxu0 0.0
    %144 = vmatpush1.msra.mxu0 0.0
    %145 = vmatprep.subr.mxu0 0.0
    %146 = vmatpush1.msra.mxu0 0.0
    %147 = vmatprep.subr.mxu0 0.0
    %148 = vmatpush1.msra.mxu0 0.0
    %149 = vmatprep.subr.mxu0 0.0
    %150 = vmatpush1.msra.mxu0 0.0
    %151 = vmatprep.subr.mxu0 0.0
    %152 = vmatpush1.msra.mxu0 0.0
    %153 = vmatprep.subr.mxu0 0.0
    %154 = vmatpush1.msra.mxu0 0.0
    %155 = vmatprep.subr.mxu0 0.0
    %156 = vmatpush1.msra.mxu0 0.0
    %157 = vmatprep.subr.mxu0 0.0
    %158 = vmatpush1.msra.mxu0 0.0
    %159 = vmatprep.subr.mxu0 0.0
    %160 = vmatpush1.msra.mxu0 0.0
    %161 = vmatprep.subr.mxu0 0.0
    %162 = vmatpush1.msra.mxu0 0.0
    %163 = vmatprep.subr.mxu0 0.0
    %164 = vmatpush1.msra.mxu0 0.0
    %165 = vmatprep.subr.mxu0 0.0
    %166 = vmatpush1.msra.mxu0 0.0
    %167 = vmatprep.mubr.f32.mxu0 0.0
    %168 = vmatmul.mubr.f32.gmra.mrb[0].mxu0 %v79
    %v169 = vpop.f32.mrb[0].mxu0
    %v170 = vadd.f32 0.0, %v169
    %v171 = vpop.f32.mrb[0].mxu0
    %172 = vmatprep.mubr.f32.mxu0 0.0
    %173 = vmatmul.mubr.f32.gmra.mrb[0].mxu0 %v80
    %v174 = vpop.f32.mrb[0].mxu0
    %v175 = vadd.f32 0.0, %v174
    %v176 = vpop.f32.mrb[0].mxu0
    %177 = vmatprep.mubr.f32.mxu0 0.0
    %178 = vmatmul.mubr.f32.gmra.mrb[0].mxu0 %v81
    %v179 = vpop.f32.mrb[0].mxu0
    %v180 = vadd.f32 0.0, %v179
    %v181 = vpop.f32.mrb[0].mxu0
    %182 = vmatprep.mubr.f32.mxu0 0.0
    %183 = vmatmul.mubr.f32.gmra.mrb[0].mxu0 %v82
    %v184 = vpop.f32.mrb[0].mxu0
    %v185 = vadd.f32 0.0, %v184
    %v186 = vpop.f32.mrb[0].mxu0
    %187 = vdwg.mxu0
    %v188 = vadd.f32 %v99, %v170
    %v189 = vadd.f32 %v100, %v175
    %v190 = vadd.f32 %v101, %v180
    %v191 = vadd.f32 %v102, %v185
    %192 = vst [vmem:[#allocation2] sm:$0xff] %v188
    %193 = vst [vmem:[#allocation2 + $0x8] sm:$0xff] %v189
    %194 = vst [vmem:[#allocation2 + $0x10] sm:$0xff] %v190
    %195 = vst [vmem:[#allocation2 + $0x18] sm:$0xff] %v191
    // Predicated region
    $region38: #{vit_model_forward.21} parent=1 // pred_check
      %p196 = pneg %p71
    $region39: #{vit_model_forward.21} parent=1 // pred_check_branch
      %198 = sbr.rel (%p196) target = $region41
    $region40: #{vit_model_forward.21} parent=1 // pred_region
      %v199 = vld [vmem:[#allocation2] sm:$0xff]
      %v200 = vld [vmem:[#allocation2 + $0x8] sm:$0xff]
      %v201 = vld [vmem:[#allocation2 + $0x10] sm:$0xff]
      %v202 = vld [vmem:[#allocation2 + $0x18] sm:$0xff]
      %v203 = vld [vmem:[#allocation8] sm:$0x1]
      %v205 = vlaneseq
      %v206 = vshrl.u32 %v205, 7
      %v207 = vsub.s32 0, %v206
      %v208 = vrot.slane %v203, %v207
      %v210 = vadd.f32 %v199, %v208
      %v211 = vadd.f32 %v200, %v208
      %v212 = vadd.f32 %v201, %v208
      %v213 = vadd.f32 %v202, %v208
      %v214 = vld [vmem:[#allocation9] sm:$0xff]
      %v215 = vld [vmem:[#allocation9 + $0x8] sm:$0xff]
      %v216 = vld [vmem:[#allocation9 + $0x10] sm:$0xff]
      %v217 = vld [vmem:[#allocation9 + $0x18] sm:$0xff]
      %v218 = vadd.f32 %v210, %v214
      %v219 = vadd.f32 %v211, %v215
      %v220 = vadd.f32 %v212, %v216
      %v221 = vadd.f32 %v213, %v217
      %222 = vst [vmem:[#allocation11] sm:$0xff] %v218
      %223 = vst [vmem:[#allocation11 + $0x8] sm:$0xff] %v219
      %224 = vst [vmem:[#allocation11 + $0x10] sm:$0xff] %v220
      %225 = vst [vmem:[#allocation11 + $0x18] sm:$0xff] %v221
    $region41: #{vit_model_forward.21} parent=1 // pred_fallthru
      _
    // Predicated region
    $region42: #{vit_model_forward.21} parent=1 // pred_check
      _
    $region43: #{vit_model_forward.21} parent=1 // pred_check_branch
      %227 = sbr.rel (0) target = $region45
    $region44: #{vit_model_forward.21} parent=1 // pred_region
      %s229 = ssub.s32 512, 512
      %230 = vsyncadd [#allocation5], %s229
      %s231 = sshll.u32 [#allocation11], 4
      %s232 = int_to_ptr.vmem [resolvable:$true] %s231
      %237 = dma.vmem_to_hbm [thread:$0]  %s232, 512, %s4, [#allocation5], 128, 128, 8
    $region45: #{vit_model_forward.21} parent=1 // pred_fallthru
      _
    // Predicated region
    $region46: #{vit_model_forward.21} parent=1 // pred_check
      _
    $region47: #{vit_model_forward.21} parent=1 // pred_check_branch
      %239 = sbr.rel (0) target = $region49
    $region48: #{vit_model_forward.21} parent=1 // pred_region
      %240 = dma.done [#allocation5], 512
    $region49: #{vit_model_forward.21} parent=1 // pred_fallthru
      _
    %241 = vsyncpa [#allocation4], 1
    %242 = vsyncpa [#allocation7], 1
    %243 = vsyncpa [#allocation10], 1
    %244 = vsyncpa [#allocation5], 1

// kernel: vit_model_forward.32
$region0: #{vit_model_forward.32}
  #allocation0 [shape = 'u32[]', space=smem, size = 0x4, offset = 0x4, fixed_abs, tag = 'smem constant byte address 0x4 - core index']
  #allocation1 [shape = 'u32[144,128]{1,0:T(1,128)}', space=vmem, size = 0x12000, scoped, tag = 'internal scratch']
  %s0 = inlined_call_operand.hbm [shape: f32[32,128], index: 0, kind: input, shape index: {}]
  %s1 = inlined_call_operand.hbm [shape: f32[1,128], index: 1, kind: input, shape index: {}]
  %s2 = inlined_call_operand.hbm [shape: f32[1,128], index: 2, kind: input, shape index: {}]
  %s3 = inlined_call_operand.vmem [shape: f32[32,128], index: 3, kind: output, shape index: {}]
  %s4 = sld [smem:[#allocation0]]
  $region34: #{vit_model_forward.32} parent=0
    _
  %s6 = ssub.s32 1, %s4
  %s7 = scalar_select 0, %s6, %s4
  $region1: #{vit_model_forward.32} parent=0
    #allocation2 [shape = 'u8[16384]{0}', space=vmem, size = 0x4000, scoped, tag = 'input window, operand 0, single buffered']
    #allocation3 [shape = 's32[1]{0}', space=sflag, size = 0x4, scoped, tag = 'scoped memory for vit_model_forward.32']
    #allocation4 [shape = 'u8[512]{0}', space=vmem, size = 0x400, scoped, tag = 'input window, operand 1, single buffered']
    #allocation5 [shape = 's32[1]{0}', space=sflag, size = 0x4, scoped, tag = 'scoped memory for vit_model_forward.32']
    #allocation6 [shape = 'u8[512]{0}', space=vmem, size = 0x400, scoped, tag = 'input window, operand 2, single buffered']
    %8 = vsyncpa [#allocation3], 0
    %9 = vsyncpa [#allocation5], 0
    // Predicated region
    $region2: #{vit_model_forward.32} parent=1 // pred_check
      _
    $region3: #{vit_model_forward.32} parent=1 // pred_check_branch
      %11 = sbr.rel (0) target = $region5
    $region4: #{vit_model_forward.32} parent=1 // pred_region
      %s13 = ssub.s32 512, 512
      %14 = vsyncadd [#allocation3], %s13
      %s15 = sshll.u32 [#allocation2], 4
      %s16 = int_to_ptr.vmem [resolvable:$true] %s15
      %21 = dma.hbm_to_vmem [thread:$0]  %s0, 512, %s16, [#allocation3], 128, 128, 8
    $region5: #{vit_model_forward.32} parent=1 // pred_fallthru
      _
    // Predicated region
    $region6: #{vit_model_forward.32} parent=1 // pred_check
      _
    $region7: #{vit_model_forward.32} parent=1 // pred_check_branch
      %23 = sbr.rel (0) target = $region9
    $region8: #{vit_model_forward.32} parent=1 // pred_region
      %s25 = ssub.s32 16, 16
      %26 = vsyncadd [#allocation5], %s25
      %s28 = sshll.u32 [#allocation4], 4
      %s29 = int_to_ptr.vmem [resolvable:$true] %s28
      %31 = dma.hbm_to_vmem [thread:$0]  %s1, 16, %s29, [#allocation5]
    $region9: #{vit_model_forward.32} parent=1 // pred_fallthru
      _
    // Predicated region
    $region10: #{vit_model_forward.32} parent=1 // pred_check
      _
    $region11: #{vit_model_forward.32} parent=1 // pred_check_branch
      %33 = sbr.rel (0) target = $region13
    $region12: #{vit_model_forward.32} parent=1 // pred_region
      %s35 = ssub.s32 16, 16
      %36 = vsyncadd [#allocation5], %s35
      %s38 = sshll.u32 [#allocation6], 4
      %s39 = int_to_ptr.vmem [resolvable:$true] %s38
      %41 = dma.hbm_to_vmem [thread:$0]  %s2, 16, %s39, [#allocation5]
    $region13: #{vit_model_forward.32} parent=1 // pred_fallthru
      _
    // Predicated region
    $region14: #{vit_model_forward.32} parent=1 // pred_check
      _
    $region15: #{vit_model_forward.32} parent=1 // pred_check_branch
      %43 = sbr.rel (0) target = $region17
    $region16: #{vit_model_forward.32} parent=1 // pred_region
      %44 = dma.done [#allocation3], 512
    $region17: #{vit_model_forward.32} parent=1 // pred_fallthru
      _
    // Predicated region
    $region18: #{vit_model_forward.32} parent=1 // pred_check
      _
    $region19: #{vit_model_forward.32} parent=1 // pred_check_branch
      %46 = sbr.rel (0) target = $region21
    $region20: #{vit_model_forward.32} parent=1 // pred_region
      %47 = dma.done [#allocation5], 16
    $region21: #{vit_model_forward.32} parent=1 // pred_fallthru
      _
    // Predicated region
    $region22: #{vit_model_forward.32} parent=1 // pred_check
      _
    $region23: #{vit_model_forward.32} parent=1 // pred_check_branch
      %49 = sbr.rel (0) target = $region25
    $region24: #{vit_model_forward.32} parent=1 // pred_region
      %50 = dma.done [#allocation5], 16
    $region25: #{vit_model_forward.32} parent=1 // pred_fallthru
      _
    %v51 = vld [vmem:[#allocation2] sm:$0xff]
    %v52 = vld [vmem:[#allocation2 + $0x8] sm:$0xff]
    %v53 = vld [vmem:[#allocation2 + $0x10] sm:$0xff]
    %v54 = vld [vmem:[#allocation2 + $0x18] sm:$0xff]
    %55 = vadd.xlane.f32.xlu0 %v51
    %v56 = vpop.xlane.xlu0 %55
    %57 = vadd.xlane.f32.xlu0 %v52
    %v58 = vpop.xlane.xlu0 %57
    %59 = vadd.xlane.f32.xlu0 %v53
    %v60 = vpop.xlane.xlu0 %59
    %61 = vadd.xlane.f32.xlu0 %v54
    %v62 = vpop.xlane.xlu0 %61
    %v63 = vrcp.pop 128.0
    %v64 = vmul.f32 %v56, %v63
    %v65 = vmul.f32 %v58, %v63
    %v66 = vmul.f32 %v60, %v63
    %v67 = vmul.f32 %v62, %v63
    %v68 = vsub.f32 %v51, %v64
    %v69 = vsub.f32 %v52, %v65
    %v70 = vsub.f32 %v53, %v66
    %v71 = vsub.f32 %v54, %v67
    %v72 = vmul.f32 %v68, %v68
    %v73 = vmul.f32 %v69, %v69
    %v74 = vmul.f32 %v70, %v70
    %v75 = vmul.f32 %v71, %v71
    %76 = vadd.xlane.f32.xlu0 %v72
    %v77 = vpop.xlane.xlu0 %76
    %78 = vadd.xlane.f32.xlu0 %v73
    %v79 = vpop.xlane.xlu0 %78
    %80 = vadd.xlane.f32.xlu0 %v74
    %v81 = vpop.xlane.xlu0 %80
    %82 = vadd.xlane.f32.xlu0 %v75
    %v83 = vpop.xlane.xlu0 %82
    %v84 = vmul.f32 %v77, %v63
    %v85 = vmul.f32 %v79, %v63
    %v86 = vmul.f32 %v81, %v63
    %v87 = vmul.f32 %v83, %v63
    %v88 = vadd.f32 %v84, 1e-12
    %v89 = vadd.f32 %v85, 1e-12
    %v90 = vadd.f32 %v86, 1e-12
    %v91 = vadd.f32 %v87, 1e-12
    %v92 = vrsqrt.pop %v88
    %v93 = vrsqrt.pop %v89
    %v94 = vrsqrt.pop %v90
    %v95 = vrsqrt.pop %v91
    %v96 = vmul.f32 %v68, %v92
    %v97 = vmul.f32 %v69, %v93
    %v98 = vmul.f32 %v70, %v94
    %v99 = vmul.f32 %v71, %v95
    %v100 = vld [vmem:[#allocation4] sm:$0x1]
    %v102 = vlaneseq
    %v103 = vshrl.u32 %v102, 7
    %v104 = vsub.s32 0, %v103
    %v105 = vrot.slane %v100, %v104
    %v107 = vmul.f32 %v96, %v105
    %v108 = vmul.f32 %v97, %v105
    %v109 = vmul.f32 %v98, %v105
    %v110 = vmul.f32 %v99, %v105
    %v111 = vld [vmem:[#allocation6] sm:$0x1]
    %v113 = vlaneseq
    %v114 = vshrl.u32 %v113, 7
    %v115 = vsub.s32 0, %v114
    %v116 = vrot.slane %v111, %v115
    %v118 = vadd.f32 %v107, %v116
    %v119 = vadd.f32 %v108, %v116
    %v120 = vadd.f32 %v109, %v116
    %v121 = vadd.f32 %v110, %v116
    %122 = vst [vmem:[%s3] sm:$0xff] %v118
    %123 = vst [vmem:[%s3 + $0x8] sm:$0xff] %v119
    %124 = vst [vmem:[%s3 + $0x10] sm:$0xff] %v120
    %125 = vst [vmem:[%s3 + $0x18] sm:$0xff] %v121
    // Predicated region
    $region26: #{vit_model_forward.32} parent=1 // pred_check
      _
    $region27: #{vit_model_forward.32} parent=1 // pred_check_branch
      %127 = sbr.rel (0) target = $region29
    $region28: #{vit_model_forward.32} parent=1 // pred_region
      _
    $region29: #{vit_model_forward.32} parent=1 // pred_fallthru
      _
    // Predicated region
    $region30: #{vit_model_forward.32} parent=1 // pred_check
      _
    $region31: #{vit_model_forward.32} parent=1 // pred_check_branch
      %129 = sbr.rel (0) target = $region33
    $region32: #{vit_model_forward.32} parent=1 // pred_region
      _
    $region33: #{vit_model_forward.32} parent=1 // pred_fallthru
      _
    %130 = vsyncpa [#allocation3], 1
    %131 = vsyncpa [#allocation5], 1

// kernel: vit_model_forward.24
$region0: #{vit_model_forward.24}
  #allocation0 [shape = 'u32[]', space=smem, size = 0x4, offset = 0x4, fixed_abs, tag = 'smem constant byte address 0x4 - core index']
  #allocation1 [shape = 'u32[144,128]{1,0:T(1,128)}', space=vmem, size = 0x12000, scoped, tag = 'internal scratch']
  #allocation2 [shape = 'f32[32,128]{1,0:T(8,128)}', space=vmem, size = 0x4000, scoped, tag = 'scratch operand']
  %s0 = inlined_call_operand.hbm [shape: f32[32,256], index: 0, kind: input, shape index: {}]
  %s1 = inlined_call_operand.hbm [shape: f32[256,128], index: 1, kind: input, shape index: {}]
  %s2 = inlined_call_operand.hbm [shape: f32[1,128], index: 2, kind: input, shape index: {}]
  %s3 = inlined_call_operand.hbm [shape: f32[32,128], index: 3, kind: input, shape index: {}]
  %s4 = inlined_call_operand.hbm [shape: f32[32,128], index: 4, kind: output, shape index: {}]
  %s5 = sld [smem:[#allocation0]]
  $region50: #{vit_model_forward.24} parent=0
    _
  %s7 = ssub.s32 1, %s5
  %s8 = scalar_select 0, %s7, %s5
  $region1: #{vit_model_forward.24} parent=0
    #allocation3 [shape = 'u8[32768]{0}', space=vmem, size = 0x8000, scoped, tag = 'input window, operand 0, single buffered']
    #allocation4 [shape = 's32[1]{0}', space=sflag, size = 0x4, scoped, tag = 'scoped memory for vit_model_forward.24']
    #allocation5 [shape = 's32[1]{0}', space=sflag, size = 0x4, scoped, tag = 'scoped memory for vit_model_forward.24']
    #allocation6 [shape = 'u8[131072]{0}', space=vmem, size = 0x20000, scoped, tag = 'input window, operand 1, single buffered']
    #allocation7 [shape = 's32[1]{0}', space=sflag, size = 0x4, scoped, tag = 'scoped memory for vit_model_forward.24']
    #allocation8 [shape = 'u8[512]{0}', space=vmem, size = 0x400, scoped, tag = 'input window, operand 2, single buffered']
    #allocation9 [shape = 'u8[16384]{0}', space=vmem, size = 0x4000, scoped, tag = 'input window, operand 3, single buffered']
    #allocation10 [shape = 's32[1]{0}', space=sflag, size = 0x4, scoped, tag = 'scoped memory for vit_model_forward.24']
    #allocation11 [shape = 'u8[16384]{0}', space=vmem, size = 0x4000, scoped, tag = 'output window, operand 0, single buffered']
    %9 = vsyncpa [#allocation4], 0
    %10 = vsyncpa [#allocation7], 0
    %11 = vsyncpa [#allocation10], 0
    %12 = vsyncpa [#allocation5], 0
    // Predicated region
    $region2: #{vit_model_forward.24} parent=1 // pred_check
      _
    $region3: #{vit_model_forward.24} parent=1 // pred_check_branch
      %14 = sbr.rel (0) target = $region5
    $region4: #{vit_model_forward.24} parent=1 // pred_region
      %s16 = ssub.s32 1024, 1024
      %17 = vsyncadd [#allocation4], %s16
      %s18 = sshll.u32 [#allocation3], 4
      %s19 = int_to_ptr.vmem [resolvable:$true] %s18
      %24 = dma.hbm_to_vmem [thread:$0]  %s0, 1024, %s19, [#allocation4], 256, 256, 16
    $region5: #{vit_model_forward.24} parent=1 // pred_fallthru
      _
    // Predicated region
    $region6: #{vit_model_forward.24} parent=1 // pred_check
      _
    $region7: #{vit_model_forward.24} parent=1 // pred_check_branch
      %26 = sbr.rel (0) target = $region9
    $region8: #{vit_model_forward.24} parent=1 // pred_region
      %s28 = ssub.s32 4096, 4096
      %29 = vsyncadd [#allocation7], %s28
      %s30 = sshll.u32 [#allocation6], 4
      %s31 = int_to_ptr.vmem [resolvable:$true] %s30
      %36 = dma.hbm_to_vmem [thread:$0]  %s1, 4096, %s31, [#allocation7], 128, 128, 8
    $region9: #{vit_model_forward.24} parent=1 // pred_fallthru
      _
    // Predicated region
    $region10: #{vit_model_forward.24} parent=1 // pred_check
      _
    $region11: #{vit_model_forward.24} parent=1 // pred_check_branch
      %38 = sbr.rel (0) target = $region13
    $region12: #{vit_model_forward.24} parent=1 // pred_region
      %s40 = ssub.s32 16, 16
      %41 = vsyncadd [#allocation7], %s40
      %s43 = sshll.u32 [#allocation8], 4
      %s44 = int_to_ptr.vmem [resolvable:$true] %s43
      %46 = dma.hbm_to_vmem [thread:$0]  %s2, 16, %s44, [#allocation7]
    $region13: #{vit_model_forward.24} parent=1 // pred_fallthru
      _
    // Predicated region
    $region14: #{vit_model_forward.24} parent=1 // pred_check
      _
    $region15: #{vit_model_forward.24} parent=1 // pred_check_branch
      %48 = sbr.rel (0) target = $region17
    $region16: #{vit_model_forward.24} parent=1 // pred_region
      %s50 = ssub.s32 512, 512
      %51 = vsyncadd [#allocation10], %s50
      %s52 = sshll.u32 [#allocation9], 4
      %s53 = int_to_ptr.vmem [resolvable:$true] %s52
      %58 = dma.hbm_to_vmem [thread:$0]  %s3, 512, %s53, [#allocation10], 128, 128, 8
    $region17: #{vit_model_forward.24} parent=1 // pred_fallthru
      _
    // Predicated region
    $region18: #{vit_model_forward.24} parent=1 // pred_check
      _
    $region19: #{vit_model_forward.24} parent=1 // pred_check_branch
      %60 = sbr.rel (0) target = $region21
    $region20: #{vit_model_forward.24} parent=1 // pred_region
      %61 = dma.done [#allocation4], 1024
    $region21: #{vit_model_forward.24} parent=1 // pred_fallthru
      _
    // Predicated region
    $region22: #{vit_model_forward.24} parent=1 // pred_check
      _
    $region23: #{vit_model_forward.24} parent=1 // pred_check_branch
      %63 = sbr.rel (0) target = $region25
    $region24: #{vit_model_forward.24} parent=1 // pred_region
      %64 = dma.done [#allocation7], 4096
    $region25: #{vit_model_forward.24} parent=1 // pred_fallthru
      _
    // Predicated region
    $region26: #{vit_model_forward.24} parent=1 // pred_check
      _
    $region27: #{vit_model_forward.24} parent=1 // pred_check_branch
      %66 = sbr.rel (0) target = $region29
    $region28: #{vit_model_forward.24} parent=1 // pred_region
      %67 = dma.done [#allocation7], 16
    $region29: #{vit_model_forward.24} parent=1 // pred_fallthru
      _
    // Predicated region
    $region30: #{vit_model_forward.24} parent=1 // pred_check
      _
    $region31: #{vit_model_forward.24} parent=1 // pred_check_branch
      %69 = sbr.rel (0) target = $region33
    $region32: #{vit_model_forward.24} parent=1 // pred_region
      %70 = dma.done [#allocation10], 512
    $region33: #{vit_model_forward.24} parent=1 // pred_fallthru
      _
    %p71 = scmp.eq.s32.totalorder 0, 0
    // Predicated region
    $region34: #{vit_model_forward.24} parent=1 // pred_check
      %p72 = pneg %p71
    $region35: #{vit_model_forward.24} parent=1 // pred_check_branch
      %74 = sbr.rel (%p72) target = $region37
    $region36: #{vit_model_forward.24} parent=1 // pred_region
      %75 = vst [vmem:[#allocation2] sm:$0xff] 0.0
      %76 = vst [vmem:[#allocation2 + $0x8] sm:$0xff] 0.0
      %77 = vst [vmem:[#allocation2 + $0x10] sm:$0xff] 0.0
      %78 = vst [vmem:[#allocation2 + $0x18] sm:$0xff] 0.0
    $region37: #{vit_model_forward.24} parent=1 // pred_fallthru
      _
    %v79 = vld [vmem:[#allocation3] sm:$0xff]
    %v80 = vld [vmem:[#allocation3 + $0x8] sm:$0xff]
    %v81 = vld [vmem:[#allocation3 + $0x10] sm:$0xff]
    %v82 = vld [vmem:[#allocation3 + $0x18] sm:$0xff]
    %v83 = vld [vmem:[#allocation3 + $0x20] sm:$0xff]
    %v84 = vld [vmem:[#allocation3 + $0x28] sm:$0xff]
    %v85 = vld [vmem:[#allocation3 + $0x30] sm:$0xff]
    %v86 = vld [vmem:[#allocation3 + $0x38] sm:$0xff]
    %v87 = vld [vmem:[#allocation6] sm:$0xff]
    %v88 = vld [vmem:[#allocation6 + $0x8] sm:$0xff]
    %v89 = vld [vmem:[#allocation6 + $0x10] sm:$0xff]
    %v90 = vld [vmem:[#allocation6 + $0x18] sm:$0xff]
    %v91 = vld [vmem:[#allocation6 + $0x20] sm:$0xff]
    %v92 = vld [vmem:[#allocation6 + $0x28] sm:$0xff]
    %v93 = vld [vmem:[#allocation6 + $0x30] sm:$0xff]
    %v94 = vld [vmem:[#allocation6 + $0x38] sm:$0xff]
    %v95 = vld [vmem:[#allocation6 + $0x40] sm:$0xff]
    %v96 = vld [vmem:[#allocation6 + $0x48] sm:$0xff]
    %v97 = vld [vmem:[#allocation6 + $0x50] sm:$0xff]
    %v98 = vld [vmem:[#allocation6 + $0x58] sm:$0xff]
    %v99 = vld [vmem:[#allocation6 + $0x60] sm:$0xff]
    %v100 = vld [vmem:[#allocation6 + $0x68] sm:$0xff]
    %v101 = vld [vmem:[#allocation6 + $0x70] sm:$0xff]
    %v102 = vld [vmem:[#allocation6 + $0x78] sm:$0xff]
    %v103 = vld [vmem:[#allocation6 + $0x80] sm:$0xff]
    %v104 = vld [vmem:[#allocation6 + $0x88] sm:$0xff]
    %v105 = vld [vmem:[#allocation6 + $0x90] sm:$0xff]
    %v106 = vld [vmem:[#allocation6 + $0x98] sm:$0xff]
    %v107 = vld [vmem:[#allocation6 + $0xa0] sm:$0xff]
    %v108 = vld [vmem:[#allocation6 + $0xa8] sm:$0xff]
    %v109 = vld [vmem:[#allocation6 + $0xb0] sm:$0xff]
    %v110 = vld [vmem:[#allocation6 + $0xb8] sm:$0xff]
    %v111 = vld [vmem:[#allocation6 + $0xc0] sm:$0xff]
    %v112 = vld [vmem:[#allocation6 + $0xc8] sm:$0xff]
    %v113 = vld [vmem:[#allocation6 + $0xd0] sm:$0xff]
    %v114 = vld [vmem:[#allocation6 + $0xd8] sm:$0xff]
    %v115 = vld [vmem:[#allocation6 + $0xe0] sm:$0xff]
    %v116 = vld [vmem:[#allocation6 + $0xe8] sm:$0xff]
    %v117 = vld [vmem:[#allocation6 + $0xf0] sm:$0xff]
    %v118 = vld [vmem:[#allocation6 + $0xf8] sm:$0xff]
    %v119 = vld [vmem:[#allocation2] sm:$0xff]
    %v120 = vld [vmem:[#allocation2 + $0x8] sm:$0xff]
    %v121 = vld [vmem:[#allocation2 + $0x10] sm:$0xff]
    %v122 = vld [vmem:[#allocation2 + $0x18] sm:$0xff]
    %123 = vmatprep.subr.mxu0 0.0
    %124 = vmatpush1.msra.mxu0 %v87
    %125 = vmatprep.subr.mxu0 0.0
    %126 = vmatpush1.msra.mxu0 %v88
    %127 = vmatprep.subr.mxu0 0.0
    %128 = vmatpush1.msra.mxu0 %v89
    %129 = vmatprep.subr.mxu0 0.0
    %130 = vmatpush1.msra.mxu0 %v90
    %131 = vmatprep.subr.mxu0 0.0
    %132 = vmatpush1.msra.mxu0 %v91
    %133 = vmatprep.subr.mxu0 0.0
    %134 = vmatpush1.msra.mxu0 %v92
    %135 = vmatprep.subr.mxu0 0.0
    %136 = vmatpush1.msra.mxu0 %v93
    %137 = vmatprep.subr.mxu0 0.0
    %138 = vmatpush1.msra.mxu0 %v94
    %139 = vmatprep.subr.mxu0 0.0
    %140 = vmatpush1.msra.mxu0 %v95
    %141 = vmatprep.subr.mxu0 0.0
    %142 = vmatpush1.msra.mxu0 %v96
    %143 = vmatprep.subr.mxu0 0.0
    %144 = vmatpush1.msra.mxu0 %v97
    %145 = vmatprep.subr.mxu0 0.0
    %146 = vmatpush1.msra.mxu0 %v98
    %147 = vmatprep.subr.mxu0 0.0
    %148 = vmatpush1.msra.mxu0 %v99
    %149 = vmatprep.subr.mxu0 0.0
    %150 = vmatpush1.msra.mxu0 %v100
    %151 = vmatprep.subr.mxu0 0.0
    %152 = vmatpush1.msra.mxu0 %v101
    %153 = vmatprep.subr.mxu0 0.0
    %154 = vmatpush1.msra.mxu0 %v102
    %155 = vmatprep.subr.mxu0 0.0
    %156 = vmatpush1.msra.mxu0 %v103
    %157 = vmatprep.subr.mxu0 0.0
    %158 = vmatpush1.msra.mxu0 %v104
    %159 = vmatprep.subr.mxu0 0.0
    %160 = vmatpush1.msra.mxu0 %v105
    %161 = vmatprep.subr.mxu0 0.0
    %162 = vmatpush1.msra.mxu0 %v106
    %163 = vmatprep.subr.mxu0 0.0
    %164 = vmatpush1.msra.mxu0 %v107
    %165 = vmatprep.subr.mxu0 0.0
    %166 = vmatpush1.msra.mxu0 %v108
    %167 = vmatprep.subr.mxu0 0.0
    %168 = vmatpush1.msra.mxu0 %v109
    %169 = vmatprep.subr.mxu0 0.0
    %170 = vmatpush1.msra.mxu0 %v110
    %171 = vmatprep.subr.mxu0 0.0
    %172 = vmatpush1.msra.mxu0 %v111
    %173 = vmatprep.subr.mxu0 0.0
    %174 = vmatpush1.msra.mxu0 %v112
    %175 = vmatprep.subr.mxu0 0.0
    %176 = vmatpush1.msra.mxu0 %v113
    %177 = vmatprep.subr.mxu0 0.0
    %178 = vmatpush1.msra.mxu0 %v114
    %179 = vmatprep.subr.mxu0 0.0
    %180 = vmatpush1.msra.mxu0 %v115
    %181 = vmatprep.subr.mxu0 0.0
    %182 = vmatpush1.msra.mxu0 %v116
    %183 = vmatprep.subr.mxu0 0.0
    %184 = vmatpush1.msra.mxu0 %v117
    %185 = vmatprep.subr.mxu0 0.0
    %186 = vmatpush1.msra.mxu0 %v118
    %187 = vmatprep.mubr.f32.mxu0 %v80
    %188 = vmatmul.mubr.f32.gmra.mrb[0].mxu0 %v79
    %v189 = vpop.f32.mrb[0].mxu0
    %v190 = vadd.f32 0.0, %v189
    %v191 = vpop.f32.mrb[0].mxu0
    %192 = vmatprep.mubr.f32.mxu0 %v82
    %193 = vmatmul.mubr.f32.gmra.mrb[0].mxu0 %v81
    %v194 = vpop.f32.mrb[0].mxu0
    %v195 = vadd.f32 0.0, %v194
    %v196 = vpop.f32.mrb[0].mxu0
    %197 = vmatprep.mubr.f32.mxu0 %v84
    %198 = vmatmul.mubr.f32.gmra.mrb[0].mxu0 %v83
    %v199 = vpop.f32.mrb[0].mxu0
    %v200 = vadd.f32 0.0, %v199
    %v201 = vpop.f32.mrb[0].mxu0
    %202 = vmatprep.mubr.f32.mxu0 %v86
    %203 = vmatmul.mubr.f32.gmra.mrb[0].mxu0 %v85
    %v204 = vpop.f32.mrb[0].mxu0
    %v205 = vadd.f32 0.0, %v204
    %v206 = vpop.f32.mrb[0].mxu0
    %207 = vdwg.mxu0
    %v208 = vadd.f32 %v119, %v190
    %v209 = vadd.f32 %v120, %v195
    %v210 = vadd.f32 %v121, %v200
    %v211 = vadd.f32 %v122, %v205
    %212 = vst [vmem:[#allocation2] sm:$0xff] %v208
    %213 = vst [vmem:[#allocation2 + $0x8] sm:$0xff] %v209
    %214 = vst [vmem:[#allocation2 + $0x10] sm:$0xff] %v210
    %215 = vst [vmem:[#allocation2 + $0x18] sm:$0xff] %v211
    // Predicated region
    $region38: #{vit_model_forward.24} parent=1 // pred_check
      %p216 = pneg %p71
    $region39: #{vit_model_forward.24} parent=1 // pred_check_branch
      %218 = sbr.rel (%p216) target = $region41
    $region40: #{vit_model_forward.24} parent=1 // pred_region
      %v219 = vld [vmem:[#allocation2] sm:$0xff]
      %v220 = vld [vmem:[#allocation2 + $0x8] sm:$0xff]
      %v221 = vld [vmem:[#allocation2 + $0x10] sm:$0xff]
      %v222 = vld [vmem:[#allocation2 + $0x18] sm:$0xff]
      %v223 = vld [vmem:[#allocation8] sm:$0x1]
      %v225 = vlaneseq
      %v226 = vshrl.u32 %v225, 7
      %v227 = vsub.s32 0, %v226
      %v228 = vrot.slane %v223, %v227
      %v230 = vadd.f32 %v219, %v228
      %v231 = vadd.f32 %v220, %v228
      %v232 = vadd.f32 %v221, %v228
      %v233 = vadd.f32 %v222, %v228
      %v234 = vld [vmem:[#allocation9] sm:$0xff]
      %v235 = vld [vmem:[#allocation9 + $0x8] sm:$0xff]
      %v236 = vld [vmem:[#allocation9 + $0x10] sm:$0xff]
      %v237 = vld [vmem:[#allocation9 + $0x18] sm:$0xff]
      %v238 = vadd.f32 %v230, %v234
      %v239 = vadd.f32 %v231, %v235
      %v240 = vadd.f32 %v232, %v236
      %v241 = vadd.f32 %v233, %v237
      %242 = vst [vmem:[#allocation11] sm:$0xff] %v238
      %243 = vst [vmem:[#allocation11 + $0x8] sm:$0xff] %v239
      %244 = vst [vmem:[#allocation11 + $0x10] sm:$0xff] %v240
      %245 = vst [vmem:[#allocation11 + $0x18] sm:$0xff] %v241
    $region41: #{vit_model_forward.24} parent=1 // pred_fallthru
      _
    // Predicated region
    $region42: #{vit_model_forward.24} parent=1 // pred_check
      _
    $region43: #{vit_model_forward.24} parent=1 // pred_check_branch
      %247 = sbr.rel (0) target = $region45
    $region44: #{vit_model_forward.24} parent=1 // pred_region
      %s249 = ssub.s32 512, 512
      %250 = vsyncadd [#allocation5], %s249
      %s251 = sshll.u32 [#allocation11], 4
      %s252 = int_to_ptr.vmem [resolvable:$true] %s251
      %257 = dma.vmem_to_hbm [thread:$0]  %s252, 512, %s4, [#allocation5], 128, 128, 8
    $region45: #{vit_model_forward.24} parent=1 // pred_fallthru
      _
    // Predicated region
    $region46: #{vit_model_forward.24} parent=1 // pred_check
      _
    $region47: #{vit_model_forward.24} parent=1 // pred_check_branch
      %259 = sbr.rel (0) target = $region49
    $region48: #{vit_model_forward.24} parent=1 // pred_region
      %260 = dma.done [#allocation5], 512
    $region49: #{vit_model_forward.24} parent=1 // pred_fallthru
      _
    %261 = vsyncpa [#allocation4], 1
    %262 = vsyncpa [#allocation7], 1
    %263 = vsyncpa [#allocation10], 1
    %264 = vsyncpa [#allocation5], 1

// kernel: vit_model_forward.33
$region0: #{vit_model_forward.33}
  #allocation0 [shape = 'u32[]', space=smem, size = 0x4, offset = 0x4, fixed_abs, tag = 'smem constant byte address 0x4 - core index']
  #allocation1 [shape = 'u32[144,128]{1,0:T(1,128)}', space=vmem, size = 0x12000, scoped, tag = 'internal scratch']
  #allocation2 [shape = 'f32[2,128]{1,0:T(2,128)}', space=vmem, size = 0x400, scoped, tag = 'scratch operand']
  %s0 = inlined_call_operand.hbm [shape: f32[2,128], index: 0, kind: input, shape index: {}]
  %s1 = inlined_call_operand.hbm [shape: f32[128,128], index: 1, kind: input, shape index: {}]
  %s2 = inlined_call_operand.hbm [shape: f32[1,128], index: 2, kind: input, shape index: {}]
  %s3 = inlined_call_operand.hbm [shape: f32[2,128], index: 3, kind: output, shape index: {}]
  %s4 = sld [smem:[#allocation0]]
  $region42: #{vit_model_forward.33} parent=0
    _
  %s6 = ssub.s32 1, %s4
  %s7 = scalar_select 0, %s6, %s4
  $region1: #{vit_model_forward.33} parent=0
    #allocation3 [shape = 'u8[1024]{0}', space=vmem, size = 0x400, scoped, tag = 'input window, operand 0, single buffered']
    #allocation4 [shape = 's32[1]{0}', space=sflag, size = 0x4, scoped, tag = 'scoped memory for vit_model_forward.33']
    #allocation5 [shape = 's32[1]{0}', space=sflag, size = 0x4, scoped, tag = 'scoped memory for vit_model_forward.33']
    #allocation6 [shape = 'u8[65536]{0}', space=vmem, size = 0x10000, scoped, tag = 'input window, operand 1, single buffered']
    #allocation7 [shape = 's32[1]{0}', space=sflag, size = 0x4, scoped, tag = 'scoped memory for vit_model_forward.33']
    #allocation8 [shape = 'u8[512]{0}', space=vmem, size = 0x400, scoped, tag = 'input window, operand 2, single buffered']
    #allocation9 [shape = 'u8[1024]{0}', space=vmem, size = 0x400, scoped, tag = 'output window, operand 0, single buffered']
    %8 = vsyncpa [#allocation4], 0
    %9 = vsyncpa [#allocation7], 0
    %10 = vsyncpa [#allocation5], 0
    // Predicated region
    $region2: #{vit_model_forward.33} parent=1 // pred_check
      _
    $region3: #{vit_model_forward.33} parent=1 // pred_check_branch
      %12 = sbr.rel (0) target = $region5
    $region4: #{vit_model_forward.33} parent=1 // pred_region
      %s14 = ssub.s32 32, 32
      %15 = vsyncadd [#allocation4], %s14
      %s17 = sshll.u32 [#allocation3], 4
      %s18 = int_to_ptr.vmem [resolvable:$true] %s17
      %20 = dma.hbm_to_vmem [thread:$0]  %s0, 32, %s18, [#allocation4]
    $region5: #{vit_model_forward.33} parent=1 // pred_fallthru
      _
    // Predicated region
    $region6: #{vit_model_forward.33} parent=1 // pred_check
      _
    $region7: #{vit_model_forward.33} parent=1 // pred_check_branch
      %22 = sbr.rel (0) target = $region9
    $region8: #{vit_model_forward.33} parent=1 // pred_region
      %s24 = ssub.s32 2048, 2048
      %25 = vsyncadd [#allocation7], %s24
      %s26 = sshll.u32 [#allocation6], 4
      %s27 = int_to_ptr.vmem [resolvable:$true] %s26
      %32 = dma.hbm_to_vmem [thread:$0]  %s1, 2048, %s27, [#allocation7], 128, 128, 8
    $region9: #{vit_model_forward.33} parent=1 // pred_fallthru
      _
    // Predicated region
    $region10: #{vit_model_forward.33} parent=1 // pred_check
      _
    $region11: #{vit_model_forward.33} parent=1 // pred_check_branch
      %34 = sbr.rel (0) target = $region13
    $region12: #{vit_model_forward.33} parent=1 // pred_region
      %s36 = ssub.s32 16, 16
      %37 = vsyncadd [#allocation7], %s36
      %s39 = sshll.u32 [#allocation8], 4
      %s40 = int_to_ptr.vmem [resolvable:$true] %s39
      %42 = dma.hbm_to_vmem [thread:$0]  %s2, 16, %s40, [#allocation7]
    $region13: #{vit_model_forward.33} parent=1 // pred_fallthru
      _
    // Predicated region
    $region14: #{vit_model_forward.33} parent=1 // pred_check
      _
    $region15: #{vit_model_forward.33} parent=1 // pred_check_branch
      %44 = sbr.rel (0) target = $region17
    $region16: #{vit_model_forward.33} parent=1 // pred_region
      %45 = dma.done [#allocation4], 32
    $region17: #{vit_model_forward.33} parent=1 // pred_fallthru
      _
    // Predicated region
    $region18: #{vit_model_forward.33} parent=1 // pred_check
      _
    $region19: #{vit_model_forward.33} parent=1 // pred_check_branch
      %47 = sbr.rel (0) target = $region21
    $region20: #{vit_model_forward.33} parent=1 // pred_region
      %48 = dma.done [#allocation7], 2048
    $region21: #{vit_model_forward.33} parent=1 // pred_fallthru
      _
    // Predicated region
    $region22: #{vit_model_forward.33} parent=1 // pred_check
      _
    $region23: #{vit_model_forward.33} parent=1 // pred_check_branch
      %50 = sbr.rel (0) target = $region25
    $region24: #{vit_model_forward.33} parent=1 // pred_region
      %51 = dma.done [#allocation7], 16
    $region25: #{vit_model_forward.33} parent=1 // pred_fallthru
      _
    %p52 = scmp.eq.s32.totalorder 0, 0
    // Predicated region
    $region26: #{vit_model_forward.33} parent=1 // pred_check
      %p53 = pneg %p52
    $region27: #{vit_model_forward.33} parent=1 // pred_check_branch
      %55 = sbr.rel (%p53) target = $region29
    $region28: #{vit_model_forward.33} parent=1 // pred_region
      %56 = vst [vmem:[#allocation2] sm:$0x3] 0.0
    $region29: #{vit_model_forward.33} parent=1 // pred_fallthru
      _
    %v57 = vld [vmem:[#allocation3] sm:$0x3]
    %v58 = vld [vmem:[#allocation6] sm:$0xff]
    %v59 = vld [vmem:[#allocation6 + $0x8] sm:$0xff]
    %v60 = vld [vmem:[#allocation6 + $0x10] sm:$0xff]
    %v61 = vld [vmem:[#allocation6 + $0x18] sm:$0xff]
    %v62 = vld [vmem:[#allocation6 + $0x20] sm:$0xff]
    %v63 = vld [vmem:[#allocation6 + $0x28] sm:$0xff]
    %v64 = vld [vmem:[#allocation6 + $0x30] sm:$0xff]
    %v65 = vld [vmem:[#allocation6 + $0x38] sm:$0xff]
    %v66 = vld [vmem:[#allocation6 + $0x40] sm:$0xff]
    %v67 = vld [vmem:[#allocation6 + $0x48] sm:$0xff]
    %v68 = vld [vmem:[#allocation6 + $0x50] sm:$0xff]
    %v69 = vld [vmem:[#allocation6 + $0x58] sm:$0xff]
    %v70 = vld [vmem:[#allocation6 + $0x60] sm:$0xff]
    %v71 = vld [vmem:[#allocation6 + $0x68] sm:$0xff]
    %v72 = vld [vmem:[#allocation6 + $0x70] sm:$0xff]
    %v73 = vld [vmem:[#allocation6 + $0x78] sm:$0xff]
    %v74 = vld [vmem:[#allocation2] sm:$0x3]
    %75 = vmatprep.subr.mxu0 0.0
    %76 = vmatpush1.msra.mxu0 %v58
    %77 = vmatprep.subr.mxu0 0.0
    %78 = vmatpush1.msra.mxu0 %v59
    %79 = vmatprep.subr.mxu0 0.0
    %80 = vmatpush1.msra.mxu0 %v60
    %81 = vmatprep.subr.mxu0 0.0
    %82 = vmatpush1.msra.mxu0 %v61
    %83 = vmatprep.subr.mxu0 0.0
    %84 = vmatpush1.msra.mxu0 %v62
    %85 = vmatprep.subr.mxu0 0.0
    %86 = vmatpush1.msra.mxu0 %v63
    %87 = vmatprep.subr.mxu0 0.0
    %88 = vmatpush1.msra.mxu0 %v64
    %89 = vmatprep.subr.mxu0 0.0
    %90 = vmatpush1.msra.mxu0 %v65
    %91 = vmatprep.subr.mxu0 0.0
    %92 = vmatpush1.msra.mxu0 %v66
    %93 = vmatprep.subr.mxu0 0.0
    %94 = vmatpush1.msra.mxu0 %v67
    %95 = vmatprep.subr.mxu0 0.0
    %96 = vmatpush1.msra.mxu0 %v68
    %97 = vmatprep.subr.mxu0 0.0
    %98 = vmatpush1.msra.mxu0 %v69
    %99 = vmatprep.subr.mxu0 0.0
    %100 = vmatpush1.msra.mxu0 %v70
    %101 = vmatprep.subr.mxu0 0.0
    %102 = vmatpush1.msra.mxu0 %v71
    %103 = vmatprep.subr.mxu0 0.0
    %104 = vmatpush1.msra.mxu0 %v72
    %105 = vmatprep.subr.mxu0 0.0
    %106 = vmatpush1.msra.mxu0 %v73
    %107 = vmatprep.subr.mxu0 0.0
    %108 = vmatpush1.msra.mxu0 0.0
    %109 = vmatprep.subr.mxu0 0.0
    %110 = vmatpush1.msra.mxu0 0.0
    %111 = vmatprep.subr.mxu0 0.0
    %112 = vmatpush1.msra.mxu0 0.0
    %113 = vmatprep.subr.mxu0 0.0
    %114 = vmatpush1.msra.mxu0 0.0
    %115 = vmatprep.subr.mxu0 0.0
    %116 = vmatpush1.msra.mxu0 0.0
    %117 = vmatprep.subr.mxu0 0.0
    %118 = vmatpush1.msra.mxu0 0.0
    %119 = vmatprep.subr.mxu0 0.0
    %120 = vmatpush1.msra.mxu0 0.0
    %121 = vmatprep.subr.mxu0 0.0
    %122 = vmatpush1.msra.mxu0 0.0
    %123 = vmatprep.subr.mxu0 0.0
    %124 = vmatpush1.msra.mxu0 0.0
    %125 = vmatprep.subr.mxu0 0.0
    %126 = vmatpush1.msra.mxu0 0.0
    %127 = vmatprep.subr.mxu0 0.0
    %128 = vmatpush1.msra.mxu0 0.0
    %129 = vmatprep.subr.mxu0 0.0
    %130 = vmatpush1.msra.mxu0 0.0
    %131 = vmatprep.subr.mxu0 0.0
    %132 = vmatpush1.msra.mxu0 0.0
    %133 = vmatprep.subr.mxu0 0.0
    %134 = vmatpush1.msra.mxu0 0.0
    %135 = vmatprep.subr.mxu0 0.0
    %136 = vmatpush1.msra.mxu0 0.0
    %137 = vmatprep.subr.mxu0 0.0
    %138 = vmatpush1.msra.mxu0 0.0
    %139 = vmatprep.mubr.f32.mxu0 0.0
    %140 = vmatmul.mubr.f32.gmra.mrb[0].mxu0 %v57
    %v141 = vpop.f32.mrb[0].mxu0
    %v142 = vadd.f32 0.0, %v141
    %v143 = vpop.f32.mrb[0].mxu0
    %144 = vdwg.mxu0
    %v145 = vadd.f32 %v74, %v142
    %146 = vst [vmem:[#allocation2] sm:$0x3] %v145
    // Predicated region
    $region30: #{vit_model_forward.33} parent=1 // pred_check
      %p147 = pneg %p52
    $region31: #{vit_model_forward.33} parent=1 // pred_check_branch
      %149 = sbr.rel (%p147) target = $region33
    $region32: #{vit_model_forward.33} parent=1 // pred_region
      %v150 = vld [vmem:[#allocation2] sm:$0x3]
      %v151 = vld [vmem:[#allocation8] sm:$0x1]
      %v153 = vlaneseq
      %v154 = vshrl.u32 %v153, 7
      %v155 = vsub.s32 0, %v154
      %v156 = vrot.slane %v151, %v155
      %v158 = vadd.f32 %v150, %v156
      %v159 = vtanh.pop %v158
      %160 = vst [vmem:[#allocation9] sm:$0x3] %v159
    $region33: #{vit_model_forward.33} parent=1 // pred_fallthru
      _
    // Predicated region
    $region34: #{vit_model_forward.33} parent=1 // pred_check
      _
    $region35: #{vit_model_forward.33} parent=1 // pred_check_branch
      %162 = sbr.rel (0) target = $region37
    $region36: #{vit_model_forward.33} parent=1 // pred_region
      %s164 = ssub.s32 32, 32
      %165 = vsyncadd [#allocation5], %s164
      %s167 = sshll.u32 [#allocation9], 4
      %s168 = int_to_ptr.vmem [resolvable:$true] %s167
      %170 = dma.vmem_to_hbm [thread:$0]  %s168, 32, %s3, [#allocation5]
    $region37: #{vit_model_forward.33} parent=1 // pred_fallthru
      _
    // Predicated region
    $region38: #{vit_model_forward.33} parent=1 // pred_check
      _
    $region39: #{vit_model_forward.33} parent=1 // pred_check_branch
      %172 = sbr.rel (0) target = $region41
    $region40: #{vit_model_forward.33} parent=1 // pred_region
      %173 = dma.done [#allocation5], 32
    $region41: #{vit_model_forward.33} parent=1 // pred_fallthru
      _
    %174 = vsyncpa [#allocation4], 1
    %175 = vsyncpa [#allocation7], 1
    %176 = vsyncpa [#allocation5], 1

// kernel: vit_model_forward.23
$region0: #{vit_model_forward.23}
  #allocation0 [shape = 'u32[]', space=smem, size = 0x4, offset = 0x4, fixed_abs, tag = 'smem constant byte address 0x4 - core index']
  #allocation1 [shape = 'u32[144,128]{1,0:T(1,128)}', space=vmem, size = 0x12000, scoped, tag = 'internal scratch']
  #allocation2 [shape = 'f32[32,256]{1,0:T(8,128)}', space=vmem, size = 0x8000, scoped, tag = 'scratch operand']
  %s0 = inlined_call_operand.hbm [shape: f32[32,128], index: 0, kind: input, shape index: {}]
  %s1 = inlined_call_operand.hbm [shape: f32[128,256], index: 1, kind: input, shape index: {}]
  %s2 = inlined_call_operand.hbm [shape: f32[1,256], index: 2, kind: input, shape index: {}]
  %s3 = inlined_call_operand.hbm [shape: f32[32,256], index: 3, kind: output, shape index: {}]
  %s4 = sld [smem:[#allocation0]]
  $region42: #{vit_model_forward.23} parent=0
    _
  %s6 = ssub.s32 1, %s4
  %s7 = scalar_select 0, %s6, %s4
  $region1: #{vit_model_forward.23} parent=0
    #allocation3 [shape = 'u8[16384]{0}', space=vmem, size = 0x4000, scoped, tag = 'input window, operand 0, single buffered']
    #allocation4 [shape = 's32[1]{0}', space=sflag, size = 0x4, scoped, tag = 'scoped memory for vit_model_forward.23']
    #allocation5 [shape = 's32[1]{0}', space=sflag, size = 0x4, scoped, tag = 'scoped memory for vit_model_forward.23']
    #allocation6 [shape = 'u8[131072]{0}', space=vmem, size = 0x20000, scoped, tag = 'input window, operand 1, single buffered']
    #allocation7 [shape = 's32[1]{0}', space=sflag, size = 0x4, scoped, tag = 'scoped memory for vit_model_forward.23']
    #allocation8 [shape = 'u8[1024]{0}', space=vmem, size = 0x400, scoped, tag = 'input window, operand 2, single buffered']
    #allocation9 [shape = 'u8[32768]{0}', space=vmem, size = 0x8000, scoped, tag = 'output window, operand 0, single buffered']
    %8 = vsyncpa [#allocation4], 0
    %9 = vsyncpa [#allocation7], 0
    %10 = vsyncpa [#allocation5], 0
    // Predicated region
    $region2: #{vit_model_forward.23} parent=1 // pred_check
      _
    $region3: #{vit_model_forward.23} parent=1 // pred_check_branch
      %12 = sbr.rel (0) target = $region5
    $region4: #{vit_model_forward.23} parent=1 // pred_region
      %s14 = ssub.s32 512, 512
      %15 = vsyncadd [#allocation4], %s14
      %s16 = sshll.u32 [#allocation3], 4
      %s17 = int_to_ptr.vmem [resolvable:$true] %s16
      %22 = dma.hbm_to_vmem [thread:$0]  %s0, 512, %s17, [#allocation4], 128, 128, 8
    $region5: #{vit_model_forward.23} parent=1 // pred_fallthru
      _
    // Predicated region
    $region6: #{vit_model_forward.23} parent=1 // pred_check
      _
    $region7: #{vit_model_forward.23} parent=1 // pred_check_branch
      %24 = sbr.rel (0) target = $region9
    $region8: #{vit_model_forward.23} parent=1 // pred_region
      %s26 = ssub.s32 4096, 4096
      %27 = vsyncadd [#allocation7], %s26
      %s28 = sshll.u32 [#allocation6], 4
      %s29 = int_to_ptr.vmem [resolvable:$true] %s28
      %34 = dma.hbm_to_vmem [thread:$0]  %s1, 4096, %s29, [#allocation7], 256, 256, 16
    $region9: #{vit_model_forward.23} parent=1 // pred_fallthru
      _
    // Predicated region
    $region10: #{vit_model_forward.23} parent=1 // pred_check
      _
    $region11: #{vit_model_forward.23} parent=1 // pred_check_branch
      %36 = sbr.rel (0) target = $region13
    $region12: #{vit_model_forward.23} parent=1 // pred_region
      %s38 = ssub.s32 32, 32
      %39 = vsyncadd [#allocation7], %s38
      %s41 = sshll.u32 [#allocation8], 4
      %s42 = int_to_ptr.vmem [resolvable:$true] %s41
      %44 = dma.hbm_to_vmem [thread:$0]  %s2, 32, %s42, [#allocation7]
    $region13: #{vit_model_forward.23} parent=1 // pred_fallthru
      _
    // Predicated region
    $region14: #{vit_model_forward.23} parent=1 // pred_check
      _
    $region15: #{vit_model_forward.23} parent=1 // pred_check_branch
      %46 = sbr.rel (0) target = $region17
    $region16: #{vit_model_forward.23} parent=1 // pred_region
      %47 = dma.done [#allocation4], 512
    $region17: #{vit_model_forward.23} parent=1 // pred_fallthru
      _
    // Predicated region
    $region18: #{vit_model_forward.23} parent=1 // pred_check
      _
    $region19: #{vit_model_forward.23} parent=1 // pred_check_branch
      %49 = sbr.rel (0) target = $region21
    $region20: #{vit_model_forward.23} parent=1 // pred_region
      %50 = dma.done [#allocation7], 4096
    $region21: #{vit_model_forward.23} parent=1 // pred_fallthru
      _
    // Predicated region
    $region22: #{vit_model_forward.23} parent=1 // pred_check
      _
    $region23: #{vit_model_forward.23} parent=1 // pred_check_branch
      %52 = sbr.rel (0) target = $region25
    $region24: #{vit_model_forward.23} parent=1 // pred_region
      %53 = dma.done [#allocation7], 32
    $region25: #{vit_model_forward.23} parent=1 // pred_fallthru
      _
    %p54 = scmp.eq.s32.totalorder 0, 0
    // Predicated region
    $region26: #{vit_model_forward.23} parent=1 // pred_check
      %p55 = pneg %p54
    $region27: #{vit_model_forward.23} parent=1 // pred_check_branch
      %57 = sbr.rel (%p55) target = $region29
    $region28: #{vit_model_forward.23} parent=1 // pred_region
      %58 = vst [vmem:[#allocation2] sm:$0xff] 0.0
      %59 = vst [vmem:[#allocation2 + $0x8] sm:$0xff] 0.0
      %60 = vst [vmem:[#allocation2 + $0x10] sm:$0xff] 0.0
      %61 = vst [vmem:[#allocation2 + $0x18] sm:$0xff] 0.0
      %62 = vst [vmem:[#allocation2 + $0x20] sm:$0xff] 0.0
      %63 = vst [vmem:[#allocation2 + $0x28] sm:$0xff] 0.0
      %64 = vst [vmem:[#allocation2 + $0x30] sm:$0xff] 0.0
      %65 = vst [vmem:[#allocation2 + $0x38] sm:$0xff] 0.0
    $region29: #{vit_model_forward.23} parent=1 // pred_fallthru
      _
    %v66 = vld [vmem:[#allocation3] sm:$0xff]
    %v67 = vld [vmem:[#allocation3 + $0x8] sm:$0xff]
    %v68 = vld [vmem:[#allocation3 + $0x10] sm:$0xff]
    %v69 = vld [vmem:[#allocation3 + $0x18] sm:$0xff]
    %v70 = vld [vmem:[#allocation6] sm:$0xff]
    %v71 = vld [vmem:[#allocation6 + $0x8] sm:$0xff]
    %v72 = vld [vmem:[#allocation6 + $0x10] sm:$0xff]
    %v73 = vld [vmem:[#allocation6 + $0x18] sm:$0xff]
    %v74 = vld [vmem:[#allocation6 + $0x20] sm:$0xff]
    %v75 = vld [vmem:[#allocation6 + $0x28] sm:$0xff]
    %v76 = vld [vmem:[#allocation6 + $0x30] sm:$0xff]
    %v77 = vld [vmem:[#allocation6 + $0x38] sm:$0xff]
    %v78 = vld [vmem:[#allocation6 + $0x40] sm:$0xff]
    %v79 = vld [vmem:[#allocation6 + $0x48] sm:$0xff]
    %v80 = vld [vmem:[#allocation6 + $0x50] sm:$0xff]
    %v81 = vld [vmem:[#allocation6 + $0x58] sm:$0xff]
    %v82 = vld [vmem:[#allocation6 + $0x60] sm:$0xff]
    %v83 = vld [vmem:[#allocation6 + $0x68] sm:$0xff]
    %v84 = vld [vmem:[#allocation6 + $0x70] sm:$0xff]
    %v85 = vld [vmem:[#allocation6 + $0x78] sm:$0xff]
    %v86 = vld [vmem:[#allocation6 + $0x80] sm:$0xff]
    %v87 = vld [vmem:[#allocation6 + $0x88] sm:$0xff]
    %v88 = vld [vmem:[#allocation6 + $0x90] sm:$0xff]
    %v89 = vld [vmem:[#allocation6 + $0x98] sm:$0xff]
    %v90 = vld [vmem:[#allocation6 + $0xa0] sm:$0xff]
    %v91 = vld [vmem:[#allocation6 + $0xa8] sm:$0xff]
    %v92 = vld [vmem:[#allocation6 + $0xb0] sm:$0xff]
    %v93 = vld [vmem:[#allocation6 + $0xb8] sm:$0xff]
    %v94 = vld [vmem:[#allocation6 + $0xc0] sm:$0xff]
    %v95 = vld [vmem:[#allocation6 + $0xc8] sm:$0xff]
    %v96 = vld [vmem:[#allocation6 + $0xd0] sm:$0xff]
    %v97 = vld [vmem:[#allocation6 + $0xd8] sm:$0xff]
    %v98 = vld [vmem:[#allocation6 + $0xe0] sm:$0xff]
    %v99 = vld [vmem:[#allocation6 + $0xe8] sm:$0xff]
    %v100 = vld [vmem:[#allocation6 + $0xf0] sm:$0xff]
    %v101 = vld [vmem:[#allocation6 + $0xf8] sm:$0xff]
    %v102 = vld [vmem:[#allocation2] sm:$0xff]
    %v103 = vld [vmem:[#allocation2 + $0x8] sm:$0xff]
    %v104 = vld [vmem:[#allocation2 + $0x10] sm:$0xff]
    %v105 = vld [vmem:[#allocation2 + $0x18] sm:$0xff]
    %v106 = vld [vmem:[#allocation2 + $0x20] sm:$0xff]
    %v107 = vld [vmem:[#allocation2 + $0x28] sm:$0xff]
    %v108 = vld [vmem:[#allocation2 + $0x30] sm:$0xff]
    %v109 = vld [vmem:[#allocation2 + $0x38] sm:$0xff]
    %110 = vmatprep.subr.mxu0 %v71
    %111 = vmatpush1.msra.mxu0 %v70
    %112 = vmatprep.subr.mxu0 %v73
    %113 = vmatpush1.msra.mxu0 %v72
    %114 = vmatprep.subr.mxu0 %v75
    %115 = vmatpush1.msra.mxu0 %v74
    %116 = vmatprep.subr.mxu0 %v77
    %117 = vmatpush1.msra.mxu0 %v76
    %118 = vmatprep.subr.mxu0 %v79
    %119 = vmatpush1.msra.mxu0 %v78
    %120 = vmatprep.subr.mxu0 %v81
    %121 = vmatpush1.msra.mxu0 %v80
    %122 = vmatprep.subr.mxu0 %v83
    %123 = vmatpush1.msra.mxu0 %v82
    %124 = vmatprep.subr.mxu0 %v85
    %125 = vmatpush1.msra.mxu0 %v84
    %126 = vmatprep.subr.mxu0 %v87
    %127 = vmatpush1.msra.mxu0 %v86
    %128 = vmatprep.subr.mxu0 %v89
    %129 = vmatpush1.msra.mxu0 %v88
    %130 = vmatprep.subr.mxu0 %v91
    %131 = vmatpush1.msra.mxu0 %v90
    %132 = vmatprep.subr.mxu0 %v93
    %133 = vmatpush1.msra.mxu0 %v92
    %134 = vmatprep.subr.mxu0 %v95
    %135 = vmatpush1.msra.mxu0 %v94
    %136 = vmatprep.subr.mxu0 %v97
    %137 = vmatpush1.msra.mxu0 %v96
    %138 = vmatprep.subr.mxu0 %v99
    %139 = vmatpush1.msra.mxu0 %v98
    %140 = vmatprep.subr.mxu0 %v101
    %141 = vmatpush1.msra.mxu0 %v100
    %142 = vmatprep.subr.mxu0 0.0
    %143 = vmatpush1.msra.mxu0 0.0
    %144 = vmatprep.subr.mxu0 0.0
    %145 = vmatpush1.msra.mxu0 0.0
    %146 = vmatprep.subr.mxu0 0.0
    %147 = vmatpush1.msra.mxu0 0.0
    %148 = vmatprep.subr.mxu0 0.0
    %149 = vmatpush1.msra.mxu0 0.0
    %150 = vmatprep.subr.mxu0 0.0
    %151 = vmatpush1.msra.mxu0 0.0
    %152 = vmatprep.subr.mxu0 0.0
    %153 = vmatpush1.msra.mxu0 0.0
    %154 = vmatprep.subr.mxu0 0.0
    %155 = vmatpush1.msra.mxu0 0.0
    %156 = vmatprep.subr.mxu0 0.0
    %157 = vmatpush1.msra.mxu0 0.0
    %158 = vmatprep.subr.mxu0 0.0
    %159 = vmatpush1.msra.mxu0 0.0
    %160 = vmatprep.subr.mxu0 0.0
    %161 = vmatpush1.msra.mxu0 0.0
    %162 = vmatprep.subr.mxu0 0.0
    %163 = vmatpush1.msra.mxu0 0.0
    %164 = vmatprep.subr.mxu0 0.0
    %165 = vmatpush1.msra.mxu0 0.0
    %166 = vmatprep.subr.mxu0 0.0
    %167 = vmatpush1.msra.mxu0 0.0
    %168 = vmatprep.subr.mxu0 0.0
    %169 = vmatpush1.msra.mxu0 0.0
    %170 = vmatprep.subr.mxu0 0.0
    %171 = vmatpush1.msra.mxu0 0.0
    %172 = vmatprep.subr.mxu0 0.0
    %173 = vmatpush1.msra.mxu0 0.0
    %174 = vmatprep.mubr.f32.mxu0 0.0
    %175 = vmatmul.mubr.f32.gmra.mrb[0].mxu0 %v66
    %v176 = vpop.f32.mrb[0].mxu0
    %v177 = vadd.f32 0.0, %v176
    %v178 = vpop.f32.mrb[0].mxu0
    %v179 = vadd.f32 0.0, %v178
    %180 = vmatprep.mubr.f32.mxu0 0.0
    %181 = vmatmul.mubr.f32.gmra.mrb[0].mxu0 %v67
    %v182 = vpop.f32.mrb[0].mxu0
    %v183 = vadd.f32 0.0, %v182
    %v184 = vpop.f32.mrb[0].mxu0
    %v185 = vadd.f32 0.0, %v184
    %186 = vmatprep.mubr.f32.mxu0 0.0
    %187 = vmatmul.mubr.f32.gmra.mrb[0].mxu0 %v68
    %v188 = vpop.f32.mrb[0].mxu0
    %v189 = vadd.f32 0.0, %v188
    %v190 = vpop.f32.mrb[0].mxu0
    %v191 = vadd.f32 0.0, %v190
    %192 = vmatprep.mubr.f32.mxu0 0.0
    %193 = vmatmul.mubr.f32.gmra.mrb[0].mxu0 %v69
    %v194 = vpop.f32.mrb[0].mxu0
    %v195 = vadd.f32 0.0, %v194
    %v196 = vpop.f32.mrb[0].mxu0
    %v197 = vadd.f32 0.0, %v196
    %198 = vdwg.mxu0
    %v199 = vadd.f32 %v102, %v177
    %v200 = vadd.f32 %v103, %v179
    %v201 = vadd.f32 %v104, %v183
    %v202 = vadd.f32 %v105, %v185
    %v203 = vadd.f32 %v106, %v189
    %v204 = vadd.f32 %v107, %v191
    %v205 = vadd.f32 %v108, %v195
    %v206 = vadd.f32 %v109, %v197
    %207 = vst [vmem:[#allocation2] sm:$0xff] %v199
    %208 = vst [vmem:[#allocation2 + $0x8] sm:$0xff] %v200
    %209 = vst [vmem:[#allocation2 + $0x10] sm:$0xff] %v201
    %210 = vst [vmem:[#allocation2 + $0x18] sm:$0xff] %v202
    %211 = vst [vmem:[#allocation2 + $0x20] sm:$0xff] %v203
    %212 = vst [vmem:[#allocation2 + $0x28] sm:$0xff] %v204
    %213 = vst [vmem:[#allocation2 + $0x30] sm:$0xff] %v205
    %214 = vst [vmem:[#allocation2 + $0x38] sm:$0xff] %v206
    // Predicated region
    $region30: #{vit_model_forward.23} parent=1 // pred_check
      %p215 = pneg %p54
    $region31: #{vit_model_forward.23} parent=1 // pred_check_branch
      %217 = sbr.rel (%p215) target = $region33
    $region32: #{vit_model_forward.23} parent=1 // pred_region
      %v218 = vld [vmem:[#allocation2] sm:$0xff]
      %v219 = vld [vmem:[#allocation2 + $0x8] sm:$0xff]
      %v220 = vld [vmem:[#allocation2 + $0x10] sm:$0xff]
      %v221 = vld [vmem:[#allocation2 + $0x18] sm:$0xff]
      %v222 = vld [vmem:[#allocation2 + $0x20] sm:$0xff]
      %v223 = vld [vmem:[#allocation2 + $0x28] sm:$0xff]
      %v224 = vld [vmem:[#allocation2 + $0x30] sm:$0xff]
      %v225 = vld [vmem:[#allocation2 + $0x38] sm:$0xff]
      %v226 = vld [vmem:[#allocation8] sm:$0x3]
      %v228 = vlaneseq
      %v229 = vshrl.u32 %v228, 7
      %v230 = vsub.s32 0, %v229
      %v231 = vrot.slane %v226, %v230
      %v232 = vlaneseq
      %v233 = vshrl.u32 %v232, 7
      %v234 = vsub.s32 1, %v233
      %v235 = vrot.slane %v226, %v234
      %v238 = vadd.f32 %v218, %v231
      %v239 = vadd.f32 %v219, %v235
      %v240 = vadd.f32 %v220, %v231
      %v241 = vadd.f32 %v221, %v235
      %v242 = vadd.f32 %v222, %v231
      %v243 = vadd.f32 %v223, %v235
      %v244 = vadd.f32 %v224, %v231
      %v245 = vadd.f32 %v225, %v235
      %v246 = vmul.f32 %v238, 0.5
      %v247 = vmul.f32 %v239, 0.5
      %v248 = vmul.f32 %v240, 0.5
      %v249 = vmul.f32 %v241, 0.5
      %v250 = vmul.f32 %v242, 0.5
      %v251 = vmul.f32 %v243, 0.5
      %v252 = vmul.f32 %v244, 0.5
      %v253 = vmul.f32 %v245, 0.5
      %v254 = vmul.f32 %v238, 0.70710677
      %v255 = vmul.f32 %v239, 0.70710677
      %v256 = vmul.f32 %v240, 0.70710677
      %v257 = vmul.f32 %v241, 0.70710677
      %v258 = vmul.f32 %v242, 0.70710677
      %v259 = vmul.f32 %v243, 0.70710677
      %v260 = vmul.f32 %v244, 0.70710677
      %v261 = vmul.f32 %v245, 0.70710677
      %vm262 = vcmp.ge.f32.partialorder %v254, 0.0
      %vm263 = vcmp.ge.f32.partialorder %v255, 0.0
      %vm264 = vcmp.ge.f32.partialorder %v256, 0.0
      %vm265 = vcmp.ge.f32.partialorder %v257, 0.0
      %vm266 = vcmp.ge.f32.partialorder %v258, 0.0
      %vm267 = vcmp.ge.f32.partialorder %v259, 0.0
      %vm268 = vcmp.ge.f32.partialorder %v260, 0.0
      %vm269 = vcmp.ge.f32.partialorder %v261, 0.0
      %v270 = vsel %vm262, 1.0, -1.0
      %v271 = vsel %vm263, 1.0, -1.0
      %v272 = vsel %vm264, 1.0, -1.0
      %v273 = vsel %vm265, 1.0, -1.0
      %v274 = vsel %vm266, 1.0, -1.0
      %v275 = vsel %vm267, 1.0, -1.0
      %v276 = vsel %vm268, 1.0, -1.0
      %v277 = vsel %vm269, 1.0, -1.0
      %v278 = vand.u32 2147483647, %v254
      %v279 = vand.u32 2147483647, %v255
      %v280 = vand.u32 2147483647, %v256
      %v281 = vand.u32 2147483647, %v257
      %v282 = vand.u32 2147483647, %v258
      %v283 = vand.u32 2147483647, %v259
      %v284 = vand.u32 2147483647, %v260
      %v285 = vand.u32 2147483647, %v261
      %v286 = vmul.f32 %v278, 0.3275911
      %v287 = vmul.f32 %v279, 0.3275911
      %v288 = vmul.f32 %v280, 0.3275911
      %v289 = vmul.f32 %v281, 0.3275911
      %v290 = vmul.f32 %v282, 0.3275911
      %v291 = vmul.f32 %v283, 0.3275911
      %v292 = vmul.f32 %v284, 0.3275911
      %v293 = vmul.f32 %v285, 0.3275911
      %v294 = vadd.f32 %v286, 1.0
      %v295 = vadd.f32 %v287, 1.0
      %v296 = vadd.f32 %v288, 1.0
      %v297 = vadd.f32 %v289, 1.0
      %v298 = vadd.f32 %v290, 1.0
      %v299 = vadd.f32 %v291, 1.0
      %v300 = vadd.f32 %v292, 1.0
      %v301 = vadd.f32 %v293, 1.0
      %v302 = vrcp.pop %v294
      %v303 = vmul.f32 1.0, %v302
      %v304 = vrcp.pop %v295
      %v305 = vmul.f32 1.0, %v304
      %v306 = vrcp.pop %v296
      %v307 = vmul.f32 1.0, %v306
      %v308 = vrcp.pop %v297
      %v309 = vmul.f32 1.0, %v308
      %v310 = vrcp.pop %v298
      %v311 = vmul.f32 1.0, %v310
      %v312 = vrcp.pop %v299
      %v313 = vmul.f32 1.0, %v312
      %v314 = vrcp.pop %v300
      %v315 = vmul.f32 1.0, %v314
      %v316 = vrcp.pop %v301
      %v317 = vmul.f32 1.0, %v316
      %v318 = vmul.f32 %v303, 1.0614054
      %v319 = vmul.f32 %v305, 1.0614054
      %v320 = vmul.f32 %v307, 1.0614054
      %v321 = vmul.f32 %v309, 1.0614054
      %v322 = vmul.f32 %v311, 1.0614054
      %v323 = vmul.f32 %v313, 1.0614054
      %v324 = vmul.f32 %v315, 1.0614054
      %v325 = vmul.f32 %v317, 1.0614054
      %v326 = vadd.f32 %v318, -1.4531521
      %v327 = vadd.f32 %v319, -1.4531521
      %v328 = vadd.f32 %v320, -1.4531521
      %v329 = vadd.f32 %v321, -1.4531521
      %v330 = vadd.f32 %v322, -1.4531521
      %v331 = vadd.f32 %v323, -1.4531521
      %v332 = vadd.f32 %v324, -1.4531521
      %v333 = vadd.f32 %v325, -1.4531521
      %v334 = vmul.f32 %v303, %v326
      %v335 = vmul.f32 %v305, %v327
      %v336 = vmul.f32 %v307, %v328
      %v337 = vmul.f32 %v309, %v329
      %v338 = vmul.f32 %v311, %v330
      %v339 = vmul.f32 %v313, %v331
      %v340 = vmul.f32 %v315, %v332
      %v341 = vmul.f32 %v317, %v333
      %v342 = vadd.f32 %v334, 1.4214138
      %v343 = vadd.f32 %v335, 1.4214138
      %v344 = vadd.f32 %v336, 1.4214138
      %v345 = vadd.f32 %v337, 1.4214138
      %v346 = vadd.f32 %v338, 1.4214138
      %v347 = vadd.f32 %v339, 1.4214138
      %v348 = vadd.f32 %v340, 1.4214138
      %v349 = vadd.f32 %v341, 1.4214138
      %v350 = vmul.f32 %v303, %v342
      %v351 = vmul.f32 %v305, %v343
      %v352 = vmul.f32 %v307, %v344
      %v353 = vmul.f32 %v309, %v345
      %v354 = vmul.f32 %v311, %v346
      %v355 = vmul.f32 %v313, %v347
      %v356 = vmul.f32 %v315, %v348
      %v357 = vmul.f32 %v317, %v349
      %v358 = vadd.f32 %v350, -0.28449672
      %v359 = vadd.f32 %v351, -0.28449672
      %v360 = vadd.f32 %v352, -0.28449672
      %v361 = vadd.f32 %v353, -0.28449672
      %v362 = vadd.f32 %v354, -0.28449672
      %v363 = vadd.f32 %v355, -0.28449672
      %v364 = vadd.f32 %v356, -0.28449672
      %v365 = vadd.f32 %v357, -0.28449672
      %v366 = vmul.f32 %v303, %v358
      %v367 = vmul.f32 %v305, %v359
      %v368 = vmul.f32 %v307, %v360
      %v369 = vmul.f32 %v309, %v361
      %v370 = vmul.f32 %v311, %v362
      %v371 = vmul.f32 %v313, %v363
      %v372 = vmul.f32 %v315, %v364
      %v373 = vmul.f32 %v317, %v365
      %v374 = vadd.f32 %v366, 0.2548296
      %v375 = vadd.f32 %v367, 0.2548296
      %v376 = vadd.f32 %v368, 0.2548296
      %v377 = vadd.f32 %v369, 0.2548296
      %v378 = vadd.f32 %v370, 0.2548296
      %v379 = vadd.f32 %v371, 0.2548296
      %v380 = vadd.f32 %v372, 0.2548296
      %v381 = vadd.f32 %v373, 0.2548296
      %v382 = vmul.f32 %v303, %v374
      %v383 = vmul.f32 %v305, %v375
      %v384 = vmul.f32 %v307, %v376
      %v385 = vmul.f32 %v309, %v377
      %v386 = vmul.f32 %v311, %v378
      %v387 = vmul.f32 %v313, %v379
      %v388 = vmul.f32 %v315, %v380
      %v389 = vmul.f32 %v317, %v381
      %v390 = vsub.f32 0.0, %v278
      %v391 = vsub.f32 0.0, %v279
      %v392 = vsub.f32 0.0, %v280
      %v393 = vsub.f32 0.0, %v281
      %v394 = vsub.f32 0.0, %v282
      %v395 = vsub.f32 0.0, %v283
      %v396 = vsub.f32 0.0, %v284
      %v397 = vsub.f32 0.0, %v285
      %v398 = vmul.f32 %v390, %v278
      %v399 = vmul.f32 %v391, %v279
      %v400 = vmul.f32 %v392, %v280
      %v401 = vmul.f32 %v393, %v281
      %v402 = vmul.f32 %v394, %v282
      %v403 = vmul.f32 %v395, %v283
      %v404 = vmul.f32 %v396, %v284
      %v405 = vmul.f32 %v397, %v285
      %v406 = vmul.f32 %v398, 1.442695
      %v407 = vpow.pop %v406
      %v408 = vmul.f32 %v399, 1.442695
      %v409 = vpow.pop %v408
      %v410 = vmul.f32 %v400, 1.442695
      %v411 = vpow.pop %v410
      %v412 = vmul.f32 %v401, 1.442695
      %v413 = vpow.pop %v412
      %v414 = vmul.f32 %v402, 1.442695
      %v415 = vpow.pop %v414
      %v416 = vmul.f32 %v403, 1.442695
      %v417 = vpow.pop %v416
      %v418 = vmul.f32 %v404, 1.442695
      %v419 = vpow.pop %v418
      %v420 = vmul.f32 %v405, 1.442695
      %v421 = vpow.pop %v420
      %v422 = vmul.f32 %v382, %v407
      %v423 = vmul.f32 %v383, %v409
      %v424 = vmul.f32 %v384, %v411
      %v425 = vmul.f32 %v385, %v413
      %v426 = vmul.f32 %v386, %v415
      %v427 = vmul.f32 %v387, %v417
      %v428 = vmul.f32 %v388, %v419
      %v429 = vmul.f32 %v389, %v421
      %v430 = vsub.f32 1.0, %v422
      %v431 = vsub.f32 1.0, %v423
      %v432 = vsub.f32 1.0, %v424
      %v433 = vsub.f32 1.0, %v425
      %v434 = vsub.f32 1.0, %v426
      %v435 = vsub.f32 1.0, %v427
      %v436 = vsub.f32 1.0, %v428
      %v437 = vsub.f32 1.0, %v429
      %v438 = vmul.f32 %v270, %v430
      %v439 = vmul.f32 %v271, %v431
      %v440 = vmul.f32 %v272, %v432
      %v441 = vmul.f32 %v273, %v433
      %v442 = vmul.f32 %v274, %v434
      %v443 = vmul.f32 %v275, %v435
      %v444 = vmul.f32 %v276, %v436
      %v445 = vmul.f32 %v277, %v437
      %v446 = vadd.f32 %v438, 1.0
      %v447 = vadd.f32 %v439, 1.0
      %v448 = vadd.f32 %v440, 1.0
      %v449 = vadd.f32 %v441, 1.0
      %v450 = vadd.f32 %v442, 1.0
      %v451 = vadd.f32 %v443, 1.0
      %v452 = vadd.f32 %v444, 1.0
      %v453 = vadd.f32 %v445, 1.0
      %v454 = vmul.f32 %v246, %v446
      %v455 = vmul.f32 %v247, %v447
      %v456 = vmul.f32 %v248, %v448
      %v457 = vmul.f32 %v249, %v449
      %v458 = vmul.f32 %v250, %v450
      %v459 = vmul.f32 %v251, %v451
      %v460 = vmul.f32 %v252, %v452
      %v461 = vmul.f32 %v253, %v453
      %462 = vst [vmem:[#allocation9] sm:$0xff] %v454
      %463 = vst [vmem:[#allocation9 + $0x8] sm:$0xff] %v455
      %464 = vst [vmem:[#allocation9 + $0x10] sm:$0xff] %v456
      %465 = vst [vmem:[#allocation9 + $0x18] sm:$0xff] %v457
      %466 = vst [vmem:[#allocation9 + $0x20] sm:$0xff] %v458
      %467 = vst [vmem:[#allocation9 + $0x28] sm:$0xff] %v459
      %468 = vst [vmem:[#allocation9 + $0x30] sm:$0xff] %v460
      %469 = vst [vmem:[#allocation9 + $0x38] sm:$0xff] %v461
    $region33: #{vit_model_forward.23} parent=1 // pred_fallthru
      _
    // Predicated region
    $region34: #{vit_model_forward.23} parent=1 // pred_check
      _
    $region35: #{vit_model_forward.23} parent=1 // pred_check_branch
      %471 = sbr.rel (0) target = $region37
    $region36: #{vit_model_forward.23} parent=1 // pred_region
      %s473 = ssub.s32 1024, 1024
      %474 = vsyncadd [#allocation5], %s473
      %s475 = sshll.u32 [#allocation9], 4
      %s476 = int_to_ptr.vmem [resolvable:$true] %s475
      %481 = dma.vmem_to_hbm [thread:$0]  %s476, 1024, %s3, [#allocation5], 256, 256, 16
    $region37: #{vit_model_forward.23} parent=1 // pred_fallthru
      _
    // Predicated region
    $region38: #{vit_model_forward.23} parent=1 // pred_check
      _
    $region39: #{vit_model_forward.23} parent=1 // pred_check_branch
      %483 = sbr.rel (0) target = $region41
    $region40: #{vit_model_forward.23} parent=1 // pred_region
      %484 = dma.done [#allocation5], 1024
    $region41: #{vit_model_forward.23} parent=1 // pred_fallthru
      _
    %485 = vsyncpa [#allocation4], 1
    %486 = vsyncpa [#allocation7], 1
    %487 = vsyncpa [#allocation5], 1

</llo_original>
